<compile_context>
chip_gen: v6e
topology: v6e:2x2x1
jax: 0.10.0
libtpu: 0.0.40
codegen_flags: <defaults>
</compile_context>

<pallas_src>
import jax
import jax.numpy as jnp
from jax.experimental import pallas as pl
from jax.experimental.pallas import tpu as pltpu


# ---- static geometry (input (N, 3, 16, 16), NCHW) -------------------------
H_IN, W_IN = 16, 16
FW = 28                       # shared frame pitch (columns)
FH = 21                       # shared frame rows
FHW = FH * FW                 # 588 flat positions per channel

# Frame placement (derived so conv outputs land where the next stage reads):
#   x              -> rows 3..18, cols  8..23
#   conv_0 output  -> rows 2..18, cols  5..23   (17 x 19 valid)
#   conv_1 output  -> rows 2..14, cols  2..23   (13 x 22 valid)
#   conv_2 output  -> rows 0..14, cols  0..24   (15 x 25 valid)
S0, L0 = 2 * FW, 17 * FW      # conv_0 accumulator span (frame rows 2..18)
S1, L1 = 2 * FW, 13 * FW      # conv_1 accumulator span (frame rows 2..14)
S2, L2 = 0 * FW, 15 * FW      # conv_2 accumulator span (frame rows 0..14)

OH2, OW2 = 15, 25             # final output spatial size


def fused_kernel(x_ref, w0_ref, b0_ref, w1_ref, b1_ref, w2_ref, b2_ref,
                 v0_ref, v1_ref, p1_ref, o_ref, b1buf, b2buf):
    f32 = jnp.float32

    # ---- conv_0: 3 -> 12, k=2 (zero pads already baked into the x frame) --
    acc0 = jnp.broadcast_to(b0_ref[...], (12, L0))          # (12, 476)
    for ci in range(3):
        for kh in range(2):
            for kw in range(2):
                d = S0 + kh * FW + kw
                col = ci * 4 + kh * 2 + kw
                row = x_ref[ci:ci + 1, d:d + L0]             # (1, L0) ref slice
                w = w0_ref[:, col:col + 1]                   # (12, 1)
                acc0 = acc0 + row * w                        # (12, L0) FMA
    # F.pad(., (3,4), 2.3): blend the 2.3 pad columns, store as conv_1 input.
    blended0 = jnp.where(v0_ref[...] > 0.5, acc0, f32(2.3))
    b1buf[:, S0:S0 + L0] = blended0

    # ---- conv_1: depthwise 12 ch, k=5 --------------------------------------
    acc1 = jnp.broadcast_to(b1_ref[...], (12, L1))           # (12, 364)
    for kh in range(5):
        for kw in range(5):
            d = S1 + kh * FW + kw
            w = w1_ref[:, kh * 5 + kw:kh * 5 + kw + 1]       # (12, 1)
            acc1 = acc1 + b1buf[:, d:d + L1] * w             # ref-sliced tap
    # F.pad(., (0,1), 1) + conv_2 zero padding=2:
    #   blend columns (data / 1.0-column / zeros), zero the two border row
    #   strips, store the interior as conv_2's padded input frame.
    blended1 = jnp.where(v1_ref[...] > 0.5, acc1, p1_ref[...])
    b2buf[:, 0:2 * FW] = jnp.zeros((12, 2 * FW), f32)        # frame rows 0..1
    b2buf[:, 15 * FW:17 * FW] = jnp.zeros((12, 2 * FW), f32)  # frame rows 15..16
    b2buf[:, S1:S1 + L1] = blended1

    # ---- conv_2: 12 -> 4, k=3, groups=2 ------------------------------------
    accs = [jnp.broadcast_to(b2_ref[o:o + 1, :], (1, L2)) for o in range(4)]
    for kh in range(3):
        for kw in range(3):
            d = S2 + kh * FW + kw
            for g in range(2):
                patch = b2buf[6 * g:6 * g + 6, d:d + L2]     # (6, L2) ref slice
                for oo in range(2):
                    o = 2 * g + oo
                    col = o * 9 + kh * 3 + kw
                    w = w2_ref[:, col:col + 1]               # (6, 1)
                    accs[o] = accs[o] + jnp.sum(patch * w, axis=0, keepdims=True)
    # One stacked lane-dense store for all 4 output channels.
    o_ref[...] = jnp.concatenate(accs, axis=0).astype(o_ref.dtype)


def _frame_input(x):
    """Embed x into the shared frame (pure zero-pad layout plumbing)."""
    n = x.shape[0]
    xf = jnp.pad(x, ((0, 0), (0, 0), (3, FH - 3 - H_IN), (8, FW - 8 - W_IN)))
    return xf.reshape(n, 3, FHW)


def _blend_masks():
    col0 = jnp.arange(L0, dtype=jnp.int32) % FW
    col1 = jnp.arange(L1, dtype=jnp.int32) % FW
    valid0 = ((col0 >= 5) & (col0 <= 23)).astype(jnp.float32)[None, :]
    valid1 = ((col1 >= 2) & (col1 <= 23)).astype(jnp.float32)[None, :]
    padv1 = (col1 == 24).astype(jnp.float32)[None, :]        # the value-1.0 column
    return valid0, valid1, padv1


@jax.jit
def model_forward(x, params):
    w0, b0, w1, b1, w2, b2 = params
    n = x.shape[0]

    xf = _frame_input(x)
    valid0, valid1, padv1 = _blend_masks()

    # Weights as small VMEM matrices: one (C,1) column per (ci, tap) / tap.
    w0k = w0.reshape(12, 12)                                       # col = ci*4+kh*2+kw
    w1k = w1.reshape(12, 25)                                       # col = kh*5+kw
    w2k = jnp.transpose(w2.reshape(4, 6, 9), (1, 0, 2)).reshape(6, 36)  # col = o*9+kh*3+kw
    b0c, b1c, b2c = b0.reshape(12, 1), b1.reshape(12, 1), b2.reshape(4, 1)

    def whole(shape):
        return pl.BlockSpec(shape, lambda i, _s=shape: (0,) * len(_s))

    y = pl.pallas_call(
        fused_kernel,
        out_shape=jax.ShapeDtypeStruct((n, 4, L2), x.dtype),
        grid=(n,),
        in_specs=[
            pl.BlockSpec((None, 3, FHW), lambda i: (i, 0, 0)),     # framed input
            whole((12, 12)), whole((12, 1)),                       # conv_0 w, b
            whole((12, 25)), whole((12, 1)),                       # conv_1 w, b
            whole((6, 36)), whole((4, 1)),                         # conv_2 w, b
            whole((1, L0)), whole((1, L1)), whole((1, L1)),        # blend masks
        ],
        out_specs=pl.BlockSpec((None, 4, L2), lambda i: (i, 0, 0)),
        scratch_shapes=[
            pltpu.VMEM((12, FHW), jnp.float32),   # conv_1 padded input frame
            pltpu.VMEM((12, FHW), jnp.float32),   # conv_2 padded input frame
        ],
        compiler_params=pltpu.CompilerParams(
            dimension_semantics=("parallel",)),   # v7x: one sample per TC
    )(xf, w0k, b0c, w1k, b1c, w2k, b2c, valid0, valid1, padv1)

    # Lane-dense output slab -> standard NCHW (crop the frame columns).
    return y.reshape(n, 4, OH2, FW)[:, :, :, :OW2]


def model_forward_ref(x, params):
    """Pure-JAX reference (lax conv) for correctness checking."""
    w0, b0, w1, b1, w2, b2 = params

    def conv(x, w, b, groups):
        y = jax.lax.conv_general_dilated(
            x, w, window_strides=(1, 1), padding="VALID",
            dimension_numbers=("NCHW", "OIHW", "NCHW"),
            feature_group_count=groups)
        return y + b[None, :, None, None]

    x = jnp.pad(x, ((0, 0), (0, 0), (0, 0), (2, 0)), constant_values=0.0)
    x = jnp.pad(x, ((0, 0), (0, 0), (1, 1), (1, 1)), constant_values=0.0)
    x = conv(x, w0, b0, 1)
    x = jnp.pad(x, ((0, 0), (0, 0), (0, 0), (3, 4)), constant_values=2.3)
    x = conv(x, w1, b1, 12)
    x = jnp.pad(x, ((0, 0), (0, 0), (0, 0), (0, 1)), constant_values=1.0)
    x = jnp.pad(x, ((0, 0), (0, 0), (2, 2), (2, 2)), constant_values=0.0)
    x = conv(x, w2, b2, 2)
    return x


def init_params(key):
    ks = jax.random.split(key, 6)

    def u(k, shape, fan_in):
        bound = 1.0 / (fan_in ** 0.5)
        return jax.random.uniform(k, shape, jnp.float32, -bound, bound)

    w0 = u(ks[0], (12, 3, 2, 2), 3 * 2 * 2)
    b0 = u(ks[1], (12,), 3 * 2 * 2)
    w1 = u(ks[2], (12, 1, 5, 5), 1 * 5 * 5)   # depthwise: groups=12
    b1 = u(ks[3], (12,), 1 * 5 * 5)
    w2 = u(ks[4], (4, 6, 3, 3), 6 * 3 * 3)    # groups=2: 6 in-ch per group
    b2 = u(ks[5], (4,), 6 * 3 * 3)
    return w0, b0, w1, b1, w2, b2


if __name__ == "__main__":
    key = jax.random.PRNGKey(0)
    k_x, k_p = jax.random.split(key)
    x = jax.random.normal(k_x, (2, 3, 16, 16), dtype=jnp.float32)
    params = init_params(k_p)

    out = jax.block_until_ready(model_forward(x, params))
    assert out.shape == (2, 4, 15, 25), out.shape

    ref = jax.block_until_ready(model_forward_ref(x, params))
    assert jnp.allclose(out, ref, rtol=1e-4, atol=1e-4), float(
        jnp.max(jnp.abs(out - ref)))

    print("KERNEL_OK")
</pallas_src>

<mosaic_0001>
module attributes {stable_mosaic.version = 11 : i64} {
  func.func @fused_kernel(%arg0: i32, %arg1: memref<1x3x588xf32, #tpu.memory_space<vmem>>, %arg2: memref<12x12xf32, #tpu.memory_space<vmem>>, %arg3: memref<12x1xf32, #tpu.memory_space<vmem>>, %arg4: memref<12x25xf32, #tpu.memory_space<vmem>>, %arg5: memref<12x1xf32, #tpu.memory_space<vmem>>, %arg6: memref<6x36xf32, #tpu.memory_space<vmem>>, %arg7: memref<4x1xf32, #tpu.memory_space<vmem>>, %arg8: memref<1x476xf32, #tpu.memory_space<vmem>>, %arg9: memref<1x364xf32, #tpu.memory_space<vmem>>, %arg10: memref<1x364xf32, #tpu.memory_space<vmem>>, %arg11: memref<1x4x420xf32, #tpu.memory_space<vmem>>, %arg12: memref<12x588xf32, #tpu.memory_space<vmem>>, %arg13: memref<12x588xf32, #tpu.memory_space<vmem>>) attributes {dimension_semantics = [#tpu.dimension_semantics<parallel>], iteration_bounds = array<i64: 2>, scalar_prefetch = 0 : i64, scratch_operands = 2 : i64, tpu.core_type = #tpu.core_type<tc>, window_params = [{transform_indices = @transform_0, window_bounds = array<i64: 1, 3, 588>}, {pipeline_mode = #tpu.pipeline_mode<synchronous>, transform_indices = @transform_1, window_bounds = array<i64: 12, 12>}, {pipeline_mode = #tpu.pipeline_mode<synchronous>, transform_indices = @transform_2, window_bounds = array<i64: 12, 1>}, {pipeline_mode = #tpu.pipeline_mode<synchronous>, transform_indices = @transform_3, window_bounds = array<i64: 12, 25>}, {pipeline_mode = #tpu.pipeline_mode<synchronous>, transform_indices = @transform_4, window_bounds = array<i64: 12, 1>}, {pipeline_mode = #tpu.pipeline_mode<synchronous>, transform_indices = @transform_5, window_bounds = array<i64: 6, 36>}, {pipeline_mode = #tpu.pipeline_mode<synchronous>, transform_indices = @transform_6, window_bounds = array<i64: 4, 1>}, {pipeline_mode = #tpu.pipeline_mode<synchronous>, transform_indices = @transform_7, window_bounds = array<i64: 1, 476>}, {pipeline_mode = #tpu.pipeline_mode<synchronous>, transform_indices = @transform_8, window_bounds = array<i64: 1, 364>}, {pipeline_mode = #tpu.pipeline_mode<synchronous>, transform_indices = @transform_9, window_bounds = array<i64: 1, 364>}, {transform_indices = @transform_10, window_bounds = array<i64: 1, 4, 420>}]} {
    %c0 = arith.constant 0 : index
    %c0_0 = arith.constant 0 : index
    %0 = vector.load %arg3[%c0, %c0_0] : memref<12x1xf32, #tpu.memory_space<vmem>>, vector<12x1xf32>
    %1 = vector.shape_cast %0 : vector<12x1xf32> to vector<12x1xf32>
    %2 = vector.broadcast %1 : vector<12x1xf32> to vector<12x476xf32>
    %c0_1 = arith.constant 0 : index
    %c0_2 = arith.constant 0 : index
    %c56 = arith.constant 56 : index
    %3 = vector.load %arg1[%c0_1, %c0_2, %c56] : memref<1x3x588xf32, #tpu.memory_space<vmem>>, vector<1x1x476xf32>
    %4 = vector.shape_cast %3 : vector<1x1x476xf32> to vector<1x476xf32>
    %c0_3 = arith.constant 0 : index
    %c0_4 = arith.constant 0 : index
    %5 = vector.load %arg2[%c0_3, %c0_4] : memref<12x12xf32, #tpu.memory_space<vmem>>, vector<12x1xf32>
    %6 = vector.broadcast %4 : vector<1x476xf32> to vector<12x476xf32>
    %7 = vector.broadcast %5 : vector<12x1xf32> to vector<12x476xf32>
    %8 = arith.mulf %6, %7 : vector<12x476xf32>
    %9 = arith.addf %2, %8 : vector<12x476xf32>
    %c0_5 = arith.constant 0 : index
    %c0_6 = arith.constant 0 : index
    %c57 = arith.constant 57 : index
    %10 = vector.load %arg1[%c0_5, %c0_6, %c57] : memref<1x3x588xf32, #tpu.memory_space<vmem>>, vector<1x1x476xf32>
    %11 = vector.shape_cast %10 : vector<1x1x476xf32> to vector<1x476xf32>
    %c0_7 = arith.constant 0 : index
    %c1 = arith.constant 1 : index
    %12 = vector.load %arg2[%c0_7, %c1] : memref<12x12xf32, #tpu.memory_space<vmem>>, vector<12x1xf32>
    %13 = vector.broadcast %11 : vector<1x476xf32> to vector<12x476xf32>
    %14 = vector.broadcast %12 : vector<12x1xf32> to vector<12x476xf32>
    %15 = arith.mulf %13, %14 : vector<12x476xf32>
    %16 = arith.addf %9, %15 : vector<12x476xf32>
    %c0_8 = arith.constant 0 : index
    %c0_9 = arith.constant 0 : index
    %c84 = arith.constant 84 : index
    %17 = vector.load %arg1[%c0_8, %c0_9, %c84] : memref<1x3x588xf32, #tpu.memory_space<vmem>>, vector<1x1x476xf32>
    %18 = vector.shape_cast %17 : vector<1x1x476xf32> to vector<1x476xf32>
    %c0_10 = arith.constant 0 : index
    %c2 = arith.constant 2 : index
    %19 = vector.load %arg2[%c0_10, %c2] : memref<12x12xf32, #tpu.memory_space<vmem>>, vector<12x1xf32>
    %20 = vector.broadcast %18 : vector<1x476xf32> to vector<12x476xf32>
    %21 = vector.broadcast %19 : vector<12x1xf32> to vector<12x476xf32>
    %22 = arith.mulf %20, %21 : vector<12x476xf32>
    %23 = arith.addf %16, %22 : vector<12x476xf32>
    %c0_11 = arith.constant 0 : index
    %c0_12 = arith.constant 0 : index
    %c85 = arith.constant 85 : index
    %24 = vector.load %arg1[%c0_11, %c0_12, %c85] : memref<1x3x588xf32, #tpu.memory_space<vmem>>, vector<1x1x476xf32>
    %25 = vector.shape_cast %24 : vector<1x1x476xf32> to vector<1x476xf32>
    %c0_13 = arith.constant 0 : index
    %c3 = arith.constant 3 : index
    %26 = vector.load %arg2[%c0_13, %c3] : memref<12x12xf32, #tpu.memory_space<vmem>>, vector<12x1xf32>
    %27 = vector.broadcast %25 : vector<1x476xf32> to vector<12x476xf32>
    %28 = vector.broadcast %26 : vector<12x1xf32> to vector<12x476xf32>
    %29 = arith.mulf %27, %28 : vector<12x476xf32>
    %30 = arith.addf %23, %29 : vector<12x476xf32>
    %c0_14 = arith.constant 0 : index
    %c1_15 = arith.constant 1 : index
    %c56_16 = arith.constant 56 : index
    %31 = vector.load %arg1[%c0_14, %c1_15, %c56_16] : memref<1x3x588xf32, #tpu.memory_space<vmem>>, vector<1x1x476xf32>
    %32 = vector.shape_cast %31 : vector<1x1x476xf32> to vector<1x476xf32>
    %c0_17 = arith.constant 0 : index
    %c4 = arith.constant 4 : index
    %33 = vector.load %arg2[%c0_17, %c4] : memref<12x12xf32, #tpu.memory_space<vmem>>, vector<12x1xf32>
    %34 = vector.broadcast %32 : vector<1x476xf32> to vector<12x476xf32>
    %35 = vector.broadcast %33 : vector<12x1xf32> to vector<12x476xf32>
    %36 = arith.mulf %34, %35 : vector<12x476xf32>
    %37 = arith.addf %30, %36 : vector<12x476xf32>
    %c0_18 = arith.constant 0 : index
    %c1_19 = arith.constant 1 : index
    %c57_20 = arith.constant 57 : index
    %38 = vector.load %arg1[%c0_18, %c1_19, %c57_20] : memref<1x3x588xf32, #tpu.memory_space<vmem>>, vector<1x1x476xf32>
    %39 = vector.shape_cast %38 : vector<1x1x476xf32> to vector<1x476xf32>
    %c0_21 = arith.constant 0 : index
    %c5 = arith.constant 5 : index
    %40 = vector.load %arg2[%c0_21, %c5] : memref<12x12xf32, #tpu.memory_space<vmem>>, vector<12x1xf32>
    %41 = vector.broadcast %39 : vector<1x476xf32> to vector<12x476xf32>
    %42 = vector.broadcast %40 : vector<12x1xf32> to vector<12x476xf32>
    %43 = arith.mulf %41, %42 : vector<12x476xf32>
    %44 = arith.addf %37, %43 : vector<12x476xf32>
    %c0_22 = arith.constant 0 : index
    %c1_23 = arith.constant 1 : index
    %c84_24 = arith.constant 84 : index
    %45 = vector.load %arg1[%c0_22, %c1_23, %c84_24] : memref<1x3x588xf32, #tpu.memory_space<vmem>>, vector<1x1x476xf32>
    %46 = vector.shape_cast %45 : vector<1x1x476xf32> to vector<1x476xf32>
    %c0_25 = arith.constant 0 : index
    %c6 = arith.constant 6 : index
    %47 = vector.load %arg2[%c0_25, %c6] : memref<12x12xf32, #tpu.memory_space<vmem>>, vector<12x1xf32>
    %48 = vector.broadcast %46 : vector<1x476xf32> to vector<12x476xf32>
    %49 = vector.broadcast %47 : vector<12x1xf32> to vector<12x476xf32>
    %50 = arith.mulf %48, %49 : vector<12x476xf32>
    %51 = arith.addf %44, %50 : vector<12x476xf32>
    %c0_26 = arith.constant 0 : index
    %c1_27 = arith.constant 1 : index
    %c85_28 = arith.constant 85 : index
    %52 = vector.load %arg1[%c0_26, %c1_27, %c85_28] : memref<1x3x588xf32, #tpu.memory_space<vmem>>, vector<1x1x476xf32>
    %53 = vector.shape_cast %52 : vector<1x1x476xf32> to vector<1x476xf32>
    %c0_29 = arith.constant 0 : index
    %c7 = arith.constant 7 : index
    %54 = vector.load %arg2[%c0_29, %c7] : memref<12x12xf32, #tpu.memory_space<vmem>>, vector<12x1xf32>
    %55 = vector.broadcast %53 : vector<1x476xf32> to vector<12x476xf32>
    %56 = vector.broadcast %54 : vector<12x1xf32> to vector<12x476xf32>
    %57 = arith.mulf %55, %56 : vector<12x476xf32>
    %58 = arith.addf %51, %57 : vector<12x476xf32>
    %c0_30 = arith.constant 0 : index
    %c2_31 = arith.constant 2 : index
    %c56_32 = arith.constant 56 : index
    %59 = vector.load %arg1[%c0_30, %c2_31, %c56_32] : memref<1x3x588xf32, #tpu.memory_space<vmem>>, vector<1x1x476xf32>
    %60 = vector.shape_cast %59 : vector<1x1x476xf32> to vector<1x476xf32>
    %c0_33 = arith.constant 0 : index
    %c8 = arith.constant 8 : index
    %61 = vector.load %arg2[%c0_33, %c8] : memref<12x12xf32, #tpu.memory_space<vmem>>, vector<12x1xf32>
    %62 = vector.broadcast %60 : vector<1x476xf32> to vector<12x476xf32>
    %63 = vector.broadcast %61 : vector<12x1xf32> to vector<12x476xf32>
    %64 = arith.mulf %62, %63 : vector<12x476xf32>
    %65 = arith.addf %58, %64 : vector<12x476xf32>
    %c0_34 = arith.constant 0 : index
    %c2_35 = arith.constant 2 : index
    %c57_36 = arith.constant 57 : index
    %66 = vector.load %arg1[%c0_34, %c2_35, %c57_36] : memref<1x3x588xf32, #tpu.memory_space<vmem>>, vector<1x1x476xf32>
    %67 = vector.shape_cast %66 : vector<1x1x476xf32> to vector<1x476xf32>
    %c0_37 = arith.constant 0 : index
    %c9 = arith.constant 9 : index
    %68 = vector.load %arg2[%c0_37, %c9] : memref<12x12xf32, #tpu.memory_space<vmem>>, vector<12x1xf32>
    %69 = vector.broadcast %67 : vector<1x476xf32> to vector<12x476xf32>
    %70 = vector.broadcast %68 : vector<12x1xf32> to vector<12x476xf32>
    %71 = arith.mulf %69, %70 : vector<12x476xf32>
    %72 = arith.addf %65, %71 : vector<12x476xf32>
    %c0_38 = arith.constant 0 : index
    %c2_39 = arith.constant 2 : index
    %c84_40 = arith.constant 84 : index
    %73 = vector.load %arg1[%c0_38, %c2_39, %c84_40] : memref<1x3x588xf32, #tpu.memory_space<vmem>>, vector<1x1x476xf32>
    %74 = vector.shape_cast %73 : vector<1x1x476xf32> to vector<1x476xf32>
    %c0_41 = arith.constant 0 : index
    %c10 = arith.constant 10 : index
    %75 = vector.load %arg2[%c0_41, %c10] : memref<12x12xf32, #tpu.memory_space<vmem>>, vector<12x1xf32>
    %76 = vector.broadcast %74 : vector<1x476xf32> to vector<12x476xf32>
    %77 = vector.broadcast %75 : vector<12x1xf32> to vector<12x476xf32>
    %78 = arith.mulf %76, %77 : vector<12x476xf32>
    %79 = arith.addf %72, %78 : vector<12x476xf32>
    %c0_42 = arith.constant 0 : index
    %c2_43 = arith.constant 2 : index
    %c85_44 = arith.constant 85 : index
    %80 = vector.load %arg1[%c0_42, %c2_43, %c85_44] : memref<1x3x588xf32, #tpu.memory_space<vmem>>, vector<1x1x476xf32>
    %81 = vector.shape_cast %80 : vector<1x1x476xf32> to vector<1x476xf32>
    %c0_45 = arith.constant 0 : index
    %c11 = arith.constant 11 : index
    %82 = vector.load %arg2[%c0_45, %c11] : memref<12x12xf32, #tpu.memory_space<vmem>>, vector<12x1xf32>
    %83 = vector.broadcast %81 : vector<1x476xf32> to vector<12x476xf32>
    %84 = vector.broadcast %82 : vector<12x1xf32> to vector<12x476xf32>
    %85 = arith.mulf %83, %84 : vector<12x476xf32>
    %86 = arith.addf %79, %85 : vector<12x476xf32>
    %c0_46 = arith.constant 0 : index
    %c0_47 = arith.constant 0 : index
    %87 = vector.load %arg8[%c0_46, %c0_47] : memref<1x476xf32, #tpu.memory_space<vmem>>, vector<1x476xf32>
    %cst = arith.constant 5.000000e-01 : f32
    %88 = vector.broadcast %cst : f32 to vector<1x476xf32>
    %89 = arith.cmpf ogt, %87, %88 : vector<1x476xf32>
    %cst_48 = arith.constant 2.300000e+00 : f32
    %90 = vector.shape_cast %89 : vector<1x476xi1> to vector<1x476xi1>
    %91 = vector.broadcast %90 : vector<1x476xi1> to vector<12x476xi1>
    %92 = vector.broadcast %cst_48 : f32 to vector<12x476xf32>
    %93 = arith.select %91, %86, %92 : vector<12x476xi1>, vector<12x476xf32>
    %c0_49 = arith.constant 0 : index
    %c56_50 = arith.constant 56 : index
    %94 = vector.load %arg12[%c0_49, %c56_50] : memref<12x588xf32, #tpu.memory_space<vmem>>, vector<12x476xf32>
    tpu.vector_store %arg12[%c0_49, %c56_50], %93 {strides = array<i32>} : memref<12x588xf32, #tpu.memory_space<vmem>>, vector<12x476xf32>,
    %c0_51 = arith.constant 0 : index
    %c0_52 = arith.constant 0 : index
    %95 = vector.load %arg5[%c0_51, %c0_52] : memref<12x1xf32, #tpu.memory_space<vmem>>, vector<12x1xf32>
    %96 = vector.shape_cast %95 : vector<12x1xf32> to vector<12x1xf32>
    %97 = vector.broadcast %96 : vector<12x1xf32> to vector<12x364xf32>
    %c0_53 = arith.constant 0 : index
    %c0_54 = arith.constant 0 : index
    %98 = vector.load %arg4[%c0_53, %c0_54] : memref<12x25xf32, #tpu.memory_space<vmem>>, vector<12x1xf32>
    %c0_55 = arith.constant 0 : index
    %c56_56 = arith.constant 56 : index
    %99 = vector.load %arg12[%c0_55, %c56_56] : memref<12x588xf32, #tpu.memory_space<vmem>>, vector<12x364xf32>
    %100 = vector.broadcast %98 : vector<12x1xf32> to vector<12x364xf32>
    %101 = arith.mulf %99, %100 : vector<12x364xf32>
    %102 = arith.addf %97, %101 : vector<12x364xf32>
    %c0_57 = arith.constant 0 : index
    %c1_58 = arith.constant 1 : index
    %103 = vector.load %arg4[%c0_57, %c1_58] : memref<12x25xf32, #tpu.memory_space<vmem>>, vector<12x1xf32>
    %c0_59 = arith.constant 0 : index
    %c57_60 = arith.constant 57 : index
    %104 = vector.load %arg12[%c0_59, %c57_60] : memref<12x588xf32, #tpu.memory_space<vmem>>, vector<12x364xf32>
    %105 = vector.broadcast %103 : vector<12x1xf32> to vector<12x364xf32>
    %106 = arith.mulf %104, %105 : vector<12x364xf32>
    %107 = arith.addf %102, %106 : vector<12x364xf32>
    %c0_61 = arith.constant 0 : index
    %c2_62 = arith.constant 2 : index
    %108 = vector.load %arg4[%c0_61, %c2_62] : memref<12x25xf32, #tpu.memory_space<vmem>>, vector<12x1xf32>
    %c0_63 = arith.constant 0 : index
    %c58 = arith.constant 58 : index
    %109 = vector.load %arg12[%c0_63, %c58] : memref<12x588xf32, #tpu.memory_space<vmem>>, vector<12x364xf32>
    %110 = vector.broadcast %108 : vector<12x1xf32> to vector<12x364xf32>
    %111 = arith.mulf %109, %110 : vector<12x364xf32>
    %112 = arith.addf %107, %111 : vector<12x364xf32>
    %c0_64 = arith.constant 0 : index
    %c3_65 = arith.constant 3 : index
    %113 = vector.load %arg4[%c0_64, %c3_65] : memref<12x25xf32, #tpu.memory_space<vmem>>, vector<12x1xf32>
    %c0_66 = arith.constant 0 : index
    %c59 = arith.constant 59 : index
    %114 = vector.load %arg12[%c0_66, %c59] : memref<12x588xf32, #tpu.memory_space<vmem>>, vector<12x364xf32>
    %115 = vector.broadcast %113 : vector<12x1xf32> to vector<12x364xf32>
    %116 = arith.mulf %114, %115 : vector<12x364xf32>
    %117 = arith.addf %112, %116 : vector<12x364xf32>
    %c0_67 = arith.constant 0 : index
    %c4_68 = arith.constant 4 : index
    %118 = vector.load %arg4[%c0_67, %c4_68] : memref<12x25xf32, #tpu.memory_space<vmem>>, vector<12x1xf32>
    %c0_69 = arith.constant 0 : index
    %c60 = arith.constant 60 : index
    %119 = vector.load %arg12[%c0_69, %c60] : memref<12x588xf32, #tpu.memory_space<vmem>>, vector<12x364xf32>
    %120 = vector.broadcast %118 : vector<12x1xf32> to vector<12x364xf32>
    %121 = arith.mulf %119, %120 : vector<12x364xf32>
    %122 = arith.addf %117, %121 : vector<12x364xf32>
    %c0_70 = arith.constant 0 : index
    %c5_71 = arith.constant 5 : index
    %123 = vector.load %arg4[%c0_70, %c5_71] : memref<12x25xf32, #tpu.memory_space<vmem>>, vector<12x1xf32>
    %c0_72 = arith.constant 0 : index
    %c84_73 = arith.constant 84 : index
    %124 = vector.load %arg12[%c0_72, %c84_73] : memref<12x588xf32, #tpu.memory_space<vmem>>, vector<12x364xf32>
    %125 = vector.broadcast %123 : vector<12x1xf32> to vector<12x364xf32>
    %126 = arith.mulf %124, %125 : vector<12x364xf32>
    %127 = arith.addf %122, %126 : vector<12x364xf32>
    %c0_74 = arith.constant 0 : index
    %c6_75 = arith.constant 6 : index
    %128 = vector.load %arg4[%c0_74, %c6_75] : memref<12x25xf32, #tpu.memory_space<vmem>>, vector<12x1xf32>
    %c0_76 = arith.constant 0 : index
    %c85_77 = arith.constant 85 : index
    %129 = vector.load %arg12[%c0_76, %c85_77] : memref<12x588xf32, #tpu.memory_space<vmem>>, vector<12x364xf32>
    %130 = vector.broadcast %128 : vector<12x1xf32> to vector<12x364xf32>
    %131 = arith.mulf %129, %130 : vector<12x364xf32>
    %132 = arith.addf %127, %131 : vector<12x364xf32>
    %c0_78 = arith.constant 0 : index
    %c7_79 = arith.constant 7 : index
    %133 = vector.load %arg4[%c0_78, %c7_79] : memref<12x25xf32, #tpu.memory_space<vmem>>, vector<12x1xf32>
    %c0_80 = arith.constant 0 : index
    %c86 = arith.constant 86 : index
    %134 = vector.load %arg12[%c0_80, %c86] : memref<12x588xf32, #tpu.memory_space<vmem>>, vector<12x364xf32>
    %135 = vector.broadcast %133 : vector<12x1xf32> to vector<12x364xf32>
    %136 = arith.mulf %134, %135 : vector<12x364xf32>
    %137 = arith.addf %132, %136 : vector<12x364xf32>
    %c0_81 = arith.constant 0 : index
    %c8_82 = arith.constant 8 : index
    %138 = vector.load %arg4[%c0_81, %c8_82] : memref<12x25xf32, #tpu.memory_space<vmem>>, vector<12x1xf32>
    %c0_83 = arith.constant 0 : index
    %c87 = arith.constant 87 : index
    %139 = vector.load %arg12[%c0_83, %c87] : memref<12x588xf32, #tpu.memory_space<vmem>>, vector<12x364xf32>
    %140 = vector.broadcast %138 : vector<12x1xf32> to vector<12x364xf32>
    %141 = arith.mulf %139, %140 : vector<12x364xf32>
    %142 = arith.addf %137, %141 : vector<12x364xf32>
    %c0_84 = arith.constant 0 : index
    %c9_85 = arith.constant 9 : index
    %143 = vector.load %arg4[%c0_84, %c9_85] : memref<12x25xf32, #tpu.memory_space<vmem>>, vector<12x1xf32>
    %c0_86 = arith.constant 0 : index
    %c88 = arith.constant 88 : index
    %144 = vector.load %arg12[%c0_86, %c88] : memref<12x588xf32, #tpu.memory_space<vmem>>, vector<12x364xf32>
    %145 = vector.broadcast %143 : vector<12x1xf32> to vector<12x364xf32>
    %146 = arith.mulf %144, %145 : vector<12x364xf32>
    %147 = arith.addf %142, %146 : vector<12x364xf32>
    %c0_87 = arith.constant 0 : index
    %c10_88 = arith.constant 10 : index
    %148 = vector.load %arg4[%c0_87, %c10_88] : memref<12x25xf32, #tpu.memory_space<vmem>>, vector<12x1xf32>
    %c0_89 = arith.constant 0 : index
    %c112 = arith.constant 112 : index
    %149 = vector.load %arg12[%c0_89, %c112] : memref<12x588xf32, #tpu.memory_space<vmem>>, vector<12x364xf32>
    %150 = vector.broadcast %148 : vector<12x1xf32> to vector<12x364xf32>
    %151 = arith.mulf %149, %150 : vector<12x364xf32>
    %152 = arith.addf %147, %151 : vector<12x364xf32>
    %c0_90 = arith.constant 0 : index
    %c11_91 = arith.constant 11 : index
    %153 = vector.load %arg4[%c0_90, %c11_91] : memref<12x25xf32, #tpu.memory_space<vmem>>, vector<12x1xf32>
    %c0_92 = arith.constant 0 : index
    %c113 = arith.constant 113 : index
    %154 = vector.load %arg12[%c0_92, %c113] : memref<12x588xf32, #tpu.memory_space<vmem>>, vector<12x364xf32>
    %155 = vector.broadcast %153 : vector<12x1xf32> to vector<12x364xf32>
    %156 = arith.mulf %154, %155 : vector<12x364xf32>
    %157 = arith.addf %152, %156 : vector<12x364xf32>
    %c0_93 = arith.constant 0 : index
    %c12 = arith.constant 12 : index
    %158 = vector.load %arg4[%c0_93, %c12] : memref<12x25xf32, #tpu.memory_space<vmem>>, vector<12x1xf32>
    %c0_94 = arith.constant 0 : index
    %c114 = arith.constant 114 : index
    %159 = vector.load %arg12[%c0_94, %c114] : memref<12x588xf32, #tpu.memory_space<vmem>>, vector<12x364xf32>
    %160 = vector.broadcast %158 : vector<12x1xf32> to vector<12x364xf32>
    %161 = arith.mulf %159, %160 : vector<12x364xf32>
    %162 = arith.addf %157, %161 : vector<12x364xf32>
    %c0_95 = arith.constant 0 : index
    %c13 = arith.constant 13 : index
    %163 = vector.load %arg4[%c0_95, %c13] : memref<12x25xf32, #tpu.memory_space<vmem>>, vector<12x1xf32>
    %c0_96 = arith.constant 0 : index
    %c115 = arith.constant 115 : index
    %164 = vector.load %arg12[%c0_96, %c115] : memref<12x588xf32, #tpu.memory_space<vmem>>, vector<12x364xf32>
    %165 = vector.broadcast %163 : vector<12x1xf32> to vector<12x364xf32>
    %166 = arith.mulf %164, %165 : vector<12x364xf32>
    %167 = arith.addf %162, %166 : vector<12x364xf32>
    %c0_97 = arith.constant 0 : index
    %c14 = arith.constant 14 : index
    %168 = vector.load %arg4[%c0_97, %c14] : memref<12x25xf32, #tpu.memory_space<vmem>>, vector<12x1xf32>
    %c0_98 = arith.constant 0 : index
    %c116 = arith.constant 116 : index
    %169 = vector.load %arg12[%c0_98, %c116] : memref<12x588xf32, #tpu.memory_space<vmem>>, vector<12x364xf32>
    %170 = vector.broadcast %168 : vector<12x1xf32> to vector<12x364xf32>
    %171 = arith.mulf %169, %170 : vector<12x364xf32>
    %172 = arith.addf %167, %171 : vector<12x364xf32>
    %c0_99 = arith.constant 0 : index
    %c15 = arith.constant 15 : index
    %173 = vector.load %arg4[%c0_99, %c15] : memref<12x25xf32, #tpu.memory_space<vmem>>, vector<12x1xf32>
    %c0_100 = arith.constant 0 : index
    %c140 = arith.constant 140 : index
    %174 = vector.load %arg12[%c0_100, %c140] : memref<12x588xf32, #tpu.memory_space<vmem>>, vector<12x364xf32>
    %175 = vector.broadcast %173 : vector<12x1xf32> to vector<12x364xf32>
    %176 = arith.mulf %174, %175 : vector<12x364xf32>
    %177 = arith.addf %172, %176 : vector<12x364xf32>
    %c0_101 = arith.constant 0 : index
    %c16 = arith.constant 16 : index
    %178 = vector.load %arg4[%c0_101, %c16] : memref<12x25xf32, #tpu.memory_space<vmem>>, vector<12x1xf32>
    %c0_102 = arith.constant 0 : index
    %c141 = arith.constant 141 : index
    %179 = vector.load %arg12[%c0_102, %c141] : memref<12x588xf32, #tpu.memory_space<vmem>>, vector<12x364xf32>
    %180 = vector.broadcast %178 : vector<12x1xf32> to vector<12x364xf32>
    %181 = arith.mulf %179, %180 : vector<12x364xf32>
    %182 = arith.addf %177, %181 : vector<12x364xf32>
    %c0_103 = arith.constant 0 : index
    %c17 = arith.constant 17 : index
    %183 = vector.load %arg4[%c0_103, %c17] : memref<12x25xf32, #tpu.memory_space<vmem>>, vector<12x1xf32>
    %c0_104 = arith.constant 0 : index
    %c142 = arith.constant 142 : index
    %184 = vector.load %arg12[%c0_104, %c142] : memref<12x588xf32, #tpu.memory_space<vmem>>, vector<12x364xf32>
    %185 = vector.broadcast %183 : vector<12x1xf32> to vector<12x364xf32>
    %186 = arith.mulf %184, %185 : vector<12x364xf32>
    %187 = arith.addf %182, %186 : vector<12x364xf32>
    %c0_105 = arith.constant 0 : index
    %c18 = arith.constant 18 : index
    %188 = vector.load %arg4[%c0_105, %c18] : memref<12x25xf32, #tpu.memory_space<vmem>>, vector<12x1xf32>
    %c0_106 = arith.constant 0 : index
    %c143 = arith.constant 143 : index
    %189 = vector.load %arg12[%c0_106, %c143] : memref<12x588xf32, #tpu.memory_space<vmem>>, vector<12x364xf32>
    %190 = vector.broadcast %188 : vector<12x1xf32> to vector<12x364xf32>
    %191 = arith.mulf %189, %190 : vector<12x364xf32>
    %192 = arith.addf %187, %191 : vector<12x364xf32>
    %c0_107 = arith.constant 0 : index
    %c19 = arith.constant 19 : index
    %193 = vector.load %arg4[%c0_107, %c19] : memref<12x25xf32, #tpu.memory_space<vmem>>, vector<12x1xf32>
    %c0_108 = arith.constant 0 : index
    %c144 = arith.constant 144 : index
    %194 = vector.load %arg12[%c0_108, %c144] : memref<12x588xf32, #tpu.memory_space<vmem>>, vector<12x364xf32>
    %195 = vector.broadcast %193 : vector<12x1xf32> to vector<12x364xf32>
    %196 = arith.mulf %194, %195 : vector<12x364xf32>
    %197 = arith.addf %192, %196 : vector<12x364xf32>
    %c0_109 = arith.constant 0 : index
    %c20 = arith.constant 20 : index
    %198 = vector.load %arg4[%c0_109, %c20] : memref<12x25xf32, #tpu.memory_space<vmem>>, vector<12x1xf32>
    %c0_110 = arith.constant 0 : index
    %c168 = arith.constant 168 : index
    %199 = vector.load %arg12[%c0_110, %c168] : memref<12x588xf32, #tpu.memory_space<vmem>>, vector<12x364xf32>
    %200 = vector.broadcast %198 : vector<12x1xf32> to vector<12x364xf32>
    %201 = arith.mulf %199, %200 : vector<12x364xf32>
    %202 = arith.addf %197, %201 : vector<12x364xf32>
    %c0_111 = arith.constant 0 : index
    %c21 = arith.constant 21 : index
    %203 = vector.load %arg4[%c0_111, %c21] : memref<12x25xf32, #tpu.memory_space<vmem>>, vector<12x1xf32>
    %c0_112 = arith.constant 0 : index
    %c169 = arith.constant 169 : index
    %204 = vector.load %arg12[%c0_112, %c169] : memref<12x588xf32, #tpu.memory_space<vmem>>, vector<12x364xf32>
    %205 = vector.broadcast %203 : vector<12x1xf32> to vector<12x364xf32>
    %206 = arith.mulf %204, %205 : vector<12x364xf32>
    %207 = arith.addf %202, %206 : vector<12x364xf32>
    %c0_113 = arith.constant 0 : index
    %c22 = arith.constant 22 : index
    %208 = vector.load %arg4[%c0_113, %c22] : memref<12x25xf32, #tpu.memory_space<vmem>>, vector<12x1xf32>
    %c0_114 = arith.constant 0 : index
    %c170 = arith.constant 170 : index
    %209 = vector.load %arg12[%c0_114, %c170] : memref<12x588xf32, #tpu.memory_space<vmem>>, vector<12x364xf32>
    %210 = vector.broadcast %208 : vector<12x1xf32> to vector<12x364xf32>
    %211 = arith.mulf %209, %210 : vector<12x364xf32>
    %212 = arith.addf %207, %211 : vector<12x364xf32>
    %c0_115 = arith.constant 0 : index
    %c23 = arith.constant 23 : index
    %213 = vector.load %arg4[%c0_115, %c23] : memref<12x25xf32, #tpu.memory_space<vmem>>, vector<12x1xf32>
    %c0_116 = arith.constant 0 : index
    %c171 = arith.constant 171 : index
    %214 = vector.load %arg12[%c0_116, %c171] : memref<12x588xf32, #tpu.memory_space<vmem>>, vector<12x364xf32>
    %215 = vector.broadcast %213 : vector<12x1xf32> to vector<12x364xf32>
    %216 = arith.mulf %214, %215 : vector<12x364xf32>
    %217 = arith.addf %212, %216 : vector<12x364xf32>
    %c0_117 = arith.constant 0 : index
    %c24 = arith.constant 24 : index
    %218 = vector.load %arg4[%c0_117, %c24] : memref<12x25xf32, #tpu.memory_space<vmem>>, vector<12x1xf32>
    %c0_118 = arith.constant 0 : index
    %c172 = arith.constant 172 : index
    %219 = vector.load %arg12[%c0_118, %c172] : memref<12x588xf32, #tpu.memory_space<vmem>>, vector<12x364xf32>
    %220 = vector.broadcast %218 : vector<12x1xf32> to vector<12x364xf32>
    %221 = arith.mulf %219, %220 : vector<12x364xf32>
    %222 = arith.addf %217, %221 : vector<12x364xf32>
    %c0_119 = arith.constant 0 : index
    %c0_120 = arith.constant 0 : index
    %223 = vector.load %arg9[%c0_119, %c0_120] : memref<1x364xf32, #tpu.memory_space<vmem>>, vector<1x364xf32>
    %cst_121 = arith.constant 5.000000e-01 : f32
    %224 = vector.broadcast %cst_121 : f32 to vector<1x364xf32>
    %225 = arith.cmpf ogt, %223, %224 : vector<1x364xf32>
    %c0_122 = arith.constant 0 : index
    %c0_123 = arith.constant 0 : index
    %226 = vector.load %arg10[%c0_122, %c0_123] : memref<1x364xf32, #tpu.memory_space<vmem>>, vector<1x364xf32>
    %227 = vector.shape_cast %225 : vector<1x364xi1> to vector<1x364xi1>
    %228 = vector.broadcast %227 : vector<1x364xi1> to vector<12x364xi1>
    %229 = vector.shape_cast %226 : vector<1x364xf32> to vector<1x364xf32>
    %230 = vector.broadcast %229 : vector<1x364xf32> to vector<12x364xf32>
    %231 = arith.select %228, %222, %230 : vector<12x364xi1>, vector<12x364xf32>
    %cst_124 = arith.constant 0.000000e+00 : f32
    %232 = vector.broadcast %cst_124 : f32 to vector<12x56xf32>
    %c0_125 = arith.constant 0 : index
    %c0_126 = arith.constant 0 : index
    %233 = vector.load %arg13[%c0_125, %c0_126] : memref<12x588xf32, #tpu.memory_space<vmem>>, vector<12x56xf32>
    tpu.vector_store %arg13[%c0_125, %c0_126], %232 {strides = array<i32>} : memref<12x588xf32, #tpu.memory_space<vmem>>, vector<12x56xf32>,
    %cst_127 = arith.constant 0.000000e+00 : f32
    %234 = vector.broadcast %cst_127 : f32 to vector<12x56xf32>
    %c0_128 = arith.constant 0 : index
    %c420 = arith.constant 420 : index
    %235 = vector.load %arg13[%c0_128, %c420] : memref<12x588xf32, #tpu.memory_space<vmem>>, vector<12x56xf32>
    tpu.vector_store %arg13[%c0_128, %c420], %234 {strides = array<i32>} : memref<12x588xf32, #tpu.memory_space<vmem>>, vector<12x56xf32>,
    %c0_129 = arith.constant 0 : index
    %c56_130 = arith.constant 56 : index
    %236 = vector.load %arg13[%c0_129, %c56_130] : memref<12x588xf32, #tpu.memory_space<vmem>>, vector<12x364xf32>
    tpu.vector_store %arg13[%c0_129, %c56_130], %231 {strides = array<i32>} : memref<12x588xf32, #tpu.memory_space<vmem>>, vector<12x364xf32>,
    %c0_131 = arith.constant 0 : index
    %c0_132 = arith.constant 0 : index
    %237 = vector.load %arg7[%c0_131, %c0_132] : memref<4x1xf32, #tpu.memory_space<vmem>>, vector<1x1xf32>
    %238 = vector.shape_cast %237 : vector<1x1xf32> to vector<1x1xf32>
    %239 = vector.broadcast %238 : vector<1x1xf32> to vector<1x420xf32>
    %c1_133 = arith.constant 1 : index
    %c0_134 = arith.constant 0 : index
    %240 = vector.load %arg7[%c1_133, %c0_134] : memref<4x1xf32, #tpu.memory_space<vmem>>, vector<1x1xf32>
    %241 = vector.shape_cast %240 : vector<1x1xf32> to vector<1x1xf32>
    %242 = vector.broadcast %241 : vector<1x1xf32> to vector<1x420xf32>
    %c2_135 = arith.constant 2 : index
    %c0_136 = arith.constant 0 : index
    %243 = vector.load %arg7[%c2_135, %c0_136] : memref<4x1xf32, #tpu.memory_space<vmem>>, vector<1x1xf32>
    %244 = vector.shape_cast %243 : vector<1x1xf32> to vector<1x1xf32>
    %245 = vector.broadcast %244 : vector<1x1xf32> to vector<1x420xf32>
    %c3_137 = arith.constant 3 : index
    %c0_138 = arith.constant 0 : index
    %246 = vector.load %arg7[%c3_137, %c0_138] : memref<4x1xf32, #tpu.memory_space<vmem>>, vector<1x1xf32>
    %247 = vector.shape_cast %246 : vector<1x1xf32> to vector<1x1xf32>
    %248 = vector.broadcast %247 : vector<1x1xf32> to vector<1x420xf32>
    %c0_139 = arith.constant 0 : index
    %c0_140 = arith.constant 0 : index
    %249 = vector.load %arg13[%c0_139, %c0_140] : memref<12x588xf32, #tpu.memory_space<vmem>>, vector<6x420xf32>
    %c0_141 = arith.constant 0 : index
    %c0_142 = arith.constant 0 : index
    %250 = vector.load %arg6[%c0_141, %c0_142] : memref<6x36xf32, #tpu.memory_space<vmem>>, vector<6x1xf32>
    %251 = vector.broadcast %250 : vector<6x1xf32> to vector<6x420xf32>
    %252 = arith.mulf %249, %251 : vector<6x420xf32>
    %cst_143 = arith.constant dense<0.000000e+00> : vector<420xf32>
    %253 = vector.multi_reduction <add>, %252, %cst_143 [0] : vector<6x420xf32> to vector<420xf32>
    %254 = vector.shape_cast %253 : vector<420xf32> to vector<1x420xf32>
    %255 = arith.addf %239, %254 : vector<1x420xf32>
    %c0_144 = arith.constant 0 : index
    %c9_145 = arith.constant 9 : index
    %256 = vector.load %arg6[%c0_144, %c9_145] : memref<6x36xf32, #tpu.memory_space<vmem>>, vector<6x1xf32>
    %257 = vector.broadcast %256 : vector<6x1xf32> to vector<6x420xf32>
    %258 = arith.mulf %249, %257 : vector<6x420xf32>
    %cst_146 = arith.constant dense<0.000000e+00> : vector<420xf32>
    %259 = vector.multi_reduction <add>, %258, %cst_146 [0] : vector<6x420xf32> to vector<420xf32>
    %260 = vector.shape_cast %259 : vector<420xf32> to vector<1x420xf32>
    %261 = arith.addf %242, %260 : vector<1x420xf32>
    %c6_147 = arith.constant 6 : index
    %c0_148 = arith.constant 0 : index
    %262 = vector.load %arg13[%c6_147, %c0_148] : memref<12x588xf32, #tpu.memory_space<vmem>>, vector<6x420xf32>
    %c0_149 = arith.constant 0 : index
    %c18_150 = arith.constant 18 : index
    %263 = vector.load %arg6[%c0_149, %c18_150] : memref<6x36xf32, #tpu.memory_space<vmem>>, vector<6x1xf32>
    %264 = vector.broadcast %263 : vector<6x1xf32> to vector<6x420xf32>
    %265 = arith.mulf %262, %264 : vector<6x420xf32>
    %cst_151 = arith.constant dense<0.000000e+00> : vector<420xf32>
    %266 = vector.multi_reduction <add>, %265, %cst_151 [0] : vector<6x420xf32> to vector<420xf32>
    %267 = vector.shape_cast %266 : vector<420xf32> to vector<1x420xf32>
    %268 = arith.addf %245, %267 : vector<1x420xf32>
    %c0_152 = arith.constant 0 : index
    %c27 = arith.constant 27 : index
    %269 = vector.load %arg6[%c0_152, %c27] : memref<6x36xf32, #tpu.memory_space<vmem>>, vector<6x1xf32>
    %270 = vector.broadcast %269 : vector<6x1xf32> to vector<6x420xf32>
    %271 = arith.mulf %262, %270 : vector<6x420xf32>
    %cst_153 = arith.constant dense<0.000000e+00> : vector<420xf32>
    %272 = vector.multi_reduction <add>, %271, %cst_153 [0] : vector<6x420xf32> to vector<420xf32>
    %273 = vector.shape_cast %272 : vector<420xf32> to vector<1x420xf32>
    %274 = arith.addf %248, %273 : vector<1x420xf32>
    %c0_154 = arith.constant 0 : index
    %c1_155 = arith.constant 1 : index
    %275 = vector.load %arg13[%c0_154, %c1_155] : memref<12x588xf32, #tpu.memory_space<vmem>>, vector<6x420xf32>
    %c0_156 = arith.constant 0 : index
    %c1_157 = arith.constant 1 : index
    %276 = vector.load %arg6[%c0_156, %c1_157] : memref<6x36xf32, #tpu.memory_space<vmem>>, vector<6x1xf32>
    %277 = vector.broadcast %276 : vector<6x1xf32> to vector<6x420xf32>
    %278 = arith.mulf %275, %277 : vector<6x420xf32>
    %cst_158 = arith.constant dense<0.000000e+00> : vector<420xf32>
    %279 = vector.multi_reduction <add>, %278, %cst_158 [0] : vector<6x420xf32> to vector<420xf32>
    %280 = vector.shape_cast %279 : vector<420xf32> to vector<1x420xf32>
    %281 = arith.addf %255, %280 : vector<1x420xf32>
    %c0_159 = arith.constant 0 : index
    %c10_160 = arith.constant 10 : index
    %282 = vector.load %arg6[%c0_159, %c10_160] : memref<6x36xf32, #tpu.memory_space<vmem>>, vector<6x1xf32>
    %283 = vector.broadcast %282 : vector<6x1xf32> to vector<6x420xf32>
    %284 = arith.mulf %275, %283 : vector<6x420xf32>
    %cst_161 = arith.constant dense<0.000000e+00> : vector<420xf32>
    %285 = vector.multi_reduction <add>, %284, %cst_161 [0] : vector<6x420xf32> to vector<420xf32>
    %286 = vector.shape_cast %285 : vector<420xf32> to vector<1x420xf32>
    %287 = arith.addf %261, %286 : vector<1x420xf32>
    %c6_162 = arith.constant 6 : index
    %c1_163 = arith.constant 1 : index
    %288 = vector.load %arg13[%c6_162, %c1_163] : memref<12x588xf32, #tpu.memory_space<vmem>>, vector<6x420xf32>
    %c0_164 = arith.constant 0 : index
    %c19_165 = arith.constant 19 : index
    %289 = vector.load %arg6[%c0_164, %c19_165] : memref<6x36xf32, #tpu.memory_space<vmem>>, vector<6x1xf32>
    %290 = vector.broadcast %289 : vector<6x1xf32> to vector<6x420xf32>
    %291 = arith.mulf %288, %290 : vector<6x420xf32>
    %cst_166 = arith.constant dense<0.000000e+00> : vector<420xf32>
    %292 = vector.multi_reduction <add>, %291, %cst_166 [0] : vector<6x420xf32> to vector<420xf32>
    %293 = vector.shape_cast %292 : vector<420xf32> to vector<1x420xf32>
    %294 = arith.addf %268, %293 : vector<1x420xf32>
    %c0_167 = arith.constant 0 : index
    %c28 = arith.constant 28 : index
    %295 = vector.load %arg6[%c0_167, %c28] : memref<6x36xf32, #tpu.memory_space<vmem>>, vector<6x1xf32>
    %296 = vector.broadcast %295 : vector<6x1xf32> to vector<6x420xf32>
    %297 = arith.mulf %288, %296 : vector<6x420xf32>
    %cst_168 = arith.constant dense<0.000000e+00> : vector<420xf32>
    %298 = vector.multi_reduction <add>, %297, %cst_168 [0] : vector<6x420xf32> to vector<420xf32>
    %299 = vector.shape_cast %298 : vector<420xf32> to vector<1x420xf32>
    %300 = arith.addf %274, %299 : vector<1x420xf32>
    %c0_169 = arith.constant 0 : index
    %c2_170 = arith.constant 2 : index
    %301 = vector.load %arg13[%c0_169, %c2_170] : memref<12x588xf32, #tpu.memory_space<vmem>>, vector<6x420xf32>
    %c0_171 = arith.constant 0 : index
    %c2_172 = arith.constant 2 : index
    %302 = vector.load %arg6[%c0_171, %c2_172] : memref<6x36xf32, #tpu.memory_space<vmem>>, vector<6x1xf32>
    %303 = vector.broadcast %302 : vector<6x1xf32> to vector<6x420xf32>
    %304 = arith.mulf %301, %303 : vector<6x420xf32>
    %cst_173 = arith.constant dense<0.000000e+00> : vector<420xf32>
    %305 = vector.multi_reduction <add>, %304, %cst_173 [0] : vector<6x420xf32> to vector<420xf32>
    %306 = vector.shape_cast %305 : vector<420xf32> to vector<1x420xf32>
    %307 = arith.addf %281, %306 : vector<1x420xf32>
    %c0_174 = arith.constant 0 : index
    %c11_175 = arith.constant 11 : index
    %308 = vector.load %arg6[%c0_174, %c11_175] : memref<6x36xf32, #tpu.memory_space<vmem>>, vector<6x1xf32>
    %309 = vector.broadcast %308 : vector<6x1xf32> to vector<6x420xf32>
    %310 = arith.mulf %301, %309 : vector<6x420xf32>
    %cst_176 = arith.constant dense<0.000000e+00> : vector<420xf32>
    %311 = vector.multi_reduction <add>, %310, %cst_176 [0] : vector<6x420xf32> to vector<420xf32>
    %312 = vector.shape_cast %311 : vector<420xf32> to vector<1x420xf32>
    %313 = arith.addf %287, %312 : vector<1x420xf32>
    %c6_177 = arith.constant 6 : index
    %c2_178 = arith.constant 2 : index
    %314 = vector.load %arg13[%c6_177, %c2_178] : memref<12x588xf32, #tpu.memory_space<vmem>>, vector<6x420xf32>
    %c0_179 = arith.constant 0 : index
    %c20_180 = arith.constant 20 : index
    %315 = vector.load %arg6[%c0_179, %c20_180] : memref<6x36xf32, #tpu.memory_space<vmem>>, vector<6x1xf32>
    %316 = vector.broadcast %315 : vector<6x1xf32> to vector<6x420xf32>
    %317 = arith.mulf %314, %316 : vector<6x420xf32>
    %cst_181 = arith.constant dense<0.000000e+00> : vector<420xf32>
    %318 = vector.multi_reduction <add>, %317, %cst_181 [0] : vector<6x420xf32> to vector<420xf32>
    %319 = vector.shape_cast %318 : vector<420xf32> to vector<1x420xf32>
    %320 = arith.addf %294, %319 : vector<1x420xf32>
    %c0_182 = arith.constant 0 : index
    %c29 = arith.constant 29 : index
    %321 = vector.load %arg6[%c0_182, %c29] : memref<6x36xf32, #tpu.memory_space<vmem>>, vector<6x1xf32>
    %322 = vector.broadcast %321 : vector<6x1xf32> to vector<6x420xf32>
    %323 = arith.mulf %314, %322 : vector<6x420xf32>
    %cst_183 = arith.constant dense<0.000000e+00> : vector<420xf32>
    %324 = vector.multi_reduction <add>, %323, %cst_183 [0] : vector<6x420xf32> to vector<420xf32>
    %325 = vector.shape_cast %324 : vector<420xf32> to vector<1x420xf32>
    %326 = arith.addf %300, %325 : vector<1x420xf32>
    %c0_184 = arith.constant 0 : index
    %c28_185 = arith.constant 28 : index
    %327 = vector.load %arg13[%c0_184, %c28_185] : memref<12x588xf32, #tpu.memory_space<vmem>>, vector<6x420xf32>
    %c0_186 = arith.constant 0 : index
    %c3_187 = arith.constant 3 : index
    %328 = vector.load %arg6[%c0_186, %c3_187] : memref<6x36xf32, #tpu.memory_space<vmem>>, vector<6x1xf32>
    %329 = vector.broadcast %328 : vector<6x1xf32> to vector<6x420xf32>
    %330 = arith.mulf %327, %329 : vector<6x420xf32>
    %cst_188 = arith.constant dense<0.000000e+00> : vector<420xf32>
    %331 = vector.multi_reduction <add>, %330, %cst_188 [0] : vector<6x420xf32> to vector<420xf32>
    %332 = vector.shape_cast %331 : vector<420xf32> to vector<1x420xf32>
    %333 = arith.addf %307, %332 : vector<1x420xf32>
    %c0_189 = arith.constant 0 : index
    %c12_190 = arith.constant 12 : index
    %334 = vector.load %arg6[%c0_189, %c12_190] : memref<6x36xf32, #tpu.memory_space<vmem>>, vector<6x1xf32>
    %335 = vector.broadcast %334 : vector<6x1xf32> to vector<6x420xf32>
    %336 = arith.mulf %327, %335 : vector<6x420xf32>
    %cst_191 = arith.constant dense<0.000000e+00> : vector<420xf32>
    %337 = vector.multi_reduction <add>, %336, %cst_191 [0] : vector<6x420xf32> to vector<420xf32>
    %338 = vector.shape_cast %337 : vector<420xf32> to vector<1x420xf32>
    %339 = arith.addf %313, %338 : vector<1x420xf32>
    %c6_192 = arith.constant 6 : index
    %c28_193 = arith.constant 28 : index
    %340 = vector.load %arg13[%c6_192, %c28_193] : memref<12x588xf32, #tpu.memory_space<vmem>>, vector<6x420xf32>
    %c0_194 = arith.constant 0 : index
    %c21_195 = arith.constant 21 : index
    %341 = vector.load %arg6[%c0_194, %c21_195] : memref<6x36xf32, #tpu.memory_space<vmem>>, vector<6x1xf32>
    %342 = vector.broadcast %341 : vector<6x1xf32> to vector<6x420xf32>
    %343 = arith.mulf %340, %342 : vector<6x420xf32>
    %cst_196 = arith.constant dense<0.000000e+00> : vector<420xf32>
    %344 = vector.multi_reduction <add>, %343, %cst_196 [0] : vector<6x420xf32> to vector<420xf32>
    %345 = vector.shape_cast %344 : vector<420xf32> to vector<1x420xf32>
    %346 = arith.addf %320, %345 : vector<1x420xf32>
    %c0_197 = arith.constant 0 : index
    %c30 = arith.constant 30 : index
    %347 = vector.load %arg6[%c0_197, %c30] : memref<6x36xf32, #tpu.memory_space<vmem>>, vector<6x1xf32>
    %348 = vector.broadcast %347 : vector<6x1xf32> to vector<6x420xf32>
    %349 = arith.mulf %340, %348 : vector<6x420xf32>
    %cst_198 = arith.constant dense<0.000000e+00> : vector<420xf32>
    %350 = vector.multi_reduction <add>, %349, %cst_198 [0] : vector<6x420xf32> to vector<420xf32>
    %351 = vector.shape_cast %350 : vector<420xf32> to vector<1x420xf32>
    %352 = arith.addf %326, %351 : vector<1x420xf32>
    %c0_199 = arith.constant 0 : index
    %c29_200 = arith.constant 29 : index
    %353 = vector.load %arg13[%c0_199, %c29_200] : memref<12x588xf32, #tpu.memory_space<vmem>>, vector<6x420xf32>
    %c0_201 = arith.constant 0 : index
    %c4_202 = arith.constant 4 : index
    %354 = vector.load %arg6[%c0_201, %c4_202] : memref<6x36xf32, #tpu.memory_space<vmem>>, vector<6x1xf32>
    %355 = vector.broadcast %354 : vector<6x1xf32> to vector<6x420xf32>
    %356 = arith.mulf %353, %355 : vector<6x420xf32>
    %cst_203 = arith.constant dense<0.000000e+00> : vector<420xf32>
    %357 = vector.multi_reduction <add>, %356, %cst_203 [0] : vector<6x420xf32> to vector<420xf32>
    %358 = vector.shape_cast %357 : vector<420xf32> to vector<1x420xf32>
    %359 = arith.addf %333, %358 : vector<1x420xf32>
    %c0_204 = arith.constant 0 : index
    %c13_205 = arith.constant 13 : index
    %360 = vector.load %arg6[%c0_204, %c13_205] : memref<6x36xf32, #tpu.memory_space<vmem>>, vector<6x1xf32>
    %361 = vector.broadcast %360 : vector<6x1xf32> to vector<6x420xf32>
    %362 = arith.mulf %353, %361 : vector<6x420xf32>
    %cst_206 = arith.constant dense<0.000000e+00> : vector<420xf32>
    %363 = vector.multi_reduction <add>, %362, %cst_206 [0] : vector<6x420xf32> to vector<420xf32>
    %364 = vector.shape_cast %363 : vector<420xf32> to vector<1x420xf32>
    %365 = arith.addf %339, %364 : vector<1x420xf32>
    %c6_207 = arith.constant 6 : index
    %c29_208 = arith.constant 29 : index
    %366 = vector.load %arg13[%c6_207, %c29_208] : memref<12x588xf32, #tpu.memory_space<vmem>>, vector<6x420xf32>
    %c0_209 = arith.constant 0 : index
    %c22_210 = arith.constant 22 : index
    %367 = vector.load %arg6[%c0_209, %c22_210] : memref<6x36xf32, #tpu.memory_space<vmem>>, vector<6x1xf32>
    %368 = vector.broadcast %367 : vector<6x1xf32> to vector<6x420xf32>
    %369 = arith.mulf %366, %368 : vector<6x420xf32>
    %cst_211 = arith.constant dense<0.000000e+00> : vector<420xf32>
    %370 = vector.multi_reduction <add>, %369, %cst_211 [0] : vector<6x420xf32> to vector<420xf32>
    %371 = vector.shape_cast %370 : vector<420xf32> to vector<1x420xf32>
    %372 = arith.addf %346, %371 : vector<1x420xf32>
    %c0_212 = arith.constant 0 : index
    %c31 = arith.constant 31 : index
    %373 = vector.load %arg6[%c0_212, %c31] : memref<6x36xf32, #tpu.memory_space<vmem>>, vector<6x1xf32>
    %374 = vector.broadcast %373 : vector<6x1xf32> to vector<6x420xf32>
    %375 = arith.mulf %366, %374 : vector<6x420xf32>
    %cst_213 = arith.constant dense<0.000000e+00> : vector<420xf32>
    %376 = vector.multi_reduction <add>, %375, %cst_213 [0] : vector<6x420xf32> to vector<420xf32>
    %377 = vector.shape_cast %376 : vector<420xf32> to vector<1x420xf32>
    %378 = arith.addf %352, %377 : vector<1x420xf32>
    %c0_214 = arith.constant 0 : index
    %c30_215 = arith.constant 30 : index
    %379 = vector.load %arg13[%c0_214, %c30_215] : memref<12x588xf32, #tpu.memory_space<vmem>>, vector<6x420xf32>
    %c0_216 = arith.constant 0 : index
    %c5_217 = arith.constant 5 : index
    %380 = vector.load %arg6[%c0_216, %c5_217] : memref<6x36xf32, #tpu.memory_space<vmem>>, vector<6x1xf32>
    %381 = vector.broadcast %380 : vector<6x1xf32> to vector<6x420xf32>
    %382 = arith.mulf %379, %381 : vector<6x420xf32>
    %cst_218 = arith.constant dense<0.000000e+00> : vector<420xf32>
    %383 = vector.multi_reduction <add>, %382, %cst_218 [0] : vector<6x420xf32> to vector<420xf32>
    %384 = vector.shape_cast %383 : vector<420xf32> to vector<1x420xf32>
    %385 = arith.addf %359, %384 : vector<1x420xf32>
    %c0_219 = arith.constant 0 : index
    %c14_220 = arith.constant 14 : index
    %386 = vector.load %arg6[%c0_219, %c14_220] : memref<6x36xf32, #tpu.memory_space<vmem>>, vector<6x1xf32>
    %387 = vector.broadcast %386 : vector<6x1xf32> to vector<6x420xf32>
    %388 = arith.mulf %379, %387 : vector<6x420xf32>
    %cst_221 = arith.constant dense<0.000000e+00> : vector<420xf32>
    %389 = vector.multi_reduction <add>, %388, %cst_221 [0] : vector<6x420xf32> to vector<420xf32>
    %390 = vector.shape_cast %389 : vector<420xf32> to vector<1x420xf32>
    %391 = arith.addf %365, %390 : vector<1x420xf32>
    %c6_222 = arith.constant 6 : index
    %c30_223 = arith.constant 30 : index
    %392 = vector.load %arg13[%c6_222, %c30_223] : memref<12x588xf32, #tpu.memory_space<vmem>>, vector<6x420xf32>
    %c0_224 = arith.constant 0 : index
    %c23_225 = arith.constant 23 : index
    %393 = vector.load %arg6[%c0_224, %c23_225] : memref<6x36xf32, #tpu.memory_space<vmem>>, vector<6x1xf32>
    %394 = vector.broadcast %393 : vector<6x1xf32> to vector<6x420xf32>
    %395 = arith.mulf %392, %394 : vector<6x420xf32>
    %cst_226 = arith.constant dense<0.000000e+00> : vector<420xf32>
    %396 = vector.multi_reduction <add>, %395, %cst_226 [0] : vector<6x420xf32> to vector<420xf32>
    %397 = vector.shape_cast %396 : vector<420xf32> to vector<1x420xf32>
    %398 = arith.addf %372, %397 : vector<1x420xf32>
    %c0_227 = arith.constant 0 : index
    %c32 = arith.constant 32 : index
    %399 = vector.load %arg6[%c0_227, %c32] : memref<6x36xf32, #tpu.memory_space<vmem>>, vector<6x1xf32>
    %400 = vector.broadcast %399 : vector<6x1xf32> to vector<6x420xf32>
    %401 = arith.mulf %392, %400 : vector<6x420xf32>
    %cst_228 = arith.constant dense<0.000000e+00> : vector<420xf32>
    %402 = vector.multi_reduction <add>, %401, %cst_228 [0] : vector<6x420xf32> to vector<420xf32>
    %403 = vector.shape_cast %402 : vector<420xf32> to vector<1x420xf32>
    %404 = arith.addf %378, %403 : vector<1x420xf32>
    %c0_229 = arith.constant 0 : index
    %c56_230 = arith.constant 56 : index
    %405 = vector.load %arg13[%c0_229, %c56_230] : memref<12x588xf32, #tpu.memory_space<vmem>>, vector<6x420xf32>
    %c0_231 = arith.constant 0 : index
    %c6_232 = arith.constant 6 : index
    %406 = vector.load %arg6[%c0_231, %c6_232] : memref<6x36xf32, #tpu.memory_space<vmem>>, vector<6x1xf32>
    %407 = vector.broadcast %406 : vector<6x1xf32> to vector<6x420xf32>
    %408 = arith.mulf %405, %407 : vector<6x420xf32>
    %cst_233 = arith.constant dense<0.000000e+00> : vector<420xf32>
    %409 = vector.multi_reduction <add>, %408, %cst_233 [0] : vector<6x420xf32> to vector<420xf32>
    %410 = vector.shape_cast %409 : vector<420xf32> to vector<1x420xf32>
    %411 = arith.addf %385, %410 : vector<1x420xf32>
    %c0_234 = arith.constant 0 : index
    %c15_235 = arith.constant 15 : index
    %412 = vector.load %arg6[%c0_234, %c15_235] : memref<6x36xf32, #tpu.memory_space<vmem>>, vector<6x1xf32>
    %413 = vector.broadcast %412 : vector<6x1xf32> to vector<6x420xf32>
    %414 = arith.mulf %405, %413 : vector<6x420xf32>
    %cst_236 = arith.constant dense<0.000000e+00> : vector<420xf32>
    %415 = vector.multi_reduction <add>, %414, %cst_236 [0] : vector<6x420xf32> to vector<420xf32>
    %416 = vector.shape_cast %415 : vector<420xf32> to vector<1x420xf32>
    %417 = arith.addf %391, %416 : vector<1x420xf32>
    %c6_237 = arith.constant 6 : index
    %c56_238 = arith.constant 56 : index
    %418 = vector.load %arg13[%c6_237, %c56_238] : memref<12x588xf32, #tpu.memory_space<vmem>>, vector<6x420xf32>
    %c0_239 = arith.constant 0 : index
    %c24_240 = arith.constant 24 : index
    %419 = vector.load %arg6[%c0_239, %c24_240] : memref<6x36xf32, #tpu.memory_space<vmem>>, vector<6x1xf32>
    %420 = vector.broadcast %419 : vector<6x1xf32> to vector<6x420xf32>
    %421 = arith.mulf %418, %420 : vector<6x420xf32>
    %cst_241 = arith.constant dense<0.000000e+00> : vector<420xf32>
    %422 = vector.multi_reduction <add>, %421, %cst_241 [0] : vector<6x420xf32> to vector<420xf32>
    %423 = vector.shape_cast %422 : vector<420xf32> to vector<1x420xf32>
    %424 = arith.addf %398, %423 : vector<1x420xf32>
    %c0_242 = arith.constant 0 : index
    %c33 = arith.constant 33 : index
    %425 = vector.load %arg6[%c0_242, %c33] : memref<6x36xf32, #tpu.memory_space<vmem>>, vector<6x1xf32>
    %426 = vector.broadcast %425 : vector<6x1xf32> to vector<6x420xf32>
    %427 = arith.mulf %418, %426 : vector<6x420xf32>
    %cst_243 = arith.constant dense<0.000000e+00> : vector<420xf32>
    %428 = vector.multi_reduction <add>, %427, %cst_243 [0] : vector<6x420xf32> to vector<420xf32>
    %429 = vector.shape_cast %428 : vector<420xf32> to vector<1x420xf32>
    %430 = arith.addf %404, %429 : vector<1x420xf32>
    %c0_244 = arith.constant 0 : index
    %c57_245 = arith.constant 57 : index
    %431 = vector.load %arg13[%c0_244, %c57_245] : memref<12x588xf32, #tpu.memory_space<vmem>>, vector<6x420xf32>
    %c0_246 = arith.constant 0 : index
    %c7_247 = arith.constant 7 : index
    %432 = vector.load %arg6[%c0_246, %c7_247] : memref<6x36xf32, #tpu.memory_space<vmem>>, vector<6x1xf32>
    %433 = vector.broadcast %432 : vector<6x1xf32> to vector<6x420xf32>
    %434 = arith.mulf %431, %433 : vector<6x420xf32>
    %cst_248 = arith.constant dense<0.000000e+00> : vector<420xf32>
    %435 = vector.multi_reduction <add>, %434, %cst_248 [0] : vector<6x420xf32> to vector<420xf32>
    %436 = vector.shape_cast %435 : vector<420xf32> to vector<1x420xf32>
    %437 = arith.addf %411, %436 : vector<1x420xf32>
    %c0_249 = arith.constant 0 : index
    %c16_250 = arith.constant 16 : index
    %438 = vector.load %arg6[%c0_249, %c16_250] : memref<6x36xf32, #tpu.memory_space<vmem>>, vector<6x1xf32>
    %439 = vector.broadcast %438 : vector<6x1xf32> to vector<6x420xf32>
    %440 = arith.mulf %431, %439 : vector<6x420xf32>
    %cst_251 = arith.constant dense<0.000000e+00> : vector<420xf32>
    %441 = vector.multi_reduction <add>, %440, %cst_251 [0] : vector<6x420xf32> to vector<420xf32>
    %442 = vector.shape_cast %441 : vector<420xf32> to vector<1x420xf32>
    %443 = arith.addf %417, %442 : vector<1x420xf32>
    %c6_252 = arith.constant 6 : index
    %c57_253 = arith.constant 57 : index
    %444 = vector.load %arg13[%c6_252, %c57_253] : memref<12x588xf32, #tpu.memory_space<vmem>>, vector<6x420xf32>
    %c0_254 = arith.constant 0 : index
    %c25 = arith.constant 25 : index
    %445 = vector.load %arg6[%c0_254, %c25] : memref<6x36xf32, #tpu.memory_space<vmem>>, vector<6x1xf32>
    %446 = vector.broadcast %445 : vector<6x1xf32> to vector<6x420xf32>
    %447 = arith.mulf %444, %446 : vector<6x420xf32>
    %cst_255 = arith.constant dense<0.000000e+00> : vector<420xf32>
    %448 = vector.multi_reduction <add>, %447, %cst_255 [0] : vector<6x420xf32> to vector<420xf32>
    %449 = vector.shape_cast %448 : vector<420xf32> to vector<1x420xf32>
    %450 = arith.addf %424, %449 : vector<1x420xf32>
    %c0_256 = arith.constant 0 : index
    %c34 = arith.constant 34 : index
    %451 = vector.load %arg6[%c0_256, %c34] : memref<6x36xf32, #tpu.memory_space<vmem>>, vector<6x1xf32>
    %452 = vector.broadcast %451 : vector<6x1xf32> to vector<6x420xf32>
    %453 = arith.mulf %444, %452 : vector<6x420xf32>
    %cst_257 = arith.constant dense<0.000000e+00> : vector<420xf32>
    %454 = vector.multi_reduction <add>, %453, %cst_257 [0] : vector<6x420xf32> to vector<420xf32>
    %455 = vector.shape_cast %454 : vector<420xf32> to vector<1x420xf32>
    %456 = arith.addf %430, %455 : vector<1x420xf32>
    %c0_258 = arith.constant 0 : index
    %c58_259 = arith.constant 58 : index
    %457 = vector.load %arg13[%c0_258, %c58_259] : memref<12x588xf32, #tpu.memory_space<vmem>>, vector<6x420xf32>
    %c0_260 = arith.constant 0 : index
    %c8_261 = arith.constant 8 : index
    %458 = vector.load %arg6[%c0_260, %c8_261] : memref<6x36xf32, #tpu.memory_space<vmem>>, vector<6x1xf32>
    %459 = vector.broadcast %458 : vector<6x1xf32> to vector<6x420xf32>
    %460 = arith.mulf %457, %459 : vector<6x420xf32>
    %cst_262 = arith.constant dense<0.000000e+00> : vector<420xf32>
    %461 = vector.multi_reduction <add>, %460, %cst_262 [0] : vector<6x420xf32> to vector<420xf32>
    %462 = vector.shape_cast %461 : vector<420xf32> to vector<1x420xf32>
    %463 = arith.addf %437, %462 : vector<1x420xf32>
    %c0_263 = arith.constant 0 : index
    %c17_264 = arith.constant 17 : index
    %464 = vector.load %arg6[%c0_263, %c17_264] : memref<6x36xf32, #tpu.memory_space<vmem>>, vector<6x1xf32>
    %465 = vector.broadcast %464 : vector<6x1xf32> to vector<6x420xf32>
    %466 = arith.mulf %457, %465 : vector<6x420xf32>
    %cst_265 = arith.constant dense<0.000000e+00> : vector<420xf32>
    %467 = vector.multi_reduction <add>, %466, %cst_265 [0] : vector<6x420xf32> to vector<420xf32>
    %468 = vector.shape_cast %467 : vector<420xf32> to vector<1x420xf32>
    %469 = arith.addf %443, %468 : vector<1x420xf32>
    %c6_266 = arith.constant 6 : index
    %c58_267 = arith.constant 58 : index
    %470 = vector.load %arg13[%c6_266, %c58_267] : memref<12x588xf32, #tpu.memory_space<vmem>>, vector<6x420xf32>
    %c0_268 = arith.constant 0 : index
    %c26 = arith.constant 26 : index
    %471 = vector.load %arg6[%c0_268, %c26] : memref<6x36xf32, #tpu.memory_space<vmem>>, vector<6x1xf32>
    %472 = vector.broadcast %471 : vector<6x1xf32> to vector<6x420xf32>
    %473 = arith.mulf %470, %472 : vector<6x420xf32>
    %cst_269 = arith.constant dense<0.000000e+00> : vector<420xf32>
    %474 = vector.multi_reduction <add>, %473, %cst_269 [0] : vector<6x420xf32> to vector<420xf32>
    %475 = vector.shape_cast %474 : vector<420xf32> to vector<1x420xf32>
    %476 = arith.addf %450, %475 : vector<1x420xf32>
    %c0_270 = arith.constant 0 : index
    %c35 = arith.constant 35 : index
    %477 = vector.load %arg6[%c0_270, %c35] : memref<6x36xf32, #tpu.memory_space<vmem>>, vector<6x1xf32>
    %478 = vector.broadcast %477 : vector<6x1xf32> to vector<6x420xf32>
    %479 = arith.mulf %470, %478 : vector<6x420xf32>
    %cst_271 = arith.constant dense<0.000000e+00> : vector<420xf32>
    %480 = vector.multi_reduction <add>, %479, %cst_271 [0] : vector<6x420xf32> to vector<420xf32>
    %481 = vector.shape_cast %480 : vector<420xf32> to vector<1x420xf32>
    %482 = arith.addf %456, %481 : vector<1x420xf32>
    %483 = tpu.concatenate %463, %469, %476, %482 in 0 : vector<1x420xf32>, vector<1x420xf32>, vector<1x420xf32>, vector<1x420xf32> -> vector<4x420xf32>
    %c0_272 = arith.constant 0 : index
    %c0_273 = arith.constant 0 : index
    %c0_274 = arith.constant 0 : index
    %484 = vector.load %arg11[%c0_272, %c0_273, %c0_274] : memref<1x4x420xf32, #tpu.memory_space<vmem>>, vector<1x4x420xf32>
    %485 = vector.shape_cast %484 : vector<1x4x420xf32> to vector<4x420xf32>
    %486 = vector.shape_cast %483 : vector<4x420xf32> to vector<1x4x420xf32>
    tpu.vector_store %arg11[%c0_272, %c0_273, %c0_274], %486 {strides = array<i32>} : memref<1x4x420xf32, #tpu.memory_space<vmem>>, vector<1x4x420xf32>,
    return
  }
  func.func @transform_0(%arg0: i32) -> (i32, i32, i32) {
    %c0_i32 = arith.constant 0 : i32
    %c0_i32_0 = arith.constant 0 : i32
    %c0_i32_1 = arith.constant 0 : i32
    return %arg0, %c0_i32, %c0_i32_0 : i32, i32, i32
  }
  func.func @transform_1(%arg0: i32) -> (i32, i32) {
    %c0_i32 = arith.constant 0 : i32
    %c0_i32_0 = arith.constant 0 : i32
    %c0_i32_1 = arith.constant 0 : i32
    return %c0_i32, %c0_i32_0 : i32, i32
  }
  func.func @transform_2(%arg0: i32) -> (i32, i32) {
    %c0_i32 = arith.constant 0 : i32
    %c0_i32_0 = arith.constant 0 : i32
    %c0_i32_1 = arith.constant 0 : i32
    return %c0_i32, %c0_i32_0 : i32, i32
  }
  func.func @transform_3(%arg0: i32) -> (i32, i32) {
    %c0_i32 = arith.constant 0 : i32
    %c0_i32_0 = arith.constant 0 : i32
    %c0_i32_1 = arith.constant 0 : i32
    return %c0_i32, %c0_i32_0 : i32, i32
  }
  func.func @transform_4(%arg0: i32) -> (i32, i32) {
    %c0_i32 = arith.constant 0 : i32
    %c0_i32_0 = arith.constant 0 : i32
    %c0_i32_1 = arith.constant 0 : i32
    return %c0_i32, %c0_i32_0 : i32, i32
  }
  func.func @transform_5(%arg0: i32) -> (i32, i32) {
    %c0_i32 = arith.constant 0 : i32
    %c0_i32_0 = arith.constant 0 : i32
    %c0_i32_1 = arith.constant 0 : i32
    return %c0_i32, %c0_i32_0 : i32, i32
  }
  func.func @transform_6(%arg0: i32) -> (i32, i32) {
    %c0_i32 = arith.constant 0 : i32
    %c0_i32_0 = arith.constant 0 : i32
    %c0_i32_1 = arith.constant 0 : i32
    return %c0_i32, %c0_i32_0 : i32, i32
  }
  func.func @transform_7(%arg0: i32) -> (i32, i32) {
    %c0_i32 = arith.constant 0 : i32
    %c0_i32_0 = arith.constant 0 : i32
    %c0_i32_1 = arith.constant 0 : i32
    return %c0_i32, %c0_i32_0 : i32, i32
  }
  func.func @transform_8(%arg0: i32) -> (i32, i32) {
    %c0_i32 = arith.constant 0 : i32
    %c0_i32_0 = arith.constant 0 : i32
    %c0_i32_1 = arith.constant 0 : i32
    return %c0_i32, %c0_i32_0 : i32, i32
  }
  func.func @transform_9(%arg0: i32) -> (i32, i32) {
    %c0_i32 = arith.constant 0 : i32
    %c0_i32_0 = arith.constant 0 : i32
    %c0_i32_1 = arith.constant 0 : i32
    return %c0_i32, %c0_i32_0 : i32, i32
  }
  func.func @transform_10(%arg0: i32) -> (i32, i32, i32) {
    %c0_i32 = arith.constant 0 : i32
    %c0_i32_0 = arith.constant 0 : i32
    %c0_i32_1 = arith.constant 0 : i32
    return %arg0, %c0_i32, %c0_i32_0 : i32, i32, i32
  }
}

</mosaic_0001>

<llo_original>
// kernel: model_forward.1
$region0: #{model_forward.1}
  #allocation0 [shape = 'u32[]', space=smem, size = 0x4, offset = 0x4, fixed_abs, tag = 'smem constant byte address 0x4 - core index']
  #allocation1 [shape = 'u32[144,128]{1,0:T(1,128)}', space=vmem, size = 0x12000, scoped, tag = 'internal scratch']
  #allocation2 [shape = 'f32[12,588]{1,0:T(8,128)}', space=vmem, size = 0xa000, scoped, tag = 'scratch operand']
  #allocation3 [shape = 'f32[12,588]{1,0:T(8,128)}', space=vmem, size = 0xa000, scoped, tag = 'scratch operand']
  %s0 = inlined_call_operand.vmem [shape: f32[2,3,588], index: 0, kind: input, shape index: {}]
  %s1 = inlined_call_operand.vmem [shape: f32[12,12], index: 1, kind: input, shape index: {}]
  %s2 = inlined_call_operand.vmem [shape: f32[12,1], index: 2, kind: input, shape index: {}]
  %s3 = inlined_call_operand.vmem [shape: f32[12,25], index: 3, kind: input, shape index: {}]
  %s4 = inlined_call_operand.vmem [shape: f32[12,1], index: 4, kind: input, shape index: {}]
  %s5 = inlined_call_operand.vmem [shape: f32[6,36], index: 5, kind: input, shape index: {}]
  %s6 = inlined_call_operand.vmem [shape: f32[4,1], index: 6, kind: input, shape index: {}]
  %s7 = inlined_call_operand.vmem [shape: f32[1,476], index: 7, kind: input, shape index: {}]
  %s8 = inlined_call_operand.vmem [shape: f32[1,364], index: 8, kind: input, shape index: {}]
  %s9 = inlined_call_operand.vmem [shape: f32[1,364], index: 9, kind: input, shape index: {}]
  %s10 = inlined_call_operand.vmem [shape: f32[2,4,420], index: 10, kind: output, shape index: {}]
  %s11 = sld [smem:[#allocation0]]
  $region73: #{model_forward.1} parent=0
    _
  %s13 = ssub.s32 1, %s11
  %s14 = scalar_select 0, %s13, %s11
  loop: start=0, step=1, limit=4
  $region2: #{model_forward.1} parent=0 // loop_pre_header
    _
  $region3: #{model_forward.1} parent=0 // loop_header
    %s16 = sphi 0, %s20
    %p17 = scmp.ge.s32.totalorder %s16, 4
    %s26 = sphi 0, %s28
    %s29 = sphi 0, %s26
    %s30 = sphi 0, %s29
    %s46 = sphi 0, %s30
    %s50 = sphi 0, %s50
    %s52 = sphi 0, %s50
    %s53 = sphi 0, %s52
    %s67 = sphi 0, %s53
    %s71 = sphi 0, %s71
    %s73 = sphi 0, %s71
    %s74 = sphi 0, %s73
    %s88 = sphi 0, %s74
    %s92 = sphi 0, %s92
    %s94 = sphi 0, %s92
    %s95 = sphi 0, %s94
    %s109 = sphi 0, %s95
    %s113 = sphi 0, %s113
    %s115 = sphi 0, %s113
    %s116 = sphi 0, %s115
    %s130 = sphi 0, %s116
    %s134 = sphi 0, %s134
    %s136 = sphi 0, %s134
    %s137 = sphi 0, %s136
    %s151 = sphi 0, %s137
    %s155 = sphi 0, %s155
    %s157 = sphi 0, %s155
    %s158 = sphi 0, %s157
    %s172 = sphi 0, %s158
    %s176 = sphi 0, %s176
    %s178 = sphi 0, %s176
    %s179 = sphi 0, %s178
    %s193 = sphi 0, %s179
    %s197 = sphi 0, %s197
    %s199 = sphi 0, %s197
    %s200 = sphi 0, %s199
    %s214 = sphi 0, %s200
    %s218 = sphi 0, %s218
    %s220 = sphi 0, %s218
    %s221 = sphi 0, %s220
    %s235 = sphi 0, %s221
    %s241 = sphi 0, %s243
    %s244 = sphi 0, %s241
    %s245 = sphi 0, %s244
    %s261 = sphi 0, %s245
  $region4: #{model_forward.1} parent=0 // loop_header_branch
    %19 = sbr.rel (%p17) target = $region8
  $region5: #{model_forward.1} parent=0 // loop_body
    %s21 = ssub.s32 %s16, 1
    %s22 = ssub.s32 %s16, 2
    %s23 = sadd.s32 %s16, 1
    %s24 = ssub.s32 %s16, %s23
    %p25 = scmp.eq.s32.totalorder %s24, 0
    %s27 = sadd.s32 %s26, 1
    %s28 = scalar_select %p25, %s26, %s27
    %p31 = pneg %p25
    %p32 = scmp.eq.s32.totalorder %s16, 1
    %p33 = por %p31, %p32
    %p34 = scmp.ne.s32.totalorder %s26, %s29
    %p35 = scmp.eq.s32.totalorder %s16, 0
    %p36 = por %p34, %p35
    %p37 = scmp.ne.s32.totalorder %s26, %s29
    %p38 = scmp.eq.s32.totalorder %s21, 1
    %p39 = por %p37, %p38
    %p40 = scmp.ne.s32.totalorder %s29, %s30
    %p41 = scmp.eq.s32.totalorder %s21, 0
    %p42 = por %p40, %p41
    %p43 = scmp.ne.s32.totalorder %s29, %s30
    %p44 = scmp.eq.s32.totalorder %s22, 1
    %p45 = por %p43, %p44
    %p47 = scmp.ne.s32.totalorder %s30, %s46
    %p48 = scmp.eq.s32.totalorder %s22, 0
    %p49 = por %p47, %p48
    %s51 = sadd.s32 %s50, 1
    %p54 = scmp.eq.s32.totalorder %s16, 1
    %p55 = scmp.ne.s32.totalorder %s50, %s52
    %p56 = scmp.eq.s32.totalorder %s16, 0
    %p57 = por %p55, %p56
    %p58 = scmp.ne.s32.totalorder %s50, %s52
    %p59 = scmp.eq.s32.totalorder %s21, 1
    %p60 = por %p58, %p59
    %p61 = scmp.ne.s32.totalorder %s52, %s53
    %p62 = scmp.eq.s32.totalorder %s21, 0
    %p63 = por %p61, %p62
    %p64 = scmp.ne.s32.totalorder %s52, %s53
    %p65 = scmp.eq.s32.totalorder %s22, 1
    %p66 = por %p64, %p65
    %p68 = scmp.ne.s32.totalorder %s53, %s67
    %p69 = scmp.eq.s32.totalorder %s22, 0
    %p70 = por %p68, %p69
    %s72 = sadd.s32 %s71, 1
    %p75 = scmp.eq.s32.totalorder %s16, 1
    %p76 = scmp.ne.s32.totalorder %s71, %s73
    %p77 = scmp.eq.s32.totalorder %s16, 0
    %p78 = por %p76, %p77
    %p79 = scmp.ne.s32.totalorder %s71, %s73
    %p80 = scmp.eq.s32.totalorder %s21, 1
    %p81 = por %p79, %p80
    %p82 = scmp.ne.s32.totalorder %s73, %s74
    %p83 = scmp.eq.s32.totalorder %s21, 0
    %p84 = por %p82, %p83
    %p85 = scmp.ne.s32.totalorder %s73, %s74
    %p86 = scmp.eq.s32.totalorder %s22, 1
    %p87 = por %p85, %p86
    %p89 = scmp.ne.s32.totalorder %s74, %s88
    %p90 = scmp.eq.s32.totalorder %s22, 0
    %p91 = por %p89, %p90
    %s93 = sadd.s32 %s92, 1
    %p96 = scmp.eq.s32.totalorder %s16, 1
    %p97 = scmp.ne.s32.totalorder %s92, %s94
    %p98 = scmp.eq.s32.totalorder %s16, 0
    %p99 = por %p97, %p98
    %p100 = scmp.ne.s32.totalorder %s92, %s94
    %p101 = scmp.eq.s32.totalorder %s21, 1
    %p102 = por %p100, %p101
    %p103 = scmp.ne.s32.totalorder %s94, %s95
    %p104 = scmp.eq.s32.totalorder %s21, 0
    %p105 = por %p103, %p104
    %p106 = scmp.ne.s32.totalorder %s94, %s95
    %p107 = scmp.eq.s32.totalorder %s22, 1
    %p108 = por %p106, %p107
    %p110 = scmp.ne.s32.totalorder %s95, %s109
    %p111 = scmp.eq.s32.totalorder %s22, 0
    %p112 = por %p110, %p111
    %s114 = sadd.s32 %s113, 1
    %p117 = scmp.eq.s32.totalorder %s16, 1
    %p118 = scmp.ne.s32.totalorder %s113, %s115
    %p119 = scmp.eq.s32.totalorder %s16, 0
    %p120 = por %p118, %p119
    %p121 = scmp.ne.s32.totalorder %s113, %s115
    %p122 = scmp.eq.s32.totalorder %s21, 1
    %p123 = por %p121, %p122
    %p124 = scmp.ne.s32.totalorder %s115, %s116
    %p125 = scmp.eq.s32.totalorder %s21, 0
    %p126 = por %p124, %p125
    %p127 = scmp.ne.s32.totalorder %s115, %s116
    %p128 = scmp.eq.s32.totalorder %s22, 1
    %p129 = por %p127, %p128
    %p131 = scmp.ne.s32.totalorder %s116, %s130
    %p132 = scmp.eq.s32.totalorder %s22, 0
    %p133 = por %p131, %p132
    %s135 = sadd.s32 %s134, 1
    %p138 = scmp.eq.s32.totalorder %s16, 1
    %p139 = scmp.ne.s32.totalorder %s134, %s136
    %p140 = scmp.eq.s32.totalorder %s16, 0
    %p141 = por %p139, %p140
    %p142 = scmp.ne.s32.totalorder %s134, %s136
    %p143 = scmp.eq.s32.totalorder %s21, 1
    %p144 = por %p142, %p143
    %p145 = scmp.ne.s32.totalorder %s136, %s137
    %p146 = scmp.eq.s32.totalorder %s21, 0
    %p147 = por %p145, %p146
    %p148 = scmp.ne.s32.totalorder %s136, %s137
    %p149 = scmp.eq.s32.totalorder %s22, 1
    %p150 = por %p148, %p149
    %p152 = scmp.ne.s32.totalorder %s137, %s151
    %p153 = scmp.eq.s32.totalorder %s22, 0
    %p154 = por %p152, %p153
    %s156 = sadd.s32 %s155, 1
    %p159 = scmp.eq.s32.totalorder %s16, 1
    %p160 = scmp.ne.s32.totalorder %s155, %s157
    %p161 = scmp.eq.s32.totalorder %s16, 0
    %p162 = por %p160, %p161
    %p163 = scmp.ne.s32.totalorder %s155, %s157
    %p164 = scmp.eq.s32.totalorder %s21, 1
    %p165 = por %p163, %p164
    %p166 = scmp.ne.s32.totalorder %s157, %s158
    %p167 = scmp.eq.s32.totalorder %s21, 0
    %p168 = por %p166, %p167
    %p169 = scmp.ne.s32.totalorder %s157, %s158
    %p170 = scmp.eq.s32.totalorder %s22, 1
    %p171 = por %p169, %p170
    %p173 = scmp.ne.s32.totalorder %s158, %s172
    %p174 = scmp.eq.s32.totalorder %s22, 0
    %p175 = por %p173, %p174
    %s177 = sadd.s32 %s176, 1
    %p180 = scmp.eq.s32.totalorder %s16, 1
    %p181 = scmp.ne.s32.totalorder %s176, %s178
    %p182 = scmp.eq.s32.totalorder %s16, 0
    %p183 = por %p181, %p182
    %p184 = scmp.ne.s32.totalorder %s176, %s178
    %p185 = scmp.eq.s32.totalorder %s21, 1
    %p186 = por %p184, %p185
    %p187 = scmp.ne.s32.totalorder %s178, %s179
    %p188 = scmp.eq.s32.totalorder %s21, 0
    %p189 = por %p187, %p188
    %p190 = scmp.ne.s32.totalorder %s178, %s179
    %p191 = scmp.eq.s32.totalorder %s22, 1
    %p192 = por %p190, %p191
    %p194 = scmp.ne.s32.totalorder %s179, %s193
    %p195 = scmp.eq.s32.totalorder %s22, 0
    %p196 = por %p194, %p195
    %s198 = sadd.s32 %s197, 1
    %p201 = scmp.eq.s32.totalorder %s16, 1
    %p202 = scmp.ne.s32.totalorder %s197, %s199
    %p203 = scmp.eq.s32.totalorder %s16, 0
    %p204 = por %p202, %p203
    %p205 = scmp.ne.s32.totalorder %s197, %s199
    %p206 = scmp.eq.s32.totalorder %s21, 1
    %p207 = por %p205, %p206
    %p208 = scmp.ne.s32.totalorder %s199, %s200
    %p209 = scmp.eq.s32.totalorder %s21, 0
    %p210 = por %p208, %p209
    %p211 = scmp.ne.s32.totalorder %s199, %s200
    %p212 = scmp.eq.s32.totalorder %s22, 1
    %p213 = por %p211, %p212
    %p215 = scmp.ne.s32.totalorder %s200, %s214
    %p216 = scmp.eq.s32.totalorder %s22, 0
    %p217 = por %p215, %p216
    %s219 = sadd.s32 %s218, 1
    %p222 = scmp.eq.s32.totalorder %s16, 1
    %p223 = scmp.ne.s32.totalorder %s218, %s220
    %p224 = scmp.eq.s32.totalorder %s16, 0
    %p225 = por %p223, %p224
    %p226 = scmp.ne.s32.totalorder %s218, %s220
    %p227 = scmp.eq.s32.totalorder %s21, 1
    %p228 = por %p226, %p227
    %p229 = scmp.ne.s32.totalorder %s220, %s221
    %p230 = scmp.eq.s32.totalorder %s21, 0
    %p231 = por %p229, %p230
    %p232 = scmp.ne.s32.totalorder %s220, %s221
    %p233 = scmp.eq.s32.totalorder %s22, 1
    %p234 = por %p232, %p233
    %p236 = scmp.ne.s32.totalorder %s221, %s235
    %p237 = scmp.eq.s32.totalorder %s22, 0
    %p238 = por %p236, %p237
    %s239 = ssub.s32 %s16, %s23
    %p240 = scmp.eq.s32.totalorder %s239, 0
    %s242 = sadd.s32 %s241, 1
    %s243 = scalar_select %p240, %s241, %s242
    %p246 = pneg %p240
    %p247 = scmp.eq.s32.totalorder %s16, 1
    %p248 = por %p246, %p247
    %p249 = scmp.ne.s32.totalorder %s241, %s244
    %p250 = scmp.eq.s32.totalorder %s16, 0
    %p251 = por %p249, %p250
    %p252 = scmp.ne.s32.totalorder %s241, %s244
    %p253 = scmp.eq.s32.totalorder %s21, 1
    %p254 = por %p252, %p253
    %p255 = scmp.ne.s32.totalorder %s244, %s245
    %p256 = scmp.eq.s32.totalorder %s21, 0
    %p257 = por %p255, %p256
    %p258 = scmp.ne.s32.totalorder %s244, %s245
    %p259 = scmp.eq.s32.totalorder %s22, 1
    %p260 = por %p258, %p259
    %p262 = scmp.ne.s32.totalorder %s245, %s261
    %p263 = scmp.eq.s32.totalorder %s22, 0
    %p264 = por %p262, %p263
    %p265 = scmp.le.s32.totalorder 1, %s16
    %p266 = scmp.lt.s32.totalorder %s16, 3
    %p267 = pnand %p265, %p266
    %p268 = pneg %p267
    // Predicated region
    $region9: #{model_forward.1} parent=5 // pred_check
      _
    $region10: #{model_forward.1} parent=5 // pred_check_branch
      %270 = sbr.rel (%p267) target = $region12
    $region11: #{model_forward.1} parent=5 // pred_region
      %s271 = ssub.s32 %s16, 1
      // Predicated region
      $region13: #{model_forward.1} parent=11 // pred_check
        %p272 = pneg %p63
      $region14: #{model_forward.1} parent=11 // pred_check_branch
        %274 = sbr.rel (%p272) target = $region16
      $region15: #{model_forward.1} parent=11 // pred_region
        _
      $region16: #{model_forward.1} parent=11 // pred_fallthru
        _
      // Predicated region
      $region17: #{model_forward.1} parent=11 // pred_check
        %p275 = pneg %p84
      $region18: #{model_forward.1} parent=11 // pred_check_branch
        %277 = sbr.rel (%p275) target = $region20
      $region19: #{model_forward.1} parent=11 // pred_region
        _
      $region20: #{model_forward.1} parent=11 // pred_fallthru
        _
      // Predicated region
      $region21: #{model_forward.1} parent=11 // pred_check
        %p278 = pneg %p105
      $region22: #{model_forward.1} parent=11 // pred_check_branch
        %280 = sbr.rel (%p278) target = $region24
      $region23: #{model_forward.1} parent=11 // pred_region
        _
      $region24: #{model_forward.1} parent=11 // pred_fallthru
        _
      // Predicated region
      $region25: #{model_forward.1} parent=11 // pred_check
        %p281 = pneg %p126
      $region26: #{model_forward.1} parent=11 // pred_check_branch
        %283 = sbr.rel (%p281) target = $region28
      $region27: #{model_forward.1} parent=11 // pred_region
        _
      $region28: #{model_forward.1} parent=11 // pred_fallthru
        _
      // Predicated region
      $region29: #{model_forward.1} parent=11 // pred_check
        %p284 = pneg %p147
      $region30: #{model_forward.1} parent=11 // pred_check_branch
        %286 = sbr.rel (%p284) target = $region32
      $region31: #{model_forward.1} parent=11 // pred_region
        _
      $region32: #{model_forward.1} parent=11 // pred_fallthru
        _
      // Predicated region
      $region33: #{model_forward.1} parent=11 // pred_check
        %p287 = pneg %p168
      $region34: #{model_forward.1} parent=11 // pred_check_branch
        %289 = sbr.rel (%p287) target = $region36
      $region35: #{model_forward.1} parent=11 // pred_region
        _
      $region36: #{model_forward.1} parent=11 // pred_fallthru
        _
      // Predicated region
      $region37: #{model_forward.1} parent=11 // pred_check
        %p290 = pneg %p189
      $region38: #{model_forward.1} parent=11 // pred_check_branch
        %292 = sbr.rel (%p290) target = $region40
      $region39: #{model_forward.1} parent=11 // pred_region
        _
      $region40: #{model_forward.1} parent=11 // pred_fallthru
        _
      // Predicated region
      $region41: #{model_forward.1} parent=11 // pred_check
        %p293 = pneg %p210
      $region42: #{model_forward.1} parent=11 // pred_check_branch
        %295 = sbr.rel (%p293) target = $region44
      $region43: #{model_forward.1} parent=11 // pred_region
        _
      $region44: #{model_forward.1} parent=11 // pred_fallthru
        _
      // Predicated region
      $region45: #{model_forward.1} parent=11 // pred_check
        %p296 = pneg %p231
      $region46: #{model_forward.1} parent=11 // pred_check_branch
        %298 = sbr.rel (%p296) target = $region48
      $region47: #{model_forward.1} parent=11 // pred_region
        _
      $region48: #{model_forward.1} parent=11 // pred_fallthru
        _
    $region12: #{model_forward.1} parent=5 // pred_fallthru
      _
    %p299 = scmp.lt.s32.totalorder %s16, 2
    // Predicated region
    $region49: #{model_forward.1} parent=5 // pred_check
      %p300 = pneg %p299
    $region50: #{model_forward.1} parent=5 // pred_check_branch
      %302 = sbr.rel (%p300) target = $region52
    $region51: #{model_forward.1} parent=5 // pred_region
      // Predicated region
      $region53: #{model_forward.1} parent=51 // pred_check
        %p303 = pneg %p36
      $region54: #{model_forward.1} parent=51 // pred_check_branch
        %305 = sbr.rel (%p303) target = $region56
      $region55: #{model_forward.1} parent=51 // pred_region
        %p306 = scmp.lt.s32.totalorder %s16, 1
        %s307 = scalar_select %p306, %s16, 1
        %s308 = smul.addr %s307, 5
        %s309 = smul.addr %s308, 4
        %s310 = scalar_lea.vmem %s0, %s309
      $region56: #{model_forward.1} parent=51 // pred_fallthru
        _
    $region52: #{model_forward.1} parent=5 // pred_fallthru
      _
    %p311 = scmp.le.s32.totalorder 1, %s16
    %p312 = scmp.lt.s32.totalorder %s16, 3
    %p313 = pnand %p311, %p312
    %p314 = pneg %p313
    // Predicated region
    $region57: #{model_forward.1} parent=5 // pred_check
      _
    $region58: #{model_forward.1} parent=5 // pred_check_branch
      %316 = sbr.rel (%p313) target = $region60
    $region59: #{model_forward.1} parent=5 // pred_region
      %s317 = ssub.s32 %s16, 1
      %p318 = scmp.lt.s32.totalorder %s21, 1
      %s319 = scalar_select %p318, %s21, 1
      %s320 = smul.addr %s319, 5
      %s321 = smul.addr %s320, 4
      %s322 = scalar_lea.vmem %s0, %s321
      %p323 = pneg %p42
      %p324 = pneg %p39
      %p325 = pneg %p63
      %p326 = pneg %p60
      %p327 = pneg %p84
      %p328 = pneg %p81
      %p329 = pneg %p105
      %p330 = pneg %p102
      %p331 = pneg %p126
      %p332 = pneg %p123
      %p333 = pneg %p147
      %p334 = pneg %p144
      %p335 = pneg %p168
      %p336 = pneg %p165
      %p337 = pneg %p189
      %p338 = pneg %p186
      %p339 = pneg %p210
      %p340 = pneg %p207
      %p341 = pneg %p231
      %p342 = pneg %p228
      %p343 = pneg %p257
      %p344 = pneg %p254
      %p345 = scmp.lt.s32.totalorder %s21, 1
      %s346 = scalar_select %p345, %s21, 1
      %s347 = smul.addr %s346, 4
      %s348 = smul.addr %s347, 4
      %s349 = scalar_lea.vmem %s10, %s348
      %p350 = scmp.lt.s32.totalorder %s21, 1
      %s351 = scalar_select %p350, %s21, 1
      %s352 = smul.addr %s351, 5
      %s353 = smul.addr %s352, 4
      %s354 = scalar_lea.vmem %s0, %s353
      %p355 = scmp.lt.s32.totalorder %s21, 1
      %s356 = scalar_select %p355, %s21, 1
      %s357 = smul.addr %s356, 4
      %s358 = smul.addr %s357, 4
      %s359 = scalar_lea.vmem %s10, %s358
      %v360 = vld [vmem:[%s2] sm:$0xff]
      %v361 = vld [vmem:[%s2 + $0x8] sm:$0xf]
      %363 = vset.pattern.permute.xlu0 0
      %364 = vperm.xlu0 %363, %v360
      %v365 = vpop.permute.xlu0 %364
      %368 = vset.pattern.permute.xlu0 0
      %369 = vperm.xlu0 %368, %v361
      %v370 = vpop.permute.xlu0 %369
      %v372 = vld [vmem:[%s354] ss:$4 sm:$0x1f]
      %v373 = vld [vmem:[%s1] sm:$0xff]
      %v374 = vld [vmem:[%s1 + $0x8] sm:$0xf]
      %v376 = vlaneseq
      %v377 = vshrl.u32 %v376, 7
      %v378 = vsub.s32 0, %v377
      %v379 = vrot.slane %v372, %v378
      %v380 = vlaneseq
      %v381 = vshrl.u32 %v380, 7
      %v382 = vsub.s32 1, %v381
      %v383 = vrot.slane %v372, %v382
      %v384 = vlaneseq
      %v385 = vshrl.u32 %v384, 7
      %v386 = vsub.s32 2, %v385
      %v387 = vrot.slane %v372, %v386
      %v388 = vlaneseq
      %v389 = vshrl.u32 %v388, 7
      %v390 = vsub.s32 3, %v389
      %v391 = vrot.slane %v372, %v390
      %v392 = vlaneseq
      %v393 = vshrl.u32 %v392, 7
      %v394 = vsub.s32 4, %v393
      %v395 = vrot.slane %v372, %v394
      %402 = vset.pattern.permute.xlu0 0
      %403 = vperm.xlu0 %402, %v373
      %v404 = vpop.permute.xlu0 %403
      %407 = vset.pattern.permute.xlu0 0
      %408 = vperm.xlu0 %407, %v374
      %v409 = vpop.permute.xlu0 %408
      %v411 = vmul.f32 %v379, %v404
      %v412 = vmul.f32 %v383, %v404
      %v413 = vmul.f32 %v387, %v404
      %v414 = vmul.f32 %v391, %v404
      %v415 = vmul.f32 %v395, %v404
      %v416 = vmul.f32 %v379, %v409
      %v417 = vmul.f32 %v383, %v409
      %v418 = vmul.f32 %v387, %v409
      %v419 = vmul.f32 %v391, %v409
      %v420 = vmul.f32 %v395, %v409
      %v421 = vadd.f32 %v365, %v411
      %v422 = vadd.f32 %v365, %v412
      %v423 = vadd.f32 %v365, %v413
      %v424 = vadd.f32 %v365, %v414
      %v425 = vadd.f32 %v365, %v415
      %v426 = vadd.f32 %v370, %v416
      %v427 = vadd.f32 %v370, %v417
      %v428 = vadd.f32 %v370, %v418
      %v429 = vadd.f32 %v370, %v419
      %v430 = vadd.f32 %v370, %v420
      %431 = vset.pattern.permute.xlu0 1
      %432 = vperm.xlu0 %431, %v373
      %v433 = vpop.permute.xlu0 %432
      %435 = vset.pattern.permute.xlu0 1
      %436 = vperm.xlu0 %435, %v374
      %v437 = vpop.permute.xlu0 %436
      %v439 = vmul.f32 %v379, %v433
      %v440 = vmul.f32 %v383, %v433
      %v441 = vmul.f32 %v387, %v433
      %v442 = vmul.f32 %v391, %v433
      %v443 = vmul.f32 %v395, %v433
      %v444 = vmul.f32 %v379, %v437
      %v445 = vmul.f32 %v383, %v437
      %v446 = vmul.f32 %v387, %v437
      %v447 = vmul.f32 %v391, %v437
      %v448 = vmul.f32 %v395, %v437
      %459 = vrot.lane.b32.xlu0 %v439, 127
      %v460 = vpop.permute.xlu0 %459
      %461 = vrot.lane.b32.xlu0 %v440, 127
      %v462 = vpop.permute.xlu0 %461
      %463 = vrot.lane.b32.xlu0 %v441, 127
      %v464 = vpop.permute.xlu0 %463
      %465 = vrot.lane.b32.xlu0 %v442, 127
      %v466 = vpop.permute.xlu0 %465
      %467 = vrot.lane.b32.xlu0 %v443, 127
      %v468 = vpop.permute.xlu0 %467
      %469 = vrot.lane.b32.xlu0 %v444, 127
      %v470 = vpop.permute.xlu0 %469
      %471 = vrot.lane.b32.xlu0 %v445, 127
      %v472 = vpop.permute.xlu0 %471
      %473 = vrot.lane.b32.xlu0 %v446, 127
      %v474 = vpop.permute.xlu0 %473
      %475 = vrot.lane.b32.xlu0 %v447, 127
      %v476 = vpop.permute.xlu0 %475
      %477 = vrot.lane.b32.xlu0 %v448, 127
      %v478 = vpop.permute.xlu0 %477
      %vm479 = vcmask 1039360
      %v480 = vsel %vm479, %v460, %v462
      %v481 = vsel %vm479, %v462, %v464
      %v482 = vsel %vm479, %v464, %v466
      %v483 = vsel %vm479, %v466, %v468
      %v484 = vsel %vm479, %v470, %v472
      %v485 = vsel %vm479, %v472, %v474
      %v486 = vsel %vm479, %v474, %v476
      %v487 = vsel %vm479, %v476, %v478
      %v498 = vadd.f32 %v421, %v480
      %v499 = vadd.f32 %v422, %v481
      %v500 = vadd.f32 %v423, %v482
      %v501 = vadd.f32 %v424, %v483
      %v502 = vadd.f32 %v425, %v468
      %v503 = vadd.f32 %v426, %v484
      %v504 = vadd.f32 %v427, %v485
      %v505 = vadd.f32 %v428, %v486
      %v506 = vadd.f32 %v429, %v487
      %v507 = vadd.f32 %v430, %v478
      %508 = vset.pattern.permute.xlu0 2
      %509 = vperm.xlu0 %508, %v373
      %v510 = vpop.permute.xlu0 %509
      %512 = vset.pattern.permute.xlu0 2
      %513 = vperm.xlu0 %512, %v374
      %v514 = vpop.permute.xlu0 %513
      %v516 = vmul.f32 %v379, %v510
      %v517 = vmul.f32 %v383, %v510
      %v518 = vmul.f32 %v387, %v510
      %v519 = vmul.f32 %v391, %v510
      %v520 = vmul.f32 %v395, %v510
      %v521 = vmul.f32 %v379, %v514
      %v522 = vmul.f32 %v383, %v514
      %v523 = vmul.f32 %v387, %v514
      %v524 = vmul.f32 %v391, %v514
      %v525 = vmul.f32 %v395, %v514
      %536 = vrot.lane.b32.xlu0 %v516, 100
      %v537 = vpop.permute.xlu0 %536
      %538 = vrot.lane.b32.xlu0 %v517, 100
      %v539 = vpop.permute.xlu0 %538
      %540 = vrot.lane.b32.xlu0 %v518, 100
      %v541 = vpop.permute.xlu0 %540
      %542 = vrot.lane.b32.xlu0 %v519, 100
      %v543 = vpop.permute.xlu0 %542
      %544 = vrot.lane.b32.xlu0 %v520, 100
      %v545 = vpop.permute.xlu0 %544
      %546 = vrot.lane.b32.xlu0 %v521, 100
      %v547 = vpop.permute.xlu0 %546
      %548 = vrot.lane.b32.xlu0 %v522, 100
      %v549 = vpop.permute.xlu0 %548
      %550 = vrot.lane.b32.xlu0 %v523, 100
      %v551 = vpop.permute.xlu0 %550
      %552 = vrot.lane.b32.xlu0 %v524, 100
      %v553 = vpop.permute.xlu0 %552
      %554 = vrot.lane.b32.xlu0 %v525, 100
      %v555 = vpop.permute.xlu0 %554
      %vm556 = vcmask 818176
      %v557 = vsel %vm556, %v537, %v539
      %v558 = vsel %vm556, %v539, %v541
      %v559 = vsel %vm556, %v541, %v543
      %v560 = vsel %vm556, %v543, %v545
      %v561 = vsel %vm556, %v547, %v549
      %v562 = vsel %vm556, %v549, %v551
      %v563 = vsel %vm556, %v551, %v553
      %v564 = vsel %vm556, %v553, %v555
      %v575 = vadd.f32 %v498, %v557
      %v576 = vadd.f32 %v499, %v558
      %v577 = vadd.f32 %v500, %v559
      %v578 = vadd.f32 %v501, %v560
      %v579 = vadd.f32 %v502, %v545
      %v580 = vadd.f32 %v503, %v561
      %v581 = vadd.f32 %v504, %v562
      %v582 = vadd.f32 %v505, %v563
      %v583 = vadd.f32 %v506, %v564
      %v584 = vadd.f32 %v507, %v555
      %585 = vset.pattern.permute.xlu0 3
      %586 = vperm.xlu0 %585, %v373
      %v587 = vpop.permute.xlu0 %586
      %589 = vset.pattern.permute.xlu0 3
      %590 = vperm.xlu0 %589, %v374
      %v591 = vpop.permute.xlu0 %590
      %v593 = vmul.f32 %v379, %v587
      %v594 = vmul.f32 %v383, %v587
      %v595 = vmul.f32 %v387, %v587
      %v596 = vmul.f32 %v391, %v587
      %v597 = vmul.f32 %v395, %v587
      %v598 = vmul.f32 %v379, %v591
      %v599 = vmul.f32 %v383, %v591
      %v600 = vmul.f32 %v387, %v591
      %v601 = vmul.f32 %v391, %v591
      %v602 = vmul.f32 %v395, %v591
      %613 = vrot.lane.b32.xlu0 %v593, 99
      %v614 = vpop.permute.xlu0 %613
      %615 = vrot.lane.b32.xlu0 %v594, 99
      %v616 = vpop.permute.xlu0 %615
      %617 = vrot.lane.b32.xlu0 %v595, 99
      %v618 = vpop.permute.xlu0 %617
      %619 = vrot.lane.b32.xlu0 %v596, 99
      %v620 = vpop.permute.xlu0 %619
      %621 = vrot.lane.b32.xlu0 %v597, 99
      %v622 = vpop.permute.xlu0 %621
      %623 = vrot.lane.b32.xlu0 %v598, 99
      %v624 = vpop.permute.xlu0 %623
      %625 = vrot.lane.b32.xlu0 %v599, 99
      %v626 = vpop.permute.xlu0 %625
      %627 = vrot.lane.b32.xlu0 %v600, 99
      %v628 = vpop.permute.xlu0 %627
      %629 = vrot.lane.b32.xlu0 %v601, 99
      %v630 = vpop.permute.xlu0 %629
      %631 = vrot.lane.b32.xlu0 %v602, 99
      %v632 = vpop.permute.xlu0 %631
      %vm633 = vcmask 809984
      %v634 = vsel %vm633, %v614, %v616
      %v635 = vsel %vm633, %v616, %v618
      %v636 = vsel %vm633, %v618, %v620
      %v637 = vsel %vm633, %v620, %v622
      %v638 = vsel %vm633, %v624, %v626
      %v639 = vsel %vm633, %v626, %v628
      %v640 = vsel %vm633, %v628, %v630
      %v641 = vsel %vm633, %v630, %v632
      %v652 = vadd.f32 %v575, %v634
      %v653 = vadd.f32 %v576, %v635
      %v654 = vadd.f32 %v577, %v636
      %v655 = vadd.f32 %v578, %v637
      %v656 = vadd.f32 %v579, %v622
      %v657 = vadd.f32 %v580, %v638
      %v658 = vadd.f32 %v581, %v639
      %v659 = vadd.f32 %v582, %v640
      %v660 = vadd.f32 %v583, %v641
      %v661 = vadd.f32 %v584, %v632
      %s662 = scalar_lea.vmem %s354, 1
      %v663 = vld [vmem:[%s662] ss:$4 sm:$0x1f]
      %v665 = vlaneseq
      %v666 = vshrl.u32 %v665, 7
      %v667 = vsub.s32 0, %v666
      %v668 = vrot.slane %v663, %v667
      %v669 = vlaneseq
      %v670 = vshrl.u32 %v669, 7
      %v671 = vsub.s32 1, %v670
      %v672 = vrot.slane %v663, %v671
      %v673 = vlaneseq
      %v674 = vshrl.u32 %v673, 7
      %v675 = vsub.s32 2, %v674
      %v676 = vrot.slane %v663, %v675
      %v677 = vlaneseq
      %v678 = vshrl.u32 %v677, 7
      %v679 = vsub.s32 3, %v678
      %v680 = vrot.slane %v663, %v679
      %v681 = vlaneseq
      %v682 = vshrl.u32 %v681, 7
      %v683 = vsub.s32 4, %v682
      %v684 = vrot.slane %v663, %v683
      %690 = vset.pattern.permute.xlu0 4
      %691 = vperm.xlu0 %690, %v373
      %v692 = vpop.permute.xlu0 %691
      %694 = vset.pattern.permute.xlu0 4
      %695 = vperm.xlu0 %694, %v374
      %v696 = vpop.permute.xlu0 %695
      %v698 = vmul.f32 %v668, %v692
      %v699 = vmul.f32 %v672, %v692
      %v700 = vmul.f32 %v676, %v692
      %v701 = vmul.f32 %v680, %v692
      %v702 = vmul.f32 %v684, %v692
      %v703 = vmul.f32 %v668, %v696
      %v704 = vmul.f32 %v672, %v696
      %v705 = vmul.f32 %v676, %v696
      %v706 = vmul.f32 %v680, %v696
      %v707 = vmul.f32 %v684, %v696
      %v708 = vadd.f32 %v652, %v698
      %v709 = vadd.f32 %v653, %v699
      %v710 = vadd.f32 %v654, %v700
      %v711 = vadd.f32 %v655, %v701
      %v712 = vadd.f32 %v656, %v702
      %v713 = vadd.f32 %v657, %v703
      %v714 = vadd.f32 %v658, %v704
      %v715 = vadd.f32 %v659, %v705
      %v716 = vadd.f32 %v660, %v706
      %v717 = vadd.f32 %v661, %v707
      %718 = vset.pattern.permute.xlu0 5
      %719 = vperm.xlu0 %718, %v373
      %v720 = vpop.permute.xlu0 %719
      %722 = vset.pattern.permute.xlu0 5
      %723 = vperm.xlu0 %722, %v374
      %v724 = vpop.permute.xlu0 %723
      %v726 = vmul.f32 %v668, %v720
      %v727 = vmul.f32 %v672, %v720
      %v728 = vmul.f32 %v676, %v720
      %v729 = vmul.f32 %v680, %v720
      %v730 = vmul.f32 %v684, %v720
      %v731 = vmul.f32 %v668, %v724
      %v732 = vmul.f32 %v672, %v724
      %v733 = vmul.f32 %v676, %v724
      %v734 = vmul.f32 %v680, %v724
      %v735 = vmul.f32 %v684, %v724
      %746 = vrot.lane.b32.xlu0 %v726, 127
      %v747 = vpop.permute.xlu0 %746
      %748 = vrot.lane.b32.xlu0 %v727, 127
      %v749 = vpop.permute.xlu0 %748
      %750 = vrot.lane.b32.xlu0 %v728, 127
      %v751 = vpop.permute.xlu0 %750
      %752 = vrot.lane.b32.xlu0 %v729, 127
      %v753 = vpop.permute.xlu0 %752
      %754 = vrot.lane.b32.xlu0 %v730, 127
      %v755 = vpop.permute.xlu0 %754
      %756 = vrot.lane.b32.xlu0 %v731, 127
      %v757 = vpop.permute.xlu0 %756
      %758 = vrot.lane.b32.xlu0 %v732, 127
      %v759 = vpop.permute.xlu0 %758
      %760 = vrot.lane.b32.xlu0 %v733, 127
      %v761 = vpop.permute.xlu0 %760
      %762 = vrot.lane.b32.xlu0 %v734, 127
      %v763 = vpop.permute.xlu0 %762
      %764 = vrot.lane.b32.xlu0 %v735, 127
      %v765 = vpop.permute.xlu0 %764
      %v766 = vsel %vm479, %v747, %v749
      %v767 = vsel %vm479, %v749, %v751
      %v768 = vsel %vm479, %v751, %v753
      %v769 = vsel %vm479, %v753, %v755
      %v770 = vsel %vm479, %v757, %v759
      %v771 = vsel %vm479, %v759, %v761
      %v772 = vsel %vm479, %v761, %v763
      %v773 = vsel %vm479, %v763, %v765
      %v784 = vadd.f32 %v708, %v766
      %v785 = vadd.f32 %v709, %v767
      %v786 = vadd.f32 %v710, %v768
      %v787 = vadd.f32 %v711, %v769
      %v788 = vadd.f32 %v712, %v755
      %v789 = vadd.f32 %v713, %v770
      %v790 = vadd.f32 %v714, %v771
      %v791 = vadd.f32 %v715, %v772
      %v792 = vadd.f32 %v716, %v773
      %v793 = vadd.f32 %v717, %v765
      %794 = vset.pattern.permute.xlu0 6
      %795 = vperm.xlu0 %794, %v373
      %v796 = vpop.permute.xlu0 %795
      %798 = vset.pattern.permute.xlu0 6
      %799 = vperm.xlu0 %798, %v374
      %v800 = vpop.permute.xlu0 %799
      %v802 = vmul.f32 %v668, %v796
      %v803 = vmul.f32 %v672, %v796
      %v804 = vmul.f32 %v676, %v796
      %v805 = vmul.f32 %v680, %v796
      %v806 = vmul.f32 %v684, %v796
      %v807 = vmul.f32 %v668, %v800
      %v808 = vmul.f32 %v672, %v800
      %v809 = vmul.f32 %v676, %v800
      %v810 = vmul.f32 %v680, %v800
      %v811 = vmul.f32 %v684, %v800
      %822 = vrot.lane.b32.xlu0 %v802, 100
      %v823 = vpop.permute.xlu0 %822
      %824 = vrot.lane.b32.xlu0 %v803, 100
      %v825 = vpop.permute.xlu0 %824
      %826 = vrot.lane.b32.xlu0 %v804, 100
      %v827 = vpop.permute.xlu0 %826
      %828 = vrot.lane.b32.xlu0 %v805, 100
      %v829 = vpop.permute.xlu0 %828
      %830 = vrot.lane.b32.xlu0 %v806, 100
      %v831 = vpop.permute.xlu0 %830
      %832 = vrot.lane.b32.xlu0 %v807, 100
      %v833 = vpop.permute.xlu0 %832
      %834 = vrot.lane.b32.xlu0 %v808, 100
      %v835 = vpop.permute.xlu0 %834
      %836 = vrot.lane.b32.xlu0 %v809, 100
      %v837 = vpop.permute.xlu0 %836
      %838 = vrot.lane.b32.xlu0 %v810, 100
      %v839 = vpop.permute.xlu0 %838
      %840 = vrot.lane.b32.xlu0 %v811, 100
      %v841 = vpop.permute.xlu0 %840
      %v842 = vsel %vm556, %v823, %v825
      %v843 = vsel %vm556, %v825, %v827
      %v844 = vsel %vm556, %v827, %v829
      %v845 = vsel %vm556, %v829, %v831
      %v846 = vsel %vm556, %v833, %v835
      %v847 = vsel %vm556, %v835, %v837
      %v848 = vsel %vm556, %v837, %v839
      %v849 = vsel %vm556, %v839, %v841
      %v860 = vadd.f32 %v784, %v842
      %v861 = vadd.f32 %v785, %v843
      %v862 = vadd.f32 %v786, %v844
      %v863 = vadd.f32 %v787, %v845
      %v864 = vadd.f32 %v788, %v831
      %v865 = vadd.f32 %v789, %v846
      %v866 = vadd.f32 %v790, %v847
      %v867 = vadd.f32 %v791, %v848
      %v868 = vadd.f32 %v792, %v849
      %v869 = vadd.f32 %v793, %v841
      %870 = vset.pattern.permute.xlu0 7
      %871 = vperm.xlu0 %870, %v373
      %v872 = vpop.permute.xlu0 %871
      %874 = vset.pattern.permute.xlu0 7
      %875 = vperm.xlu0 %874, %v374
      %v876 = vpop.permute.xlu0 %875
      %v878 = vmul.f32 %v668, %v872
      %v879 = vmul.f32 %v672, %v872
      %v880 = vmul.f32 %v676, %v872
      %v881 = vmul.f32 %v680, %v872
      %v882 = vmul.f32 %v684, %v872
      %v883 = vmul.f32 %v668, %v876
      %v884 = vmul.f32 %v672, %v876
      %v885 = vmul.f32 %v676, %v876
      %v886 = vmul.f32 %v680, %v876
      %v887 = vmul.f32 %v684, %v876
      %898 = vrot.lane.b32.xlu0 %v878, 99
      %v899 = vpop.permute.xlu0 %898
      %900 = vrot.lane.b32.xlu0 %v879, 99
      %v901 = vpop.permute.xlu0 %900
      %902 = vrot.lane.b32.xlu0 %v880, 99
      %v903 = vpop.permute.xlu0 %902
      %904 = vrot.lane.b32.xlu0 %v881, 99
      %v905 = vpop.permute.xlu0 %904
      %906 = vrot.lane.b32.xlu0 %v882, 99
      %v907 = vpop.permute.xlu0 %906
      %908 = vrot.lane.b32.xlu0 %v883, 99
      %v909 = vpop.permute.xlu0 %908
      %910 = vrot.lane.b32.xlu0 %v884, 99
      %v911 = vpop.permute.xlu0 %910
      %912 = vrot.lane.b32.xlu0 %v885, 99
      %v913 = vpop.permute.xlu0 %912
      %914 = vrot.lane.b32.xlu0 %v886, 99
      %v915 = vpop.permute.xlu0 %914
      %916 = vrot.lane.b32.xlu0 %v887, 99
      %v917 = vpop.permute.xlu0 %916
      %v918 = vsel %vm633, %v899, %v901
      %v919 = vsel %vm633, %v901, %v903
      %v920 = vsel %vm633, %v903, %v905
      %v921 = vsel %vm633, %v905, %v907
      %v922 = vsel %vm633, %v909, %v911
      %v923 = vsel %vm633, %v911, %v913
      %v924 = vsel %vm633, %v913, %v915
      %v925 = vsel %vm633, %v915, %v917
      %v936 = vadd.f32 %v860, %v918
      %v937 = vadd.f32 %v861, %v919
      %v938 = vadd.f32 %v862, %v920
      %v939 = vadd.f32 %v863, %v921
      %v940 = vadd.f32 %v864, %v907
      %v941 = vadd.f32 %v865, %v922
      %v942 = vadd.f32 %v866, %v923
      %v943 = vadd.f32 %v867, %v924
      %v944 = vadd.f32 %v868, %v925
      %v945 = vadd.f32 %v869, %v917
      %s946 = scalar_lea.vmem %s354, 2
      %v947 = vld [vmem:[%s946] ss:$4 sm:$0x1f]
      %v949 = vlaneseq
      %v950 = vshrl.u32 %v949, 7
      %v951 = vsub.s32 0, %v950
      %v952 = vrot.slane %v947, %v951
      %v953 = vlaneseq
      %v954 = vshrl.u32 %v953, 7
      %v955 = vsub.s32 1, %v954
      %v956 = vrot.slane %v947, %v955
      %v957 = vlaneseq
      %v958 = vshrl.u32 %v957, 7
      %v959 = vsub.s32 2, %v958
      %v960 = vrot.slane %v947, %v959
      %v961 = vlaneseq
      %v962 = vshrl.u32 %v961, 7
      %v963 = vsub.s32 3, %v962
      %v964 = vrot.slane %v947, %v963
      %v965 = vlaneseq
      %v966 = vshrl.u32 %v965, 7
      %v967 = vsub.s32 4, %v966
      %v968 = vrot.slane %v947, %v967
      %974 = vset.pattern.permute.xlu0 8
      %975 = vperm.xlu0 %974, %v373
      %v976 = vpop.permute.xlu0 %975
      %978 = vset.pattern.permute.xlu0 8
      %979 = vperm.xlu0 %978, %v374
      %v980 = vpop.permute.xlu0 %979
      %v982 = vmul.f32 %v952, %v976
      %v983 = vmul.f32 %v956, %v976
      %v984 = vmul.f32 %v960, %v976
      %v985 = vmul.f32 %v964, %v976
      %v986 = vmul.f32 %v968, %v976
      %v987 = vmul.f32 %v952, %v980
      %v988 = vmul.f32 %v956, %v980
      %v989 = vmul.f32 %v960, %v980
      %v990 = vmul.f32 %v964, %v980
      %v991 = vmul.f32 %v968, %v980
      %v992 = vadd.f32 %v936, %v982
      %v993 = vadd.f32 %v937, %v983
      %v994 = vadd.f32 %v938, %v984
      %v995 = vadd.f32 %v939, %v985
      %v996 = vadd.f32 %v940, %v986
      %v997 = vadd.f32 %v941, %v987
      %v998 = vadd.f32 %v942, %v988
      %v999 = vadd.f32 %v943, %v989
      %v1000 = vadd.f32 %v944, %v990
      %v1001 = vadd.f32 %v945, %v991
      %1002 = vset.pattern.permute.xlu0 9
      %1003 = vperm.xlu0 %1002, %v373
      %v1004 = vpop.permute.xlu0 %1003
      %1006 = vset.pattern.permute.xlu0 9
      %1007 = vperm.xlu0 %1006, %v374
      %v1008 = vpop.permute.xlu0 %1007
      %v1010 = vmul.f32 %v952, %v1004
      %v1011 = vmul.f32 %v956, %v1004
      %v1012 = vmul.f32 %v960, %v1004
      %v1013 = vmul.f32 %v964, %v1004
      %v1014 = vmul.f32 %v968, %v1004
      %v1015 = vmul.f32 %v952, %v1008
      %v1016 = vmul.f32 %v956, %v1008
      %v1017 = vmul.f32 %v960, %v1008
      %v1018 = vmul.f32 %v964, %v1008
      %v1019 = vmul.f32 %v968, %v1008
      %1030 = vrot.lane.b32.xlu0 %v1010, 127
      %v1031 = vpop.permute.xlu0 %1030
      %1032 = vrot.lane.b32.xlu0 %v1011, 127
      %v1033 = vpop.permute.xlu0 %1032
      %1034 = vrot.lane.b32.xlu0 %v1012, 127
      %v1035 = vpop.permute.xlu0 %1034
      %1036 = vrot.lane.b32.xlu0 %v1013, 127
      %v1037 = vpop.permute.xlu0 %1036
      %1038 = vrot.lane.b32.xlu0 %v1014, 127
      %v1039 = vpop.permute.xlu0 %1038
      %1040 = vrot.lane.b32.xlu0 %v1015, 127
      %v1041 = vpop.permute.xlu0 %1040
      %1042 = vrot.lane.b32.xlu0 %v1016, 127
      %v1043 = vpop.permute.xlu0 %1042
      %1044 = vrot.lane.b32.xlu0 %v1017, 127
      %v1045 = vpop.permute.xlu0 %1044
      %1046 = vrot.lane.b32.xlu0 %v1018, 127
      %v1047 = vpop.permute.xlu0 %1046
      %1048 = vrot.lane.b32.xlu0 %v1019, 127
      %v1049 = vpop.permute.xlu0 %1048
      %v1050 = vsel %vm479, %v1031, %v1033
      %v1051 = vsel %vm479, %v1033, %v1035
      %v1052 = vsel %vm479, %v1035, %v1037
      %v1053 = vsel %vm479, %v1037, %v1039
      %v1054 = vsel %vm479, %v1041, %v1043
      %v1055 = vsel %vm479, %v1043, %v1045
      %v1056 = vsel %vm479, %v1045, %v1047
      %v1057 = vsel %vm479, %v1047, %v1049
      %v1068 = vadd.f32 %v992, %v1050
      %v1069 = vadd.f32 %v993, %v1051
      %v1070 = vadd.f32 %v994, %v1052
      %v1071 = vadd.f32 %v995, %v1053
      %v1072 = vadd.f32 %v996, %v1039
      %v1073 = vadd.f32 %v997, %v1054
      %v1074 = vadd.f32 %v998, %v1055
      %v1075 = vadd.f32 %v999, %v1056
      %v1076 = vadd.f32 %v1000, %v1057
      %v1077 = vadd.f32 %v1001, %v1049
      %1078 = vset.pattern.permute.xlu0 10
      %1079 = vperm.xlu0 %1078, %v373
      %v1080 = vpop.permute.xlu0 %1079
      %1082 = vset.pattern.permute.xlu0 10
      %1083 = vperm.xlu0 %1082, %v374
      %v1084 = vpop.permute.xlu0 %1083
      %v1086 = vmul.f32 %v952, %v1080
      %v1087 = vmul.f32 %v956, %v1080
      %v1088 = vmul.f32 %v960, %v1080
      %v1089 = vmul.f32 %v964, %v1080
      %v1090 = vmul.f32 %v968, %v1080
      %v1091 = vmul.f32 %v952, %v1084
      %v1092 = vmul.f32 %v956, %v1084
      %v1093 = vmul.f32 %v960, %v1084
      %v1094 = vmul.f32 %v964, %v1084
      %v1095 = vmul.f32 %v968, %v1084
      %1106 = vrot.lane.b32.xlu0 %v1086, 100
      %v1107 = vpop.permute.xlu0 %1106
      %1108 = vrot.lane.b32.xlu0 %v1087, 100
      %v1109 = vpop.permute.xlu0 %1108
      %1110 = vrot.lane.b32.xlu0 %v1088, 100
      %v1111 = vpop.permute.xlu0 %1110
      %1112 = vrot.lane.b32.xlu0 %v1089, 100
      %v1113 = vpop.permute.xlu0 %1112
      %1114 = vrot.lane.b32.xlu0 %v1090, 100
      %v1115 = vpop.permute.xlu0 %1114
      %1116 = vrot.lane.b32.xlu0 %v1091, 100
      %v1117 = vpop.permute.xlu0 %1116
      %1118 = vrot.lane.b32.xlu0 %v1092, 100
      %v1119 = vpop.permute.xlu0 %1118
      %1120 = vrot.lane.b32.xlu0 %v1093, 100
      %v1121 = vpop.permute.xlu0 %1120
      %1122 = vrot.lane.b32.xlu0 %v1094, 100
      %v1123 = vpop.permute.xlu0 %1122
      %1124 = vrot.lane.b32.xlu0 %v1095, 100
      %v1125 = vpop.permute.xlu0 %1124
      %v1126 = vsel %vm556, %v1107, %v1109
      %v1127 = vsel %vm556, %v1109, %v1111
      %v1128 = vsel %vm556, %v1111, %v1113
      %v1129 = vsel %vm556, %v1113, %v1115
      %v1130 = vsel %vm556, %v1117, %v1119
      %v1131 = vsel %vm556, %v1119, %v1121
      %v1132 = vsel %vm556, %v1121, %v1123
      %v1133 = vsel %vm556, %v1123, %v1125
      %v1144 = vadd.f32 %v1068, %v1126
      %v1145 = vadd.f32 %v1069, %v1127
      %v1146 = vadd.f32 %v1070, %v1128
      %v1147 = vadd.f32 %v1071, %v1129
      %v1148 = vadd.f32 %v1072, %v1115
      %v1149 = vadd.f32 %v1073, %v1130
      %v1150 = vadd.f32 %v1074, %v1131
      %v1151 = vadd.f32 %v1075, %v1132
      %v1152 = vadd.f32 %v1076, %v1133
      %v1153 = vadd.f32 %v1077, %v1125
      %1154 = vset.pattern.permute.xlu0 11
      %1155 = vperm.xlu0 %1154, %v373
      %v1156 = vpop.permute.xlu0 %1155
      %1158 = vset.pattern.permute.xlu0 11
      %1159 = vperm.xlu0 %1158, %v374
      %v1160 = vpop.permute.xlu0 %1159
      %v1162 = vmul.f32 %v952, %v1156
      %v1163 = vmul.f32 %v956, %v1156
      %v1164 = vmul.f32 %v960, %v1156
      %v1165 = vmul.f32 %v964, %v1156
      %v1166 = vmul.f32 %v968, %v1156
      %v1167 = vmul.f32 %v952, %v1160
      %v1168 = vmul.f32 %v956, %v1160
      %v1169 = vmul.f32 %v960, %v1160
      %v1170 = vmul.f32 %v964, %v1160
      %v1171 = vmul.f32 %v968, %v1160
      %1182 = vrot.lane.b32.xlu0 %v1162, 99
      %v1183 = vpop.permute.xlu0 %1182
      %1184 = vrot.lane.b32.xlu0 %v1163, 99
      %v1185 = vpop.permute.xlu0 %1184
      %1186 = vrot.lane.b32.xlu0 %v1164, 99
      %v1187 = vpop.permute.xlu0 %1186
      %1188 = vrot.lane.b32.xlu0 %v1165, 99
      %v1189 = vpop.permute.xlu0 %1188
      %1190 = vrot.lane.b32.xlu0 %v1166, 99
      %v1191 = vpop.permute.xlu0 %1190
      %1192 = vrot.lane.b32.xlu0 %v1167, 99
      %v1193 = vpop.permute.xlu0 %1192
      %1194 = vrot.lane.b32.xlu0 %v1168, 99
      %v1195 = vpop.permute.xlu0 %1194
      %1196 = vrot.lane.b32.xlu0 %v1169, 99
      %v1197 = vpop.permute.xlu0 %1196
      %1198 = vrot.lane.b32.xlu0 %v1170, 99
      %v1199 = vpop.permute.xlu0 %1198
      %1200 = vrot.lane.b32.xlu0 %v1171, 99
      %v1201 = vpop.permute.xlu0 %1200
      %v1202 = vsel %vm633, %v1183, %v1185
      %v1203 = vsel %vm633, %v1185, %v1187
      %v1204 = vsel %vm633, %v1187, %v1189
      %v1205 = vsel %vm633, %v1189, %v1191
      %v1206 = vsel %vm633, %v1193, %v1195
      %v1207 = vsel %vm633, %v1195, %v1197
      %v1208 = vsel %vm633, %v1197, %v1199
      %v1209 = vsel %vm633, %v1199, %v1201
      %v1220 = vadd.f32 %v1144, %v1202
      %v1221 = vadd.f32 %v1145, %v1203
      %v1222 = vadd.f32 %v1146, %v1204
      %v1223 = vadd.f32 %v1147, %v1205
      %v1224 = vadd.f32 %v1148, %v1191
      %v1225 = vadd.f32 %v1149, %v1206
      %v1226 = vadd.f32 %v1150, %v1207
      %v1227 = vadd.f32 %v1151, %v1208
      %v1228 = vadd.f32 %v1152, %v1209
      %v1229 = vadd.f32 %v1153, %v1201
      %v1230 = vld [vmem:[%s7] sm:$0xf]
      %vm1231 = vcmp.gt.f32.partialorder %v1230, 0.5
      %v1232 = vsel %vm1231, 1, 0
      %v1233 = vlaneseq
      %v1234 = vshrl.u32 %v1233, 7
      %v1235 = vsub.s32 0, %v1234
      %v1236 = vrot.slane %v1232, %v1235
      %v1237 = vlaneseq
      %v1238 = vshrl.u32 %v1237, 7
      %v1239 = vsub.s32 1, %v1238
      %v1240 = vrot.slane %v1232, %v1239
      %v1241 = vlaneseq
      %v1242 = vshrl.u32 %v1241, 7
      %v1243 = vsub.s32 2, %v1242
      %v1244 = vrot.slane %v1232, %v1243
      %v1245 = vlaneseq
      %v1246 = vshrl.u32 %v1245, 7
      %v1247 = vsub.s32 3, %v1246
      %v1248 = vrot.slane %v1232, %v1247
      %vm1249 = vcmp.eq.s32.totalorder %v1236, 1
      %vm1250 = vcmp.eq.s32.totalorder %v1240, 1
      %vm1251 = vcmp.eq.s32.totalorder %v1244, 1
      %vm1252 = vcmp.eq.s32.totalorder %v1248, 1
      %1263 = vrot.lane.b32.xlu0 %v1220, 72
      %v1264 = vpop.permute.xlu0 %1263
      %1265 = vrot.lane.b32.xlu0 %v1221, 72
      %v1266 = vpop.permute.xlu0 %1265
      %1267 = vrot.lane.b32.xlu0 %v1222, 72
      %v1268 = vpop.permute.xlu0 %1267
      %1269 = vrot.lane.b32.xlu0 %v1223, 72
      %v1270 = vpop.permute.xlu0 %1269
      %1271 = vrot.lane.b32.xlu0 %v1224, 72
      %v1272 = vpop.permute.xlu0 %1271
      %1273 = vrot.lane.b32.xlu0 %v1225, 72
      %v1274 = vpop.permute.xlu0 %1273
      %1275 = vrot.lane.b32.xlu0 %v1226, 72
      %v1276 = vpop.permute.xlu0 %1275
      %1277 = vrot.lane.b32.xlu0 %v1227, 72
      %v1278 = vpop.permute.xlu0 %1277
      %1279 = vrot.lane.b32.xlu0 %v1228, 72
      %v1280 = vpop.permute.xlu0 %1279
      %1281 = vrot.lane.b32.xlu0 %v1229, 72
      %v1282 = vpop.permute.xlu0 %1281
      %vm1283 = vcmask 588800
      %v1284 = vsel %vm1283, %v1264, %v1266
      %v1285 = vsel %vm1283, %v1266, %v1268
      %v1286 = vsel %vm1283, %v1268, %v1270
      %v1287 = vsel %vm1283, %v1270, %v1272
      %v1288 = vsel %vm1283, %v1274, %v1276
      %v1289 = vsel %vm1283, %v1276, %v1278
      %v1290 = vsel %vm1283, %v1278, %v1280
      %v1291 = vsel %vm1283, %v1280, %v1282
      %v1300 = vsel %vm1249, %v1284, 2.3
      %v1301 = vsel %vm1250, %v1285, 2.3
      %v1302 = vsel %vm1251, %v1286, 2.3
      %v1303 = vsel %vm1252, %v1287, 2.3
      %v1304 = vsel %vm1249, %v1288, 2.3
      %v1305 = vsel %vm1250, %v1289, 2.3
      %v1306 = vsel %vm1251, %v1290, 2.3
      %v1307 = vsel %vm1252, %v1291, 2.3
      %1316 = vrot.lane.b32.xlu0 %v1300, 56
      %v1317 = vpop.permute.xlu0 %1316
      %1318 = vrot.lane.b32.xlu0 %v1301, 56
      %v1319 = vpop.permute.xlu0 %1318
      %1320 = vrot.lane.b32.xlu0 %v1302, 56
      %v1321 = vpop.permute.xlu0 %1320
      %1322 = vrot.lane.b32.xlu0 %v1303, 56
      %v1323 = vpop.permute.xlu0 %1322
      %1324 = vrot.lane.b32.xlu0 %v1304, 56
      %v1325 = vpop.permute.xlu0 %1324
      %1326 = vrot.lane.b32.xlu0 %v1305, 56
      %v1327 = vpop.permute.xlu0 %1326
      %1328 = vrot.lane.b32.xlu0 %v1306, 56
      %v1329 = vpop.permute.xlu0 %1328
      %1330 = vrot.lane.b32.xlu0 %v1307, 56
      %v1331 = vpop.permute.xlu0 %1330
      %vm1332 = vcmask 457728
      %v1333 = vsel %vm1332, %v1317, %v1319
      %v1334 = vsel %vm1332, %v1319, %v1321
      %v1335 = vsel %vm1332, %v1321, %v1323
      %v1336 = vsel %vm1332, %v1325, %v1327
      %v1337 = vsel %vm1332, %v1327, %v1329
      %v1338 = vsel %vm1332, %v1329, %v1331
      %vm1349 = vcmask 1048000
      %1350 = vst.msk [vmem:[#allocation2] sm:$0xff] %vm1349, %v1317
      %1351 = vst [vmem:[#allocation2 + $0x8] sm:$0xff] %v1333
      %1352 = vst [vmem:[#allocation2 + $0x10] sm:$0xff] %v1334
      %1353 = vst [vmem:[#allocation2 + $0x18] sm:$0xff] %v1335
      %vm1354 = vcmask 162816
      %1355 = vst.msk [vmem:[#allocation2 + $0x20] sm:$0xff] %vm1354, %v1323
      %vm1356 = vcmask 1043904
      %1357 = vst.msk [vmem:[#allocation2 + $0x28] sm:$0xf] %vm1356, %v1325
      %1358 = vst [vmem:[#allocation2 + $0x30] sm:$0xf] %v1336
      %1359 = vst [vmem:[#allocation2 + $0x38] sm:$0xf] %v1337
      %1360 = vst [vmem:[#allocation2 + $0x40] sm:$0xf] %v1338
      %vm1361 = vcmask 158720
      %1362 = vst.msk [vmem:[#allocation2 + $0x48] sm:$0xf] %vm1361, %v1331
      %v1363 = vld [vmem:[%s4] sm:$0xff]
      %v1364 = vld [vmem:[%s4 + $0x8] sm:$0xf]
      %1366 = vset.pattern.permute.xlu0 0
      %1367 = vperm.xlu0 %1366, %v1363
      %v1368 = vpop.permute.xlu0 %1367
      %1371 = vset.pattern.permute.xlu0 0
      %1372 = vperm.xlu0 %1371, %v1364
      %v1373 = vpop.permute.xlu0 %1372
      %v1375 = vld [vmem:[%s3] sm:$0xff]
      %v1376 = vld [vmem:[%s3 + $0x8] sm:$0xf]
      %v1377 = vld [vmem:[#allocation2] sm:$0xff]
      %v1378 = vld [vmem:[#allocation2 + $0x8] sm:$0xff]
      %v1379 = vld [vmem:[#allocation2 + $0x10] sm:$0xff]
      %v1380 = vld [vmem:[#allocation2 + $0x18] sm:$0xff]
      %v1381 = vld [vmem:[#allocation2 + $0x28] sm:$0xf]
      %v1382 = vld [vmem:[#allocation2 + $0x30] sm:$0xf]
      %v1383 = vld [vmem:[#allocation2 + $0x38] sm:$0xf]
      %v1384 = vld [vmem:[#allocation2 + $0x40] sm:$0xf]
      %1386 = vset.pattern.permute.xlu0 0
      %1387 = vperm.xlu0 %1386, %v1375
      %v1388 = vpop.permute.xlu0 %1387
      %1391 = vset.pattern.permute.xlu0 0
      %1392 = vperm.xlu0 %1391, %v1376
      %v1393 = vpop.permute.xlu0 %1392
      %v1395 = vmul.f32 %v1377, %v1388
      %v1396 = vmul.f32 %v1378, %v1388
      %v1397 = vmul.f32 %v1379, %v1388
      %v1398 = vmul.f32 %v1380, %v1388
      %v1399 = vmul.f32 %v1381, %v1393
      %v1400 = vmul.f32 %v1382, %v1393
      %v1401 = vmul.f32 %v1383, %v1393
      %v1402 = vmul.f32 %v1384, %v1393
      %v1403 = vadd.f32 %v1368, %v1395
      %v1404 = vadd.f32 %v1368, %v1396
      %v1405 = vadd.f32 %v1368, %v1397
      %v1406 = vadd.f32 %v1368, %v1398
      %v1407 = vadd.f32 %v1373, %v1399
      %v1408 = vadd.f32 %v1373, %v1400
      %v1409 = vadd.f32 %v1373, %v1401
      %v1410 = vadd.f32 %v1373, %v1402
      %1411 = vset.pattern.permute.xlu0 1
      %1412 = vperm.xlu0 %1411, %v1375
      %v1413 = vpop.permute.xlu0 %1412
      %1415 = vset.pattern.permute.xlu0 1
      %1416 = vperm.xlu0 %1415, %v1376
      %v1417 = vpop.permute.xlu0 %1416
      %v1419 = vmul.f32 %v1377, %v1413
      %v1420 = vmul.f32 %v1378, %v1413
      %v1421 = vmul.f32 %v1379, %v1413
      %v1422 = vmul.f32 %v1380, %v1413
      %v1423 = vmul.f32 %v1381, %v1417
      %v1424 = vmul.f32 %v1382, %v1417
      %v1425 = vmul.f32 %v1383, %v1417
      %v1426 = vmul.f32 %v1384, %v1417
      %1435 = vrot.lane.b32.xlu0 %v1419, 127
      %v1436 = vpop.permute.xlu0 %1435
      %1437 = vrot.lane.b32.xlu0 %v1420, 127
      %v1438 = vpop.permute.xlu0 %1437
      %1439 = vrot.lane.b32.xlu0 %v1421, 127
      %v1440 = vpop.permute.xlu0 %1439
      %1441 = vrot.lane.b32.xlu0 %v1422, 127
      %v1442 = vpop.permute.xlu0 %1441
      %1443 = vrot.lane.b32.xlu0 %v1423, 127
      %v1444 = vpop.permute.xlu0 %1443
      %1445 = vrot.lane.b32.xlu0 %v1424, 127
      %v1446 = vpop.permute.xlu0 %1445
      %1447 = vrot.lane.b32.xlu0 %v1425, 127
      %v1448 = vpop.permute.xlu0 %1447
      %1449 = vrot.lane.b32.xlu0 %v1426, 127
      %v1450 = vpop.permute.xlu0 %1449
      %v1451 = vsel %vm479, %v1436, %v1438
      %v1452 = vsel %vm479, %v1438, %v1440
      %v1453 = vsel %vm479, %v1440, %v1442
      %v1454 = vsel %vm479, %v1444, %v1446
      %v1455 = vsel %vm479, %v1446, %v1448
      %v1456 = vsel %vm479, %v1448, %v1450
      %v1465 = vadd.f32 %v1403, %v1451
      %v1466 = vadd.f32 %v1404, %v1452
      %v1467 = vadd.f32 %v1405, %v1453
      %v1468 = vadd.f32 %v1406, %v1442
      %v1469 = vadd.f32 %v1407, %v1454
      %v1470 = vadd.f32 %v1408, %v1455
      %v1471 = vadd.f32 %v1409, %v1456
      %v1472 = vadd.f32 %v1410, %v1450
      %1473 = vset.pattern.permute.xlu0 2
      %1474 = vperm.xlu0 %1473, %v1375
      %v1475 = vpop.permute.xlu0 %1474
      %1477 = vset.pattern.permute.xlu0 2
      %1478 = vperm.xlu0 %1477, %v1376
      %v1479 = vpop.permute.xlu0 %1478
      %v1481 = vmul.f32 %v1377, %v1475
      %v1482 = vmul.f32 %v1378, %v1475
      %v1483 = vmul.f32 %v1379, %v1475
      %v1484 = vmul.f32 %v1380, %v1475
      %v1485 = vmul.f32 %v1381, %v1479
      %v1486 = vmul.f32 %v1382, %v1479
      %v1487 = vmul.f32 %v1383, %v1479
      %v1488 = vmul.f32 %v1384, %v1479
      %1497 = vrot.lane.b32.xlu0 %v1481, 126
      %v1498 = vpop.permute.xlu0 %1497
      %1499 = vrot.lane.b32.xlu0 %v1482, 126
      %v1500 = vpop.permute.xlu0 %1499
      %1501 = vrot.lane.b32.xlu0 %v1483, 126
      %v1502 = vpop.permute.xlu0 %1501
      %1503 = vrot.lane.b32.xlu0 %v1484, 126
      %v1504 = vpop.permute.xlu0 %1503
      %1505 = vrot.lane.b32.xlu0 %v1485, 126
      %v1506 = vpop.permute.xlu0 %1505
      %1507 = vrot.lane.b32.xlu0 %v1486, 126
      %v1508 = vpop.permute.xlu0 %1507
      %1509 = vrot.lane.b32.xlu0 %v1487, 126
      %v1510 = vpop.permute.xlu0 %1509
      %1511 = vrot.lane.b32.xlu0 %v1488, 126
      %v1512 = vpop.permute.xlu0 %1511
      %vm1513 = vcmask 1031168
      %v1514 = vsel %vm1513, %v1498, %v1500
      %v1515 = vsel %vm1513, %v1500, %v1502
      %v1516 = vsel %vm1513, %v1502, %v1504
      %v1517 = vsel %vm1513, %v1506, %v1508
      %v1518 = vsel %vm1513, %v1508, %v1510
      %v1519 = vsel %vm1513, %v1510, %v1512
      %v1528 = vadd.f32 %v1465, %v1514
      %v1529 = vadd.f32 %v1466, %v1515
      %v1530 = vadd.f32 %v1467, %v1516
      %v1531 = vadd.f32 %v1468, %v1504
      %v1532 = vadd.f32 %v1469, %v1517
      %v1533 = vadd.f32 %v1470, %v1518
      %v1534 = vadd.f32 %v1471, %v1519
      %v1535 = vadd.f32 %v1472, %v1512
      %1536 = vset.pattern.permute.xlu0 3
      %1537 = vperm.xlu0 %1536, %v1375
      %v1538 = vpop.permute.xlu0 %1537
      %1540 = vset.pattern.permute.xlu0 3
      %1541 = vperm.xlu0 %1540, %v1376
      %v1542 = vpop.permute.xlu0 %1541
      %v1544 = vmul.f32 %v1377, %v1538
      %v1545 = vmul.f32 %v1378, %v1538
      %v1546 = vmul.f32 %v1379, %v1538
      %v1547 = vmul.f32 %v1380, %v1538
      %v1548 = vmul.f32 %v1381, %v1542
      %v1549 = vmul.f32 %v1382, %v1542
      %v1550 = vmul.f32 %v1383, %v1542
      %v1551 = vmul.f32 %v1384, %v1542
      %1560 = vrot.lane.b32.xlu0 %v1544, 125
      %v1561 = vpop.permute.xlu0 %1560
      %1562 = vrot.lane.b32.xlu0 %v1545, 125
      %v1563 = vpop.permute.xlu0 %1562
      %1564 = vrot.lane.b32.xlu0 %v1546, 125
      %v1565 = vpop.permute.xlu0 %1564
      %1566 = vrot.lane.b32.xlu0 %v1547, 125
      %v1567 = vpop.permute.xlu0 %1566
      %1568 = vrot.lane.b32.xlu0 %v1548, 125
      %v1569 = vpop.permute.xlu0 %1568
      %1570 = vrot.lane.b32.xlu0 %v1549, 125
      %v1571 = vpop.permute.xlu0 %1570
      %1572 = vrot.lane.b32.xlu0 %v1550, 125
      %v1573 = vpop.permute.xlu0 %1572
      %1574 = vrot.lane.b32.xlu0 %v1551, 125
      %v1575 = vpop.permute.xlu0 %1574
      %vm1576 = vcmask 1022976
      %v1577 = vsel %vm1576, %v1561, %v1563
      %v1578 = vsel %vm1576, %v1563, %v1565
      %v1579 = vsel %vm1576, %v1565, %v1567
      %v1580 = vsel %vm1576, %v1569, %v1571
      %v1581 = vsel %vm1576, %v1571, %v1573
      %v1582 = vsel %vm1576, %v1573, %v1575
      %v1591 = vadd.f32 %v1528, %v1577
      %v1592 = vadd.f32 %v1529, %v1578
      %v1593 = vadd.f32 %v1530, %v1579
      %v1594 = vadd.f32 %v1531, %v1567
      %v1595 = vadd.f32 %v1532, %v1580
      %v1596 = vadd.f32 %v1533, %v1581
      %v1597 = vadd.f32 %v1534, %v1582
      %v1598 = vadd.f32 %v1535, %v1575
      %1599 = vset.pattern.permute.xlu0 4
      %1600 = vperm.xlu0 %1599, %v1375
      %v1601 = vpop.permute.xlu0 %1600
      %1603 = vset.pattern.permute.xlu0 4
      %1604 = vperm.xlu0 %1603, %v1376
      %v1605 = vpop.permute.xlu0 %1604
      %v1607 = vmul.f32 %v1377, %v1601
      %v1608 = vmul.f32 %v1378, %v1601
      %v1609 = vmul.f32 %v1379, %v1601
      %v1610 = vmul.f32 %v1380, %v1601
      %v1611 = vmul.f32 %v1381, %v1605
      %v1612 = vmul.f32 %v1382, %v1605
      %v1613 = vmul.f32 %v1383, %v1605
      %v1614 = vmul.f32 %v1384, %v1605
      %1623 = vrot.lane.b32.xlu0 %v1607, 124
      %v1624 = vpop.permute.xlu0 %1623
      %1625 = vrot.lane.b32.xlu0 %v1608, 124
      %v1626 = vpop.permute.xlu0 %1625
      %1627 = vrot.lane.b32.xlu0 %v1609, 124
      %v1628 = vpop.permute.xlu0 %1627
      %1629 = vrot.lane.b32.xlu0 %v1610, 124
      %v1630 = vpop.permute.xlu0 %1629
      %1631 = vrot.lane.b32.xlu0 %v1611, 124
      %v1632 = vpop.permute.xlu0 %1631
      %1633 = vrot.lane.b32.xlu0 %v1612, 124
      %v1634 = vpop.permute.xlu0 %1633
      %1635 = vrot.lane.b32.xlu0 %v1613, 124
      %v1636 = vpop.permute.xlu0 %1635
      %1637 = vrot.lane.b32.xlu0 %v1614, 124
      %v1638 = vpop.permute.xlu0 %1637
      %vm1639 = vcmask 1014784
      %v1640 = vsel %vm1639, %v1624, %v1626
      %v1641 = vsel %vm1639, %v1626, %v1628
      %v1642 = vsel %vm1639, %v1628, %v1630
      %v1643 = vsel %vm1639, %v1632, %v1634
      %v1644 = vsel %vm1639, %v1634, %v1636
      %v1645 = vsel %vm1639, %v1636, %v1638
      %v1654 = vadd.f32 %v1591, %v1640
      %v1655 = vadd.f32 %v1592, %v1641
      %v1656 = vadd.f32 %v1593, %v1642
      %v1657 = vadd.f32 %v1594, %v1630
      %v1658 = vadd.f32 %v1595, %v1643
      %v1659 = vadd.f32 %v1596, %v1644
      %v1660 = vadd.f32 %v1597, %v1645
      %v1661 = vadd.f32 %v1598, %v1638
      %1662 = vset.pattern.permute.xlu0 5
      %1663 = vperm.xlu0 %1662, %v1375
      %v1664 = vpop.permute.xlu0 %1663
      %1666 = vset.pattern.permute.xlu0 5
      %1667 = vperm.xlu0 %1666, %v1376
      %v1668 = vpop.permute.xlu0 %1667
      %v1670 = vmul.f32 %v1377, %v1664
      %v1671 = vmul.f32 %v1378, %v1664
      %v1672 = vmul.f32 %v1379, %v1664
      %v1673 = vmul.f32 %v1380, %v1664
      %v1674 = vmul.f32 %v1381, %v1668
      %v1675 = vmul.f32 %v1382, %v1668
      %v1676 = vmul.f32 %v1383, %v1668
      %v1677 = vmul.f32 %v1384, %v1668
      %1686 = vrot.lane.b32.xlu0 %v1670, 100
      %v1687 = vpop.permute.xlu0 %1686
      %1688 = vrot.lane.b32.xlu0 %v1671, 100
      %v1689 = vpop.permute.xlu0 %1688
      %1690 = vrot.lane.b32.xlu0 %v1672, 100
      %v1691 = vpop.permute.xlu0 %1690
      %1692 = vrot.lane.b32.xlu0 %v1673, 100
      %v1693 = vpop.permute.xlu0 %1692
      %1694 = vrot.lane.b32.xlu0 %v1674, 100
      %v1695 = vpop.permute.xlu0 %1694
      %1696 = vrot.lane.b32.xlu0 %v1675, 100
      %v1697 = vpop.permute.xlu0 %1696
      %1698 = vrot.lane.b32.xlu0 %v1676, 100
      %v1699 = vpop.permute.xlu0 %1698
      %1700 = vrot.lane.b32.xlu0 %v1677, 100
      %v1701 = vpop.permute.xlu0 %1700
      %v1702 = vsel %vm556, %v1687, %v1689
      %v1703 = vsel %vm556, %v1689, %v1691
      %v1704 = vsel %vm556, %v1691, %v1693
      %v1705 = vsel %vm556, %v1695, %v1697
      %v1706 = vsel %vm556, %v1697, %v1699
      %v1707 = vsel %vm556, %v1699, %v1701
      %v1716 = vadd.f32 %v1654, %v1702
      %v1717 = vadd.f32 %v1655, %v1703
      %v1718 = vadd.f32 %v1656, %v1704
      %v1719 = vadd.f32 %v1657, %v1693
      %v1720 = vadd.f32 %v1658, %v1705
      %v1721 = vadd.f32 %v1659, %v1706
      %v1722 = vadd.f32 %v1660, %v1707
      %v1723 = vadd.f32 %v1661, %v1701
      %1724 = vset.pattern.permute.xlu0 6
      %1725 = vperm.xlu0 %1724, %v1375
      %v1726 = vpop.permute.xlu0 %1725
      %1728 = vset.pattern.permute.xlu0 6
      %1729 = vperm.xlu0 %1728, %v1376
      %v1730 = vpop.permute.xlu0 %1729
      %v1732 = vmul.f32 %v1377, %v1726
      %v1733 = vmul.f32 %v1378, %v1726
      %v1734 = vmul.f32 %v1379, %v1726
      %v1735 = vmul.f32 %v1380, %v1726
      %v1736 = vmul.f32 %v1381, %v1730
      %v1737 = vmul.f32 %v1382, %v1730
      %v1738 = vmul.f32 %v1383, %v1730
      %v1739 = vmul.f32 %v1384, %v1730
      %1748 = vrot.lane.b32.xlu0 %v1732, 99
      %v1749 = vpop.permute.xlu0 %1748
      %1750 = vrot.lane.b32.xlu0 %v1733, 99
      %v1751 = vpop.permute.xlu0 %1750
      %1752 = vrot.lane.b32.xlu0 %v1734, 99
      %v1753 = vpop.permute.xlu0 %1752
      %1754 = vrot.lane.b32.xlu0 %v1735, 99
      %v1755 = vpop.permute.xlu0 %1754
      %1756 = vrot.lane.b32.xlu0 %v1736, 99
      %v1757 = vpop.permute.xlu0 %1756
      %1758 = vrot.lane.b32.xlu0 %v1737, 99
      %v1759 = vpop.permute.xlu0 %1758
      %1760 = vrot.lane.b32.xlu0 %v1738, 99
      %v1761 = vpop.permute.xlu0 %1760
      %1762 = vrot.lane.b32.xlu0 %v1739, 99
      %v1763 = vpop.permute.xlu0 %1762
      %v1764 = vsel %vm633, %v1749, %v1751
      %v1765 = vsel %vm633, %v1751, %v1753
      %v1766 = vsel %vm633, %v1753, %v1755
      %v1767 = vsel %vm633, %v1757, %v1759
      %v1768 = vsel %vm633, %v1759, %v1761
      %v1769 = vsel %vm633, %v1761, %v1763
      %v1778 = vadd.f32 %v1716, %v1764
      %v1779 = vadd.f32 %v1717, %v1765
      %v1780 = vadd.f32 %v1718, %v1766
      %v1781 = vadd.f32 %v1719, %v1755
      %v1782 = vadd.f32 %v1720, %v1767
      %v1783 = vadd.f32 %v1721, %v1768
      %v1784 = vadd.f32 %v1722, %v1769
      %v1785 = vadd.f32 %v1723, %v1763
      %1786 = vset.pattern.permute.xlu0 7
      %1787 = vperm.xlu0 %1786, %v1375
      %v1788 = vpop.permute.xlu0 %1787
      %1790 = vset.pattern.permute.xlu0 7
      %1791 = vperm.xlu0 %1790, %v1376
      %v1792 = vpop.permute.xlu0 %1791
      %v1794 = vmul.f32 %v1377, %v1788
      %v1795 = vmul.f32 %v1378, %v1788
      %v1796 = vmul.f32 %v1379, %v1788
      %v1797 = vmul.f32 %v1380, %v1788
      %v1798 = vmul.f32 %v1381, %v1792
      %v1799 = vmul.f32 %v1382, %v1792
      %v1800 = vmul.f32 %v1383, %v1792
      %v1801 = vmul.f32 %v1384, %v1792
      %1810 = vrot.lane.b32.xlu0 %v1794, 98
      %v1811 = vpop.permute.xlu0 %1810
      %1812 = vrot.lane.b32.xlu0 %v1795, 98
      %v1813 = vpop.permute.xlu0 %1812
      %1814 = vrot.lane.b32.xlu0 %v1796, 98
      %v1815 = vpop.permute.xlu0 %1814
      %1816 = vrot.lane.b32.xlu0 %v1797, 98
      %v1817 = vpop.permute.xlu0 %1816
      %1818 = vrot.lane.b32.xlu0 %v1798, 98
      %v1819 = vpop.permute.xlu0 %1818
      %1820 = vrot.lane.b32.xlu0 %v1799, 98
      %v1821 = vpop.permute.xlu0 %1820
      %1822 = vrot.lane.b32.xlu0 %v1800, 98
      %v1823 = vpop.permute.xlu0 %1822
      %1824 = vrot.lane.b32.xlu0 %v1801, 98
      %v1825 = vpop.permute.xlu0 %1824
      %vm1826 = vcmask 801792
      %v1827 = vsel %vm1826, %v1811, %v1813
      %v1828 = vsel %vm1826, %v1813, %v1815
      %v1829 = vsel %vm1826, %v1815, %v1817
      %v1830 = vsel %vm1826, %v1819, %v1821
      %v1831 = vsel %vm1826, %v1821, %v1823
      %v1832 = vsel %vm1826, %v1823, %v1825
      %v1841 = vadd.f32 %v1778, %v1827
      %v1842 = vadd.f32 %v1779, %v1828
      %v1843 = vadd.f32 %v1780, %v1829
      %v1844 = vadd.f32 %v1781, %v1817
      %v1845 = vadd.f32 %v1782, %v1830
      %v1846 = vadd.f32 %v1783, %v1831
      %v1847 = vadd.f32 %v1784, %v1832
      %v1848 = vadd.f32 %v1785, %v1825
      %1849 = vset.pattern.permute.xlu0 8
      %1850 = vperm.xlu0 %1849, %v1375
      %v1851 = vpop.permute.xlu0 %1850
      %1853 = vset.pattern.permute.xlu0 8
      %1854 = vperm.xlu0 %1853, %v1376
      %v1855 = vpop.permute.xlu0 %1854
      %v1857 = vmul.f32 %v1377, %v1851
      %v1858 = vmul.f32 %v1378, %v1851
      %v1859 = vmul.f32 %v1379, %v1851
      %v1860 = vmul.f32 %v1380, %v1851
      %v1861 = vmul.f32 %v1381, %v1855
      %v1862 = vmul.f32 %v1382, %v1855
      %v1863 = vmul.f32 %v1383, %v1855
      %v1864 = vmul.f32 %v1384, %v1855
      %1873 = vrot.lane.b32.xlu0 %v1857, 97
      %v1874 = vpop.permute.xlu0 %1873
      %1875 = vrot.lane.b32.xlu0 %v1858, 97
      %v1876 = vpop.permute.xlu0 %1875
      %1877 = vrot.lane.b32.xlu0 %v1859, 97
      %v1878 = vpop.permute.xlu0 %1877
      %1879 = vrot.lane.b32.xlu0 %v1860, 97
      %v1880 = vpop.permute.xlu0 %1879
      %1881 = vrot.lane.b32.xlu0 %v1861, 97
      %v1882 = vpop.permute.xlu0 %1881
      %1883 = vrot.lane.b32.xlu0 %v1862, 97
      %v1884 = vpop.permute.xlu0 %1883
      %1885 = vrot.lane.b32.xlu0 %v1863, 97
      %v1886 = vpop.permute.xlu0 %1885
      %1887 = vrot.lane.b32.xlu0 %v1864, 97
      %v1888 = vpop.permute.xlu0 %1887
      %vm1889 = vcmask 793600
      %v1890 = vsel %vm1889, %v1874, %v1876
      %v1891 = vsel %vm1889, %v1876, %v1878
      %v1892 = vsel %vm1889, %v1878, %v1880
      %v1893 = vsel %vm1889, %v1882, %v1884
      %v1894 = vsel %vm1889, %v1884, %v1886
      %v1895 = vsel %vm1889, %v1886, %v1888
      %v1904 = vadd.f32 %v1841, %v1890
      %v1905 = vadd.f32 %v1842, %v1891
      %v1906 = vadd.f32 %v1843, %v1892
      %v1907 = vadd.f32 %v1844, %v1880
      %v1908 = vadd.f32 %v1845, %v1893
      %v1909 = vadd.f32 %v1846, %v1894
      %v1910 = vadd.f32 %v1847, %v1895
      %v1911 = vadd.f32 %v1848, %v1888
      %1912 = vset.pattern.permute.xlu0 9
      %1913 = vperm.xlu0 %1912, %v1375
      %v1914 = vpop.permute.xlu0 %1913
      %1916 = vset.pattern.permute.xlu0 9
      %1917 = vperm.xlu0 %1916, %v1376
      %v1918 = vpop.permute.xlu0 %1917
      %v1920 = vmul.f32 %v1377, %v1914
      %v1921 = vmul.f32 %v1378, %v1914
      %v1922 = vmul.f32 %v1379, %v1914
      %v1923 = vmul.f32 %v1380, %v1914
      %v1924 = vmul.f32 %v1381, %v1918
      %v1925 = vmul.f32 %v1382, %v1918
      %v1926 = vmul.f32 %v1383, %v1918
      %v1927 = vmul.f32 %v1384, %v1918
      %1936 = vrot.lane.b32.xlu0 %v1920, 96
      %v1937 = vpop.permute.xlu0 %1936
      %1938 = vrot.lane.b32.xlu0 %v1921, 96
      %v1939 = vpop.permute.xlu0 %1938
      %1940 = vrot.lane.b32.xlu0 %v1922, 96
      %v1941 = vpop.permute.xlu0 %1940
      %1942 = vrot.lane.b32.xlu0 %v1923, 96
      %v1943 = vpop.permute.xlu0 %1942
      %1944 = vrot.lane.b32.xlu0 %v1924, 96
      %v1945 = vpop.permute.xlu0 %1944
      %1946 = vrot.lane.b32.xlu0 %v1925, 96
      %v1947 = vpop.permute.xlu0 %1946
      %1948 = vrot.lane.b32.xlu0 %v1926, 96
      %v1949 = vpop.permute.xlu0 %1948
      %1950 = vrot.lane.b32.xlu0 %v1927, 96
      %v1951 = vpop.permute.xlu0 %1950
      %vm1952 = vcmask 785408
      %v1953 = vsel %vm1952, %v1937, %v1939
      %v1954 = vsel %vm1952, %v1939, %v1941
      %v1955 = vsel %vm1952, %v1941, %v1943
      %v1956 = vsel %vm1952, %v1945, %v1947
      %v1957 = vsel %vm1952, %v1947, %v1949
      %v1958 = vsel %vm1952, %v1949, %v1951
      %v1967 = vadd.f32 %v1904, %v1953
      %v1968 = vadd.f32 %v1905, %v1954
      %v1969 = vadd.f32 %v1906, %v1955
      %v1970 = vadd.f32 %v1907, %v1943
      %v1971 = vadd.f32 %v1908, %v1956
      %v1972 = vadd.f32 %v1909, %v1957
      %v1973 = vadd.f32 %v1910, %v1958
      %v1974 = vadd.f32 %v1911, %v1951
      %1975 = vset.pattern.permute.xlu0 10
      %1976 = vperm.xlu0 %1975, %v1375
      %v1977 = vpop.permute.xlu0 %1976
      %1979 = vset.pattern.permute.xlu0 10
      %1980 = vperm.xlu0 %1979, %v1376
      %v1981 = vpop.permute.xlu0 %1980
      %v1983 = vmul.f32 %v1377, %v1977
      %v1984 = vmul.f32 %v1378, %v1977
      %v1985 = vmul.f32 %v1379, %v1977
      %v1986 = vmul.f32 %v1380, %v1977
      %v1987 = vmul.f32 %v1381, %v1981
      %v1988 = vmul.f32 %v1382, %v1981
      %v1989 = vmul.f32 %v1383, %v1981
      %v1990 = vmul.f32 %v1384, %v1981
      %1999 = vrot.lane.b32.xlu0 %v1983, 72
      %v2000 = vpop.permute.xlu0 %1999
      %2001 = vrot.lane.b32.xlu0 %v1984, 72
      %v2002 = vpop.permute.xlu0 %2001
      %2003 = vrot.lane.b32.xlu0 %v1985, 72
      %v2004 = vpop.permute.xlu0 %2003
      %2005 = vrot.lane.b32.xlu0 %v1986, 72
      %v2006 = vpop.permute.xlu0 %2005
      %2007 = vrot.lane.b32.xlu0 %v1987, 72
      %v2008 = vpop.permute.xlu0 %2007
      %2009 = vrot.lane.b32.xlu0 %v1988, 72
      %v2010 = vpop.permute.xlu0 %2009
      %2011 = vrot.lane.b32.xlu0 %v1989, 72
      %v2012 = vpop.permute.xlu0 %2011
      %2013 = vrot.lane.b32.xlu0 %v1990, 72
      %v2014 = vpop.permute.xlu0 %2013
      %v2015 = vsel %vm1283, %v2000, %v2002
      %v2016 = vsel %vm1283, %v2002, %v2004
      %v2017 = vsel %vm1283, %v2004, %v2006
      %v2018 = vsel %vm1283, %v2008, %v2010
      %v2019 = vsel %vm1283, %v2010, %v2012
      %v2020 = vsel %vm1283, %v2012, %v2014
      %v2029 = vadd.f32 %v1967, %v2015
      %v2030 = vadd.f32 %v1968, %v2016
      %v2031 = vadd.f32 %v1969, %v2017
      %v2032 = vadd.f32 %v1970, %v2006
      %v2033 = vadd.f32 %v1971, %v2018
      %v2034 = vadd.f32 %v1972, %v2019
      %v2035 = vadd.f32 %v1973, %v2020
      %v2036 = vadd.f32 %v1974, %v2014
      %2037 = vset.pattern.permute.xlu0 11
      %2038 = vperm.xlu0 %2037, %v1375
      %v2039 = vpop.permute.xlu0 %2038
      %2041 = vset.pattern.permute.xlu0 11
      %2042 = vperm.xlu0 %2041, %v1376
      %v2043 = vpop.permute.xlu0 %2042
      %v2045 = vmul.f32 %v1377, %v2039
      %v2046 = vmul.f32 %v1378, %v2039
      %v2047 = vmul.f32 %v1379, %v2039
      %v2048 = vmul.f32 %v1380, %v2039
      %v2049 = vmul.f32 %v1381, %v2043
      %v2050 = vmul.f32 %v1382, %v2043
      %v2051 = vmul.f32 %v1383, %v2043
      %v2052 = vmul.f32 %v1384, %v2043
      %2061 = vrot.lane.b32.xlu0 %v2045, 71
      %v2062 = vpop.permute.xlu0 %2061
      %2063 = vrot.lane.b32.xlu0 %v2046, 71
      %v2064 = vpop.permute.xlu0 %2063
      %2065 = vrot.lane.b32.xlu0 %v2047, 71
      %v2066 = vpop.permute.xlu0 %2065
      %2067 = vrot.lane.b32.xlu0 %v2048, 71
      %v2068 = vpop.permute.xlu0 %2067
      %2069 = vrot.lane.b32.xlu0 %v2049, 71
      %v2070 = vpop.permute.xlu0 %2069
      %2071 = vrot.lane.b32.xlu0 %v2050, 71
      %v2072 = vpop.permute.xlu0 %2071
      %2073 = vrot.lane.b32.xlu0 %v2051, 71
      %v2074 = vpop.permute.xlu0 %2073
      %2075 = vrot.lane.b32.xlu0 %v2052, 71
      %v2076 = vpop.permute.xlu0 %2075
      %vm2077 = vcmask 580608
      %v2078 = vsel %vm2077, %v2062, %v2064
      %v2079 = vsel %vm2077, %v2064, %v2066
      %v2080 = vsel %vm2077, %v2066, %v2068
      %v2081 = vsel %vm2077, %v2070, %v2072
      %v2082 = vsel %vm2077, %v2072, %v2074
      %v2083 = vsel %vm2077, %v2074, %v2076
      %v2092 = vadd.f32 %v2029, %v2078
      %v2093 = vadd.f32 %v2030, %v2079
      %v2094 = vadd.f32 %v2031, %v2080
      %v2095 = vadd.f32 %v2032, %v2068
      %v2096 = vadd.f32 %v2033, %v2081
      %v2097 = vadd.f32 %v2034, %v2082
      %v2098 = vadd.f32 %v2035, %v2083
      %v2099 = vadd.f32 %v2036, %v2076
      %2100 = vset.pattern.permute.xlu0 12
      %2101 = vperm.xlu0 %2100, %v1375
      %v2102 = vpop.permute.xlu0 %2101
      %2104 = vset.pattern.permute.xlu0 12
      %2105 = vperm.xlu0 %2104, %v1376
      %v2106 = vpop.permute.xlu0 %2105
      %v2108 = vmul.f32 %v1377, %v2102
      %v2109 = vmul.f32 %v1378, %v2102
      %v2110 = vmul.f32 %v1379, %v2102
      %v2111 = vmul.f32 %v1380, %v2102
      %v2112 = vmul.f32 %v1381, %v2106
      %v2113 = vmul.f32 %v1382, %v2106
      %v2114 = vmul.f32 %v1383, %v2106
      %v2115 = vmul.f32 %v1384, %v2106
      %2124 = vrot.lane.b32.xlu0 %v2108, 70
      %v2125 = vpop.permute.xlu0 %2124
      %2126 = vrot.lane.b32.xlu0 %v2109, 70
      %v2127 = vpop.permute.xlu0 %2126
      %2128 = vrot.lane.b32.xlu0 %v2110, 70
      %v2129 = vpop.permute.xlu0 %2128
      %2130 = vrot.lane.b32.xlu0 %v2111, 70
      %v2131 = vpop.permute.xlu0 %2130
      %2132 = vrot.lane.b32.xlu0 %v2112, 70
      %v2133 = vpop.permute.xlu0 %2132
      %2134 = vrot.lane.b32.xlu0 %v2113, 70
      %v2135 = vpop.permute.xlu0 %2134
      %2136 = vrot.lane.b32.xlu0 %v2114, 70
      %v2137 = vpop.permute.xlu0 %2136
      %2138 = vrot.lane.b32.xlu0 %v2115, 70
      %v2139 = vpop.permute.xlu0 %2138
      %vm2140 = vcmask 572416
      %v2141 = vsel %vm2140, %v2125, %v2127
      %v2142 = vsel %vm2140, %v2127, %v2129
      %v2143 = vsel %vm2140, %v2129, %v2131
      %v2144 = vsel %vm2140, %v2133, %v2135
      %v2145 = vsel %vm2140, %v2135, %v2137
      %v2146 = vsel %vm2140, %v2137, %v2139
      %v2155 = vadd.f32 %v2092, %v2141
      %v2156 = vadd.f32 %v2093, %v2142
      %v2157 = vadd.f32 %v2094, %v2143
      %v2158 = vadd.f32 %v2095, %v2131
      %v2159 = vadd.f32 %v2096, %v2144
      %v2160 = vadd.f32 %v2097, %v2145
      %v2161 = vadd.f32 %v2098, %v2146
      %v2162 = vadd.f32 %v2099, %v2139
      %2163 = vset.pattern.permute.xlu0 13
      %2164 = vperm.xlu0 %2163, %v1375
      %v2165 = vpop.permute.xlu0 %2164
      %2167 = vset.pattern.permute.xlu0 13
      %2168 = vperm.xlu0 %2167, %v1376
      %v2169 = vpop.permute.xlu0 %2168
      %v2171 = vmul.f32 %v1377, %v2165
      %v2172 = vmul.f32 %v1378, %v2165
      %v2173 = vmul.f32 %v1379, %v2165
      %v2174 = vmul.f32 %v1380, %v2165
      %v2175 = vmul.f32 %v1381, %v2169
      %v2176 = vmul.f32 %v1382, %v2169
      %v2177 = vmul.f32 %v1383, %v2169
      %v2178 = vmul.f32 %v1384, %v2169
      %2187 = vrot.lane.b32.xlu0 %v2171, 69
      %v2188 = vpop.permute.xlu0 %2187
      %2189 = vrot.lane.b32.xlu0 %v2172, 69
      %v2190 = vpop.permute.xlu0 %2189
      %2191 = vrot.lane.b32.xlu0 %v2173, 69
      %v2192 = vpop.permute.xlu0 %2191
      %2193 = vrot.lane.b32.xlu0 %v2174, 69
      %v2194 = vpop.permute.xlu0 %2193
      %2195 = vrot.lane.b32.xlu0 %v2175, 69
      %v2196 = vpop.permute.xlu0 %2195
      %2197 = vrot.lane.b32.xlu0 %v2176, 69
      %v2198 = vpop.permute.xlu0 %2197
      %2199 = vrot.lane.b32.xlu0 %v2177, 69
      %v2200 = vpop.permute.xlu0 %2199
      %2201 = vrot.lane.b32.xlu0 %v2178, 69
      %v2202 = vpop.permute.xlu0 %2201
      %vm2203 = vcmask 564224
      %v2204 = vsel %vm2203, %v2188, %v2190
      %v2205 = vsel %vm2203, %v2190, %v2192
      %v2206 = vsel %vm2203, %v2192, %v2194
      %v2207 = vsel %vm2203, %v2196, %v2198
      %v2208 = vsel %vm2203, %v2198, %v2200
      %v2209 = vsel %vm2203, %v2200, %v2202
      %v2218 = vadd.f32 %v2155, %v2204
      %v2219 = vadd.f32 %v2156, %v2205
      %v2220 = vadd.f32 %v2157, %v2206
      %v2221 = vadd.f32 %v2158, %v2194
      %v2222 = vadd.f32 %v2159, %v2207
      %v2223 = vadd.f32 %v2160, %v2208
      %v2224 = vadd.f32 %v2161, %v2209
      %v2225 = vadd.f32 %v2162, %v2202
      %2226 = vset.pattern.permute.xlu0 14
      %2227 = vperm.xlu0 %2226, %v1375
      %v2228 = vpop.permute.xlu0 %2227
      %2230 = vset.pattern.permute.xlu0 14
      %2231 = vperm.xlu0 %2230, %v1376
      %v2232 = vpop.permute.xlu0 %2231
      %v2234 = vmul.f32 %v1377, %v2228
      %v2235 = vmul.f32 %v1378, %v2228
      %v2236 = vmul.f32 %v1379, %v2228
      %v2237 = vmul.f32 %v1380, %v2228
      %v2238 = vmul.f32 %v1381, %v2232
      %v2239 = vmul.f32 %v1382, %v2232
      %v2240 = vmul.f32 %v1383, %v2232
      %v2241 = vmul.f32 %v1384, %v2232
      %2250 = vrot.lane.b32.xlu0 %v2234, 68
      %v2251 = vpop.permute.xlu0 %2250
      %2252 = vrot.lane.b32.xlu0 %v2235, 68
      %v2253 = vpop.permute.xlu0 %2252
      %2254 = vrot.lane.b32.xlu0 %v2236, 68
      %v2255 = vpop.permute.xlu0 %2254
      %2256 = vrot.lane.b32.xlu0 %v2237, 68
      %v2257 = vpop.permute.xlu0 %2256
      %2258 = vrot.lane.b32.xlu0 %v2238, 68
      %v2259 = vpop.permute.xlu0 %2258
      %2260 = vrot.lane.b32.xlu0 %v2239, 68
      %v2261 = vpop.permute.xlu0 %2260
      %2262 = vrot.lane.b32.xlu0 %v2240, 68
      %v2263 = vpop.permute.xlu0 %2262
      %2264 = vrot.lane.b32.xlu0 %v2241, 68
      %v2265 = vpop.permute.xlu0 %2264
      %vm2266 = vcmask 556032
      %v2267 = vsel %vm2266, %v2251, %v2253
      %v2268 = vsel %vm2266, %v2253, %v2255
      %v2269 = vsel %vm2266, %v2255, %v2257
      %v2270 = vsel %vm2266, %v2259, %v2261
      %v2271 = vsel %vm2266, %v2261, %v2263
      %v2272 = vsel %vm2266, %v2263, %v2265
      %v2281 = vadd.f32 %v2218, %v2267
      %v2282 = vadd.f32 %v2219, %v2268
      %v2283 = vadd.f32 %v2220, %v2269
      %v2284 = vadd.f32 %v2221, %v2257
      %v2285 = vadd.f32 %v2222, %v2270
      %v2286 = vadd.f32 %v2223, %v2271
      %v2287 = vadd.f32 %v2224, %v2272
      %v2288 = vadd.f32 %v2225, %v2265
      %2289 = vset.pattern.permute.xlu0 15
      %2290 = vperm.xlu0 %2289, %v1375
      %v2291 = vpop.permute.xlu0 %2290
      %2293 = vset.pattern.permute.xlu0 15
      %2294 = vperm.xlu0 %2293, %v1376
      %v2295 = vpop.permute.xlu0 %2294
      %v2297 = vmul.f32 %v1378, %v2291
      %v2298 = vmul.f32 %v1379, %v2291
      %v2299 = vmul.f32 %v1380, %v2291
      %v2300 = vmul.f32 %v1382, %v2295
      %v2301 = vmul.f32 %v1383, %v2295
      %v2302 = vmul.f32 %v1384, %v2295
      %2309 = vrot.lane.b32.xlu0 %v2297, 44
      %v2310 = vpop.permute.xlu0 %2309
      %2311 = vrot.lane.b32.xlu0 %v2298, 44
      %v2312 = vpop.permute.xlu0 %2311
      %2313 = vrot.lane.b32.xlu0 %v2299, 44
      %v2314 = vpop.permute.xlu0 %2313
      %2315 = vrot.lane.b32.xlu0 %v2300, 44
      %v2316 = vpop.permute.xlu0 %2315
      %2317 = vrot.lane.b32.xlu0 %v2301, 44
      %v2318 = vpop.permute.xlu0 %2317
      %2319 = vrot.lane.b32.xlu0 %v2302, 44
      %v2320 = vpop.permute.xlu0 %2319
      %vm2321 = vcmask 359424
      %v2322 = vsel %vm2321, %v2310, %v2312
      %v2323 = vsel %vm2321, %v2312, %v2314
      %v2324 = vsel %vm2321, %v2316, %v2318
      %v2325 = vsel %vm2321, %v2318, %v2320
      %v2334 = vadd.f32 %v2281, %v2310
      %v2335 = vadd.f32 %v2282, %v2322
      %v2336 = vadd.f32 %v2283, %v2323
      %v2337 = vadd.f32 %v2284, %v2314
      %v2338 = vadd.f32 %v2285, %v2316
      %v2339 = vadd.f32 %v2286, %v2324
      %v2340 = vadd.f32 %v2287, %v2325
      %v2341 = vadd.f32 %v2288, %v2320
      %2342 = vset.pattern.permute.xlu0 16
      %2343 = vperm.xlu0 %2342, %v1375
      %v2344 = vpop.permute.xlu0 %2343
      %2346 = vset.pattern.permute.xlu0 16
      %2347 = vperm.xlu0 %2346, %v1376
      %v2348 = vpop.permute.xlu0 %2347
      %v2350 = vmul.f32 %v1378, %v2344
      %v2351 = vmul.f32 %v1379, %v2344
      %v2352 = vmul.f32 %v1380, %v2344
      %v2353 = vmul.f32 %v1382, %v2348
      %v2354 = vmul.f32 %v1383, %v2348
      %v2355 = vmul.f32 %v1384, %v2348
      %2362 = vrot.lane.b32.xlu0 %v2350, 43
      %v2363 = vpop.permute.xlu0 %2362
      %2364 = vrot.lane.b32.xlu0 %v2351, 43
      %v2365 = vpop.permute.xlu0 %2364
      %2366 = vrot.lane.b32.xlu0 %v2352, 43
      %v2367 = vpop.permute.xlu0 %2366
      %2368 = vrot.lane.b32.xlu0 %v2353, 43
      %v2369 = vpop.permute.xlu0 %2368
      %2370 = vrot.lane.b32.xlu0 %v2354, 43
      %v2371 = vpop.permute.xlu0 %2370
      %2372 = vrot.lane.b32.xlu0 %v2355, 43
      %v2373 = vpop.permute.xlu0 %2372
      %vm2374 = vcmask 351232
      %v2375 = vsel %vm2374, %v2363, %v2365
      %v2376 = vsel %vm2374, %v2365, %v2367
      %v2377 = vsel %vm2374, %v2369, %v2371
      %v2378 = vsel %vm2374, %v2371, %v2373
      %v2387 = vadd.f32 %v2334, %v2363
      %v2388 = vadd.f32 %v2335, %v2375
      %v2389 = vadd.f32 %v2336, %v2376
      %v2390 = vadd.f32 %v2337, %v2367
      %v2391 = vadd.f32 %v2338, %v2369
      %v2392 = vadd.f32 %v2339, %v2377
      %v2393 = vadd.f32 %v2340, %v2378
      %v2394 = vadd.f32 %v2341, %v2373
      %2395 = vset.pattern.permute.xlu0 17
      %2396 = vperm.xlu0 %2395, %v1375
      %v2397 = vpop.permute.xlu0 %2396
      %2399 = vset.pattern.permute.xlu0 17
      %2400 = vperm.xlu0 %2399, %v1376
      %v2401 = vpop.permute.xlu0 %2400
      %v2403 = vmul.f32 %v1378, %v2397
      %v2404 = vmul.f32 %v1379, %v2397
      %v2405 = vmul.f32 %v1380, %v2397
      %v2406 = vmul.f32 %v1382, %v2401
      %v2407 = vmul.f32 %v1383, %v2401
      %v2408 = vmul.f32 %v1384, %v2401
      %2415 = vrot.lane.b32.xlu0 %v2403, 42
      %v2416 = vpop.permute.xlu0 %2415
      %2417 = vrot.lane.b32.xlu0 %v2404, 42
      %v2418 = vpop.permute.xlu0 %2417
      %2419 = vrot.lane.b32.xlu0 %v2405, 42
      %v2420 = vpop.permute.xlu0 %2419
      %2421 = vrot.lane.b32.xlu0 %v2406, 42
      %v2422 = vpop.permute.xlu0 %2421
      %2423 = vrot.lane.b32.xlu0 %v2407, 42
      %v2424 = vpop.permute.xlu0 %2423
      %2425 = vrot.lane.b32.xlu0 %v2408, 42
      %v2426 = vpop.permute.xlu0 %2425
      %vm2427 = vcmask 343040
      %v2428 = vsel %vm2427, %v2416, %v2418
      %v2429 = vsel %vm2427, %v2418, %v2420
      %v2430 = vsel %vm2427, %v2422, %v2424
      %v2431 = vsel %vm2427, %v2424, %v2426
      %v2440 = vadd.f32 %v2387, %v2416
      %v2441 = vadd.f32 %v2388, %v2428
      %v2442 = vadd.f32 %v2389, %v2429
      %v2443 = vadd.f32 %v2390, %v2420
      %v2444 = vadd.f32 %v2391, %v2422
      %v2445 = vadd.f32 %v2392, %v2430
      %v2446 = vadd.f32 %v2393, %v2431
      %v2447 = vadd.f32 %v2394, %v2426
      %2448 = vset.pattern.permute.xlu0 18
      %2449 = vperm.xlu0 %2448, %v1375
      %v2450 = vpop.permute.xlu0 %2449
      %2452 = vset.pattern.permute.xlu0 18
      %2453 = vperm.xlu0 %2452, %v1376
      %v2454 = vpop.permute.xlu0 %2453
      %v2456 = vmul.f32 %v1378, %v2450
      %v2457 = vmul.f32 %v1379, %v2450
      %v2458 = vmul.f32 %v1380, %v2450
      %v2459 = vmul.f32 %v1382, %v2454
      %v2460 = vmul.f32 %v1383, %v2454
      %v2461 = vmul.f32 %v1384, %v2454
      %2468 = vrot.lane.b32.xlu0 %v2456, 41
      %v2469 = vpop.permute.xlu0 %2468
      %2470 = vrot.lane.b32.xlu0 %v2457, 41
      %v2471 = vpop.permute.xlu0 %2470
      %2472 = vrot.lane.b32.xlu0 %v2458, 41
      %v2473 = vpop.permute.xlu0 %2472
      %2474 = vrot.lane.b32.xlu0 %v2459, 41
      %v2475 = vpop.permute.xlu0 %2474
      %2476 = vrot.lane.b32.xlu0 %v2460, 41
      %v2477 = vpop.permute.xlu0 %2476
      %2478 = vrot.lane.b32.xlu0 %v2461, 41
      %v2479 = vpop.permute.xlu0 %2478
      %vm2480 = vcmask 334848
      %v2481 = vsel %vm2480, %v2469, %v2471
      %v2482 = vsel %vm2480, %v2471, %v2473
      %v2483 = vsel %vm2480, %v2475, %v2477
      %v2484 = vsel %vm2480, %v2477, %v2479
      %v2493 = vadd.f32 %v2440, %v2469
      %v2494 = vadd.f32 %v2441, %v2481
      %v2495 = vadd.f32 %v2442, %v2482
      %v2496 = vadd.f32 %v2443, %v2473
      %v2497 = vadd.f32 %v2444, %v2475
      %v2498 = vadd.f32 %v2445, %v2483
      %v2499 = vadd.f32 %v2446, %v2484
      %v2500 = vadd.f32 %v2447, %v2479
      %2501 = vset.pattern.permute.xlu0 19
      %2502 = vperm.xlu0 %2501, %v1375
      %v2503 = vpop.permute.xlu0 %2502
      %2505 = vset.pattern.permute.xlu0 19
      %2506 = vperm.xlu0 %2505, %v1376
      %v2507 = vpop.permute.xlu0 %2506
      %v2509 = vmul.f32 %v1378, %v2503
      %v2510 = vmul.f32 %v1379, %v2503
      %v2511 = vmul.f32 %v1380, %v2503
      %v2512 = vmul.f32 %v1382, %v2507
      %v2513 = vmul.f32 %v1383, %v2507
      %v2514 = vmul.f32 %v1384, %v2507
      %2521 = vrot.lane.b32.xlu0 %v2509, 40
      %v2522 = vpop.permute.xlu0 %2521
      %2523 = vrot.lane.b32.xlu0 %v2510, 40
      %v2524 = vpop.permute.xlu0 %2523
      %2525 = vrot.lane.b32.xlu0 %v2511, 40
      %v2526 = vpop.permute.xlu0 %2525
      %2527 = vrot.lane.b32.xlu0 %v2512, 40
      %v2528 = vpop.permute.xlu0 %2527
      %2529 = vrot.lane.b32.xlu0 %v2513, 40
      %v2530 = vpop.permute.xlu0 %2529
      %2531 = vrot.lane.b32.xlu0 %v2514, 40
      %v2532 = vpop.permute.xlu0 %2531
      %vm2533 = vcmask 326656
      %v2534 = vsel %vm2533, %v2522, %v2524
      %v2535 = vsel %vm2533, %v2524, %v2526
      %v2536 = vsel %vm2533, %v2528, %v2530
      %v2537 = vsel %vm2533, %v2530, %v2532
      %v2546 = vadd.f32 %v2493, %v2522
      %v2547 = vadd.f32 %v2494, %v2534
      %v2548 = vadd.f32 %v2495, %v2535
      %v2549 = vadd.f32 %v2496, %v2526
      %v2550 = vadd.f32 %v2497, %v2528
      %v2551 = vadd.f32 %v2498, %v2536
      %v2552 = vadd.f32 %v2499, %v2537
      %v2553 = vadd.f32 %v2500, %v2532
      %v2554 = vld [vmem:[#allocation2 + $0x8] sm:$0xff]
      %v2555 = vld [vmem:[#allocation2 + $0x10] sm:$0xff]
      %v2556 = vld [vmem:[#allocation2 + $0x18] sm:$0xff]
      %v2557 = vld [vmem:[#allocation2 + $0x20] sm:$0xff]
      %v2558 = vld [vmem:[#allocation2 + $0x30] sm:$0xf]
      %v2559 = vld [vmem:[#allocation2 + $0x38] sm:$0xf]
      %v2560 = vld [vmem:[#allocation2 + $0x40] sm:$0xf]
      %v2561 = vld [vmem:[#allocation2 + $0x48] sm:$0xf]
      %2562 = vset.pattern.permute.xlu0 20
      %2563 = vperm.xlu0 %2562, %v1375
      %v2564 = vpop.permute.xlu0 %2563
      %2566 = vset.pattern.permute.xlu0 20
      %2567 = vperm.xlu0 %2566, %v1376
      %v2568 = vpop.permute.xlu0 %2567
      %v2570 = vmul.f32 %v2554, %v2564
      %v2571 = vmul.f32 %v2555, %v2564
      %v2572 = vmul.f32 %v2556, %v2564
      %v2573 = vmul.f32 %v2557, %v2564
      %v2574 = vmul.f32 %v2558, %v2568
      %v2575 = vmul.f32 %v2559, %v2568
      %v2576 = vmul.f32 %v2560, %v2568
      %v2577 = vmul.f32 %v2561, %v2568
      %2586 = vrot.lane.b32.xlu0 %v2570, 16
      %v2587 = vpop.permute.xlu0 %2586
      %2588 = vrot.lane.b32.xlu0 %v2571, 16
      %v2589 = vpop.permute.xlu0 %2588
      %2590 = vrot.lane.b32.xlu0 %v2572, 16
      %v2591 = vpop.permute.xlu0 %2590
      %2592 = vrot.lane.b32.xlu0 %v2573, 16
      %v2593 = vpop.permute.xlu0 %2592
      %2594 = vrot.lane.b32.xlu0 %v2574, 16
      %v2595 = vpop.permute.xlu0 %2594
      %2596 = vrot.lane.b32.xlu0 %v2575, 16
      %v2597 = vpop.permute.xlu0 %2596
      %2598 = vrot.lane.b32.xlu0 %v2576, 16
      %v2599 = vpop.permute.xlu0 %2598
      %2600 = vrot.lane.b32.xlu0 %v2577, 16
      %v2601 = vpop.permute.xlu0 %2600
      %vm2602 = vcmask 130048
      %v2603 = vsel %vm2602, %v2587, %v2589
      %v2604 = vsel %vm2602, %v2589, %v2591
      %v2605 = vsel %vm2602, %v2591, %v2593
      %v2606 = vsel %vm2602, %v2595, %v2597
      %v2607 = vsel %vm2602, %v2597, %v2599
      %v2608 = vsel %vm2602, %v2599, %v2601
      %v2617 = vadd.f32 %v2546, %v2587
      %v2618 = vadd.f32 %v2547, %v2603
      %v2619 = vadd.f32 %v2548, %v2604
      %v2620 = vadd.f32 %v2549, %v2605
      %v2621 = vadd.f32 %v2550, %v2595
      %v2622 = vadd.f32 %v2551, %v2606
      %v2623 = vadd.f32 %v2552, %v2607
      %v2624 = vadd.f32 %v2553, %v2608
      %2625 = vset.pattern.permute.xlu0 21
      %2626 = vperm.xlu0 %2625, %v1375
      %v2627 = vpop.permute.xlu0 %2626
      %2629 = vset.pattern.permute.xlu0 21
      %2630 = vperm.xlu0 %2629, %v1376
      %v2631 = vpop.permute.xlu0 %2630
      %v2633 = vmul.f32 %v2554, %v2627
      %v2634 = vmul.f32 %v2555, %v2627
      %v2635 = vmul.f32 %v2556, %v2627
      %v2636 = vmul.f32 %v2557, %v2627
      %v2637 = vmul.f32 %v2558, %v2631
      %v2638 = vmul.f32 %v2559, %v2631
      %v2639 = vmul.f32 %v2560, %v2631
      %v2640 = vmul.f32 %v2561, %v2631
      %2649 = vrot.lane.b32.xlu0 %v2633, 15
      %v2650 = vpop.permute.xlu0 %2649
      %2651 = vrot.lane.b32.xlu0 %v2634, 15
      %v2652 = vpop.permute.xlu0 %2651
      %2653 = vrot.lane.b32.xlu0 %v2635, 15
      %v2654 = vpop.permute.xlu0 %2653
      %2655 = vrot.lane.b32.xlu0 %v2636, 15
      %v2656 = vpop.permute.xlu0 %2655
      %2657 = vrot.lane.b32.xlu0 %v2637, 15
      %v2658 = vpop.permute.xlu0 %2657
      %2659 = vrot.lane.b32.xlu0 %v2638, 15
      %v2660 = vpop.permute.xlu0 %2659
      %2661 = vrot.lane.b32.xlu0 %v2639, 15
      %v2662 = vpop.permute.xlu0 %2661
      %2663 = vrot.lane.b32.xlu0 %v2640, 15
      %v2664 = vpop.permute.xlu0 %2663
      %vm2665 = vcmask 121856
      %v2666 = vsel %vm2665, %v2650, %v2652
      %v2667 = vsel %vm2665, %v2652, %v2654
      %v2668 = vsel %vm2665, %v2654, %v2656
      %v2669 = vsel %vm2665, %v2658, %v2660
      %v2670 = vsel %vm2665, %v2660, %v2662
      %v2671 = vsel %vm2665, %v2662, %v2664
      %v2680 = vadd.f32 %v2617, %v2650
      %v2681 = vadd.f32 %v2618, %v2666
      %v2682 = vadd.f32 %v2619, %v2667
      %v2683 = vadd.f32 %v2620, %v2668
      %v2684 = vadd.f32 %v2621, %v2658
      %v2685 = vadd.f32 %v2622, %v2669
      %v2686 = vadd.f32 %v2623, %v2670
      %v2687 = vadd.f32 %v2624, %v2671
      %2688 = vset.pattern.permute.xlu0 22
      %2689 = vperm.xlu0 %2688, %v1375
      %v2690 = vpop.permute.xlu0 %2689
      %2692 = vset.pattern.permute.xlu0 22
      %2693 = vperm.xlu0 %2692, %v1376
      %v2694 = vpop.permute.xlu0 %2693
      %v2696 = vmul.f32 %v2554, %v2690
      %v2697 = vmul.f32 %v2555, %v2690
      %v2698 = vmul.f32 %v2556, %v2690
      %v2699 = vmul.f32 %v2557, %v2690
      %v2700 = vmul.f32 %v2558, %v2694
      %v2701 = vmul.f32 %v2559, %v2694
      %v2702 = vmul.f32 %v2560, %v2694
      %v2703 = vmul.f32 %v2561, %v2694
      %2712 = vrot.lane.b32.xlu0 %v2696, 14
      %v2713 = vpop.permute.xlu0 %2712
      %2714 = vrot.lane.b32.xlu0 %v2697, 14
      %v2715 = vpop.permute.xlu0 %2714
      %2716 = vrot.lane.b32.xlu0 %v2698, 14
      %v2717 = vpop.permute.xlu0 %2716
      %2718 = vrot.lane.b32.xlu0 %v2699, 14
      %v2719 = vpop.permute.xlu0 %2718
      %2720 = vrot.lane.b32.xlu0 %v2700, 14
      %v2721 = vpop.permute.xlu0 %2720
      %2722 = vrot.lane.b32.xlu0 %v2701, 14
      %v2723 = vpop.permute.xlu0 %2722
      %2724 = vrot.lane.b32.xlu0 %v2702, 14
      %v2725 = vpop.permute.xlu0 %2724
      %2726 = vrot.lane.b32.xlu0 %v2703, 14
      %v2727 = vpop.permute.xlu0 %2726
      %vm2728 = vcmask 113664
      %v2729 = vsel %vm2728, %v2713, %v2715
      %v2730 = vsel %vm2728, %v2715, %v2717
      %v2731 = vsel %vm2728, %v2717, %v2719
      %v2732 = vsel %vm2728, %v2721, %v2723
      %v2733 = vsel %vm2728, %v2723, %v2725
      %v2734 = vsel %vm2728, %v2725, %v2727
      %v2743 = vadd.f32 %v2680, %v2713
      %v2744 = vadd.f32 %v2681, %v2729
      %v2745 = vadd.f32 %v2682, %v2730
      %v2746 = vadd.f32 %v2683, %v2731
      %v2747 = vadd.f32 %v2684, %v2721
      %v2748 = vadd.f32 %v2685, %v2732
      %v2749 = vadd.f32 %v2686, %v2733
      %v2750 = vadd.f32 %v2687, %v2734
      %2751 = vset.pattern.permute.xlu0 23
      %2752 = vperm.xlu0 %2751, %v1375
      %v2753 = vpop.permute.xlu0 %2752
      %2755 = vset.pattern.permute.xlu0 23
      %2756 = vperm.xlu0 %2755, %v1376
      %v2757 = vpop.permute.xlu0 %2756
      %v2759 = vmul.f32 %v2554, %v2753
      %v2760 = vmul.f32 %v2555, %v2753
      %v2761 = vmul.f32 %v2556, %v2753
      %v2762 = vmul.f32 %v2557, %v2753
      %v2763 = vmul.f32 %v2558, %v2757
      %v2764 = vmul.f32 %v2559, %v2757
      %v2765 = vmul.f32 %v2560, %v2757
      %v2766 = vmul.f32 %v2561, %v2757
      %2775 = vrot.lane.b32.xlu0 %v2759, 13
      %v2776 = vpop.permute.xlu0 %2775
      %2777 = vrot.lane.b32.xlu0 %v2760, 13
      %v2778 = vpop.permute.xlu0 %2777
      %2779 = vrot.lane.b32.xlu0 %v2761, 13
      %v2780 = vpop.permute.xlu0 %2779
      %2781 = vrot.lane.b32.xlu0 %v2762, 13
      %v2782 = vpop.permute.xlu0 %2781
      %2783 = vrot.lane.b32.xlu0 %v2763, 13
      %v2784 = vpop.permute.xlu0 %2783
      %2785 = vrot.lane.b32.xlu0 %v2764, 13
      %v2786 = vpop.permute.xlu0 %2785
      %2787 = vrot.lane.b32.xlu0 %v2765, 13
      %v2788 = vpop.permute.xlu0 %2787
      %2789 = vrot.lane.b32.xlu0 %v2766, 13
      %v2790 = vpop.permute.xlu0 %2789
      %vm2791 = vcmask 105472
      %v2792 = vsel %vm2791, %v2776, %v2778
      %v2793 = vsel %vm2791, %v2778, %v2780
      %v2794 = vsel %vm2791, %v2780, %v2782
      %v2795 = vsel %vm2791, %v2784, %v2786
      %v2796 = vsel %vm2791, %v2786, %v2788
      %v2797 = vsel %vm2791, %v2788, %v2790
      %v2806 = vadd.f32 %v2743, %v2776
      %v2807 = vadd.f32 %v2744, %v2792
      %v2808 = vadd.f32 %v2745, %v2793
      %v2809 = vadd.f32 %v2746, %v2794
      %v2810 = vadd.f32 %v2747, %v2784
      %v2811 = vadd.f32 %v2748, %v2795
      %v2812 = vadd.f32 %v2749, %v2796
      %v2813 = vadd.f32 %v2750, %v2797
      %2814 = vset.pattern.permute.xlu0 24
      %2815 = vperm.xlu0 %2814, %v1375
      %v2816 = vpop.permute.xlu0 %2815
      %2818 = vset.pattern.permute.xlu0 24
      %2819 = vperm.xlu0 %2818, %v1376
      %v2820 = vpop.permute.xlu0 %2819
      %v2822 = vmul.f32 %v2554, %v2816
      %v2823 = vmul.f32 %v2555, %v2816
      %v2824 = vmul.f32 %v2556, %v2816
      %v2825 = vmul.f32 %v2557, %v2816
      %v2826 = vmul.f32 %v2558, %v2820
      %v2827 = vmul.f32 %v2559, %v2820
      %v2828 = vmul.f32 %v2560, %v2820
      %v2829 = vmul.f32 %v2561, %v2820
      %2838 = vrot.lane.b32.xlu0 %v2822, 12
      %v2839 = vpop.permute.xlu0 %2838
      %2840 = vrot.lane.b32.xlu0 %v2823, 12
      %v2841 = vpop.permute.xlu0 %2840
      %2842 = vrot.lane.b32.xlu0 %v2824, 12
      %v2843 = vpop.permute.xlu0 %2842
      %2844 = vrot.lane.b32.xlu0 %v2825, 12
      %v2845 = vpop.permute.xlu0 %2844
      %2846 = vrot.lane.b32.xlu0 %v2826, 12
      %v2847 = vpop.permute.xlu0 %2846
      %2848 = vrot.lane.b32.xlu0 %v2827, 12
      %v2849 = vpop.permute.xlu0 %2848
      %2850 = vrot.lane.b32.xlu0 %v2828, 12
      %v2851 = vpop.permute.xlu0 %2850
      %2852 = vrot.lane.b32.xlu0 %v2829, 12
      %v2853 = vpop.permute.xlu0 %2852
      %vm2854 = vcmask 97280
      %v2855 = vsel %vm2854, %v2839, %v2841
      %v2856 = vsel %vm2854, %v2841, %v2843
      %v2857 = vsel %vm2854, %v2843, %v2845
      %v2858 = vsel %vm2854, %v2847, %v2849
      %v2859 = vsel %vm2854, %v2849, %v2851
      %v2860 = vsel %vm2854, %v2851, %v2853
      %v2869 = vadd.f32 %v2806, %v2839
      %v2870 = vadd.f32 %v2807, %v2855
      %v2871 = vadd.f32 %v2808, %v2856
      %v2872 = vadd.f32 %v2809, %v2857
      %v2873 = vadd.f32 %v2810, %v2847
      %v2874 = vadd.f32 %v2811, %v2858
      %v2875 = vadd.f32 %v2812, %v2859
      %v2876 = vadd.f32 %v2813, %v2860
      %v2877 = vld [vmem:[%s8] sm:$0x7]
      %vm2878 = vcmp.gt.f32.partialorder %v2877, 0.5
      %v2879 = vld [vmem:[%s9] sm:$0x7]
      %v2880 = vsel %vm2878, 1, 0
      %v2881 = vlaneseq
      %v2882 = vshrl.u32 %v2881, 7
      %v2883 = vsub.s32 0, %v2882
      %v2884 = vrot.slane %v2880, %v2883
      %v2885 = vlaneseq
      %v2886 = vshrl.u32 %v2885, 7
      %v2887 = vsub.s32 1, %v2886
      %v2888 = vrot.slane %v2880, %v2887
      %v2889 = vlaneseq
      %v2890 = vshrl.u32 %v2889, 7
      %v2891 = vsub.s32 2, %v2890
      %v2892 = vrot.slane %v2880, %v2891
      %vm2893 = vcmp.eq.s32.totalorder %v2884, 1
      %vm2894 = vcmp.eq.s32.totalorder %v2888, 1
      %vm2895 = vcmp.eq.s32.totalorder %v2892, 1
      %v2897 = vlaneseq
      %v2898 = vshrl.u32 %v2897, 7
      %v2899 = vsub.s32 0, %v2898
      %v2900 = vrot.slane %v2879, %v2899
      %v2901 = vlaneseq
      %v2902 = vshrl.u32 %v2901, 7
      %v2903 = vsub.s32 1, %v2902
      %v2904 = vrot.slane %v2879, %v2903
      %v2905 = vlaneseq
      %v2906 = vshrl.u32 %v2905, 7
      %v2907 = vsub.s32 2, %v2906
      %v2908 = vrot.slane %v2879, %v2907
      %2920 = vrot.lane.b32.xlu0 %v2869, 72
      %v2921 = vpop.permute.xlu0 %2920
      %2922 = vrot.lane.b32.xlu0 %v2870, 72
      %v2923 = vpop.permute.xlu0 %2922
      %2924 = vrot.lane.b32.xlu0 %v2871, 72
      %v2925 = vpop.permute.xlu0 %2924
      %2926 = vrot.lane.b32.xlu0 %v2872, 72
      %v2927 = vpop.permute.xlu0 %2926
      %2928 = vrot.lane.b32.xlu0 %v2873, 72
      %v2929 = vpop.permute.xlu0 %2928
      %2930 = vrot.lane.b32.xlu0 %v2874, 72
      %v2931 = vpop.permute.xlu0 %2930
      %2932 = vrot.lane.b32.xlu0 %v2875, 72
      %v2933 = vpop.permute.xlu0 %2932
      %2934 = vrot.lane.b32.xlu0 %v2876, 72
      %v2935 = vpop.permute.xlu0 %2934
      %v2936 = vsel %vm1283, %v2921, %v2923
      %v2937 = vsel %vm1283, %v2923, %v2925
      %v2938 = vsel %vm1283, %v2925, %v2927
      %v2939 = vsel %vm1283, %v2929, %v2931
      %v2940 = vsel %vm1283, %v2931, %v2933
      %v2941 = vsel %vm1283, %v2933, %v2935
      %v2948 = vsel %vm2893, %v2936, %v2900
      %v2949 = vsel %vm2894, %v2937, %v2904
      %v2950 = vsel %vm2895, %v2938, %v2908
      %v2951 = vsel %vm2893, %v2939, %v2900
      %v2952 = vsel %vm2894, %v2940, %v2904
      %v2953 = vsel %vm2895, %v2941, %v2908
      %2954 = vst.msk [vmem:[#allocation3] sm:$0xff] %vm1332, 0.0
      %vm2955 = vcmask 453632
      %2956 = vst.msk [vmem:[#allocation3 + $0x28] sm:$0xf] %vm2955, 0.0
      %vm2957 = vcmask 752928
      %2958 = vst.msk [vmem:[#allocation3 + $0x18] sm:$0xff] %vm2957, 0.0
      %vm2959 = vcmask 748832
      %2960 = vst.msk [vmem:[#allocation3 + $0x40] sm:$0xf] %vm2959, 0.0
      %2967 = vrot.lane.b32.xlu0 %v2948, 56
      %v2968 = vpop.permute.xlu0 %2967
      %2969 = vrot.lane.b32.xlu0 %v2949, 56
      %v2970 = vpop.permute.xlu0 %2969
      %2971 = vrot.lane.b32.xlu0 %v2950, 56
      %v2972 = vpop.permute.xlu0 %2971
      %2973 = vrot.lane.b32.xlu0 %v2951, 56
      %v2974 = vpop.permute.xlu0 %2973
      %2975 = vrot.lane.b32.xlu0 %v2952, 56
      %v2976 = vpop.permute.xlu0 %2975
      %2977 = vrot.lane.b32.xlu0 %v2953, 56
      %v2978 = vpop.permute.xlu0 %2977
      %v2979 = vsel %vm1332, %v2968, %v2970
      %v2980 = vsel %vm1332, %v2970, %v2972
      %v2981 = vsel %vm1332, %v2974, %v2976
      %v2982 = vsel %vm1332, %v2976, %v2978
      %2991 = vst.msk [vmem:[#allocation3] sm:$0xff] %vm1349, %v2968
      %2992 = vst [vmem:[#allocation3 + $0x8] sm:$0xff] %v2979
      %2993 = vst [vmem:[#allocation3 + $0x10] sm:$0xff] %v2980
      %vm2994 = vcmask 293888
      %2995 = vst.msk [vmem:[#allocation3 + $0x18] sm:$0xff] %vm2994, %v2972
      %2996 = vst.msk [vmem:[#allocation3 + $0x28] sm:$0xf] %vm1356, %v2974
      %2997 = vst [vmem:[#allocation3 + $0x30] sm:$0xf] %v2981
      %2998 = vst [vmem:[#allocation3 + $0x38] sm:$0xf] %v2982
      %vm2999 = vcmask 289792
      %3000 = vst.msk [vmem:[#allocation3 + $0x40] sm:$0xf] %vm2999, %v2978
      %v3001 = vld [vmem:[%s6] sm:$0x1]
      %3003 = vset.pattern.permute.xlu0 0
      %3004 = vperm.xlu0 %3003, %v3001
      %v3005 = vpop.permute.xlu0 %3004
      %v3007 = vld [vmem:[%s6 + $0x1] sm:$0x1]
      %3009 = vset.pattern.permute.xlu0 0
      %3010 = vperm.xlu0 %3009, %v3007
      %v3011 = vpop.permute.xlu0 %3010
      %v3013 = vld [vmem:[%s6 + $0x2] sm:$0x1]
      %3015 = vset.pattern.permute.xlu0 0
      %3016 = vperm.xlu0 %3015, %v3013
      %v3017 = vpop.permute.xlu0 %3016
      %v3019 = vld [vmem:[%s6 + $0x3] sm:$0x1]
      %3021 = vset.pattern.permute.xlu0 0
      %3022 = vperm.xlu0 %3021, %v3019
      %v3023 = vpop.permute.xlu0 %3022
      %v3025 = vld [vmem:[#allocation3] sm:$0x3f]
      %v3026 = vld [vmem:[#allocation3 + $0x8] sm:$0x3f]
      %v3027 = vld [vmem:[#allocation3 + $0x10] sm:$0x3f]
      %v3028 = vld [vmem:[#allocation3 + $0x18] sm:$0x3f]
      %v3029 = vld [vmem:[%s5] sm:$0x3f]
      %3031 = vset.pattern.permute.xlu0 0
      %3032 = vperm.xlu0 %3031, %v3029
      %v3033 = vpop.permute.xlu0 %3032
      %v3035 = vmul.f32 %v3025, %v3033
      %v3036 = vmul.f32 %v3026, %v3033
      %v3037 = vmul.f32 %v3027, %v3033
      %v3038 = vmul.f32 %v3028, %v3033
      %vm3039 = vcmask 1045504
      %v3040 = vsel %vm3039, %v3035, 0.0
      %v3041 = vrot.slane %v3040, 4
      %v3042 = vadd.f32 %v3040, %v3041
      %v3043 = vrot.slane %v3042, 2
      %v3044 = vadd.f32 %v3042, %v3043
      %v3045 = vrot.slane %v3044, 1
      %v3046 = vadd.f32 %v3044, %v3045
      %v3047 = vsel %vm3039, %v3036, 0.0
      %v3048 = vrot.slane %v3047, 4
      %v3049 = vadd.f32 %v3047, %v3048
      %v3050 = vrot.slane %v3049, 2
      %v3051 = vadd.f32 %v3049, %v3050
      %v3052 = vrot.slane %v3051, 1
      %v3053 = vadd.f32 %v3051, %v3052
      %v3054 = vsel %vm3039, %v3037, 0.0
      %v3055 = vrot.slane %v3054, 4
      %v3056 = vadd.f32 %v3054, %v3055
      %v3057 = vrot.slane %v3056, 2
      %v3058 = vadd.f32 %v3056, %v3057
      %v3059 = vrot.slane %v3058, 1
      %v3060 = vadd.f32 %v3058, %v3059
      %vm3061 = vcmask 291840
      %v3062 = vsel %vm3061, %v3038, 0.0
      %v3063 = vrot.slane %v3062, 4
      %v3064 = vadd.f32 %v3062, %v3063
      %v3065 = vrot.slane %v3064, 2
      %v3066 = vadd.f32 %v3064, %v3065
      %v3067 = vrot.slane %v3066, 1
      %v3068 = vadd.f32 %v3066, %v3067
      %v3069 = vadd.f32 %v3005, %v3046
      %v3070 = vadd.f32 %v3005, %v3053
      %v3071 = vadd.f32 %v3005, %v3060
      %v3072 = vadd.f32 %v3005, %v3068
      %3073 = vset.pattern.permute.xlu0 9
      %3074 = vperm.xlu0 %3073, %v3029
      %v3075 = vpop.permute.xlu0 %3074
      %v3077 = vmul.f32 %v3025, %v3075
      %v3078 = vmul.f32 %v3026, %v3075
      %v3079 = vmul.f32 %v3027, %v3075
      %v3080 = vmul.f32 %v3028, %v3075
      %v3081 = vsel %vm3039, %v3077, 0.0
      %v3082 = vrot.slane %v3081, 4
      %v3083 = vadd.f32 %v3081, %v3082
      %v3084 = vrot.slane %v3083, 2
      %v3085 = vadd.f32 %v3083, %v3084
      %v3086 = vrot.slane %v3085, 1
      %v3087 = vadd.f32 %v3085, %v3086
      %v3088 = vsel %vm3039, %v3078, 0.0
      %v3089 = vrot.slane %v3088, 4
      %v3090 = vadd.f32 %v3088, %v3089
      %v3091 = vrot.slane %v3090, 2
      %v3092 = vadd.f32 %v3090, %v3091
      %v3093 = vrot.slane %v3092, 1
      %v3094 = vadd.f32 %v3092, %v3093
      %v3095 = vsel %vm3039, %v3079, 0.0
      %v3096 = vrot.slane %v3095, 4
      %v3097 = vadd.f32 %v3095, %v3096
      %v3098 = vrot.slane %v3097, 2
      %v3099 = vadd.f32 %v3097, %v3098
      %v3100 = vrot.slane %v3099, 1
      %v3101 = vadd.f32 %v3099, %v3100
      %v3102 = vsel %vm3061, %v3080, 0.0
      %v3103 = vrot.slane %v3102, 4
      %v3104 = vadd.f32 %v3102, %v3103
      %v3105 = vrot.slane %v3104, 2
      %v3106 = vadd.f32 %v3104, %v3105
      %v3107 = vrot.slane %v3106, 1
      %v3108 = vadd.f32 %v3106, %v3107
      %v3109 = vadd.f32 %v3011, %v3087
      %v3110 = vadd.f32 %v3011, %v3094
      %v3111 = vadd.f32 %v3011, %v3101
      %v3112 = vadd.f32 %v3011, %v3108
      %v3113 = vld [vmem:[#allocation3] sm:$0xc0]
      %v3114 = vld [vmem:[#allocation3 + $0x8] sm:$0xc0]
      %v3115 = vld [vmem:[#allocation3 + $0x10] sm:$0xc0]
      %v3116 = vld [vmem:[#allocation3 + $0x18] sm:$0xc0]
      %v3117 = vld [vmem:[#allocation3 + $0x28] sm:$0xf]
      %v3118 = vld [vmem:[#allocation3 + $0x30] sm:$0xf]
      %v3119 = vld [vmem:[#allocation3 + $0x38] sm:$0xf]
      %v3120 = vld [vmem:[#allocation3 + $0x40] sm:$0xf]
      %3121 = vset.pattern.permute.xlu0 18
      %3122 = vperm.xlu0 %3121, %v3029
      %v3123 = vpop.permute.xlu0 %3122
      %v3124 = vrot.slane %v3123, 2
      %v3126 = vmul.f32 %v3113, %v3124
      %v3127 = vmul.f32 %v3114, %v3124
      %v3128 = vmul.f32 %v3115, %v3124
      %v3129 = vmul.f32 %v3116, %v3124
      %v3130 = vmul.f32 %v3117, %v3124
      %v3131 = vmul.f32 %v3118, %v3124
      %v3132 = vmul.f32 %v3119, %v3124
      %v3133 = vmul.f32 %v3120, %v3124
      %vm3142 = vcmask 1041408
      %v3143 = vrot.slane %v3126, 6
      %v3144 = vrot.slane %v3130, 6
      %v3145 = vsel %vm3142, %v3143, %v3144
      %v3146 = vrot.slane %v3127, 6
      %v3147 = vrot.slane %v3131, 6
      %v3148 = vsel %vm3142, %v3146, %v3147
      %v3149 = vrot.slane %v3128, 6
      %v3150 = vrot.slane %v3132, 6
      %v3151 = vsel %vm3142, %v3149, %v3150
      %v3152 = vrot.slane %v3129, 6
      %v3153 = vrot.slane %v3133, 6
      %v3154 = vsel %vm3142, %v3152, %v3153
      %v3159 = vsel %vm3039, %v3145, 0.0
      %v3160 = vrot.slane %v3159, 4
      %v3161 = vadd.f32 %v3159, %v3160
      %v3162 = vrot.slane %v3161, 2
      %v3163 = vadd.f32 %v3161, %v3162
      %v3164 = vrot.slane %v3163, 1
      %v3165 = vadd.f32 %v3163, %v3164
      %v3166 = vsel %vm3039, %v3148, 0.0
      %v3167 = vrot.slane %v3166, 4
      %v3168 = vadd.f32 %v3166, %v3167
      %v3169 = vrot.slane %v3168, 2
      %v3170 = vadd.f32 %v3168, %v3169
      %v3171 = vrot.slane %v3170, 1
      %v3172 = vadd.f32 %v3170, %v3171
      %v3173 = vsel %vm3039, %v3151, 0.0
      %v3174 = vrot.slane %v3173, 4
      %v3175 = vadd.f32 %v3173, %v3174
      %v3176 = vrot.slane %v3175, 2
      %v3177 = vadd.f32 %v3175, %v3176
      %v3178 = vrot.slane %v3177, 1
      %v3179 = vadd.f32 %v3177, %v3178
      %v3180 = vsel %vm3061, %v3154, 0.0
      %v3181 = vrot.slane %v3180, 4
      %v3182 = vadd.f32 %v3180, %v3181
      %v3183 = vrot.slane %v3182, 2
      %v3184 = vadd.f32 %v3182, %v3183
      %v3185 = vrot.slane %v3184, 1
      %v3186 = vadd.f32 %v3184, %v3185
      %v3187 = vadd.f32 %v3017, %v3165
      %v3188 = vadd.f32 %v3017, %v3172
      %v3189 = vadd.f32 %v3017, %v3179
      %v3190 = vadd.f32 %v3017, %v3186
      %3191 = vset.pattern.permute.xlu0 27
      %3192 = vperm.xlu0 %3191, %v3029
      %v3193 = vpop.permute.xlu0 %3192
      %v3194 = vrot.slane %v3193, 2
      %v3196 = vmul.f32 %v3113, %v3194
      %v3197 = vmul.f32 %v3114, %v3194
      %v3198 = vmul.f32 %v3115, %v3194
      %v3199 = vmul.f32 %v3116, %v3194
      %v3200 = vmul.f32 %v3117, %v3194
      %v3201 = vmul.f32 %v3118, %v3194
      %v3202 = vmul.f32 %v3119, %v3194
      %v3203 = vmul.f32 %v3120, %v3194
      %v3212 = vrot.slane %v3196, 6
      %v3213 = vrot.slane %v3200, 6
      %v3214 = vsel %vm3142, %v3212, %v3213
      %v3215 = vrot.slane %v3197, 6
      %v3216 = vrot.slane %v3201, 6
      %v3217 = vsel %vm3142, %v3215, %v3216
      %v3218 = vrot.slane %v3198, 6
      %v3219 = vrot.slane %v3202, 6
      %v3220 = vsel %vm3142, %v3218, %v3219
      %v3221 = vrot.slane %v3199, 6
      %v3222 = vrot.slane %v3203, 6
      %v3223 = vsel %vm3142, %v3221, %v3222
      %v3228 = vsel %vm3039, %v3214, 0.0
      %v3229 = vrot.slane %v3228, 4
      %v3230 = vadd.f32 %v3228, %v3229
      %v3231 = vrot.slane %v3230, 2
      %v3232 = vadd.f32 %v3230, %v3231
      %v3233 = vrot.slane %v3232, 1
      %v3234 = vadd.f32 %v3232, %v3233
      %v3235 = vsel %vm3039, %v3217, 0.0
      %v3236 = vrot.slane %v3235, 4
      %v3237 = vadd.f32 %v3235, %v3236
      %v3238 = vrot.slane %v3237, 2
      %v3239 = vadd.f32 %v3237, %v3238
      %v3240 = vrot.slane %v3239, 1
      %v3241 = vadd.f32 %v3239, %v3240
      %v3242 = vsel %vm3039, %v3220, 0.0
      %v3243 = vrot.slane %v3242, 4
      %v3244 = vadd.f32 %v3242, %v3243
      %v3245 = vrot.slane %v3244, 2
      %v3246 = vadd.f32 %v3244, %v3245
      %v3247 = vrot.slane %v3246, 1
      %v3248 = vadd.f32 %v3246, %v3247
      %v3249 = vsel %vm3061, %v3223, 0.0
      %v3250 = vrot.slane %v3249, 4
      %v3251 = vadd.f32 %v3249, %v3250
      %v3252 = vrot.slane %v3251, 2
      %v3253 = vadd.f32 %v3251, %v3252
      %v3254 = vrot.slane %v3253, 1
      %v3255 = vadd.f32 %v3253, %v3254
      %v3256 = vadd.f32 %v3023, %v3234
      %v3257 = vadd.f32 %v3023, %v3241
      %v3258 = vadd.f32 %v3023, %v3248
      %v3259 = vadd.f32 %v3023, %v3255
      %3260 = vset.pattern.permute.xlu0 1
      %3261 = vperm.xlu0 %3260, %v3029
      %v3262 = vpop.permute.xlu0 %3261
      %v3264 = vmul.f32 %v3025, %v3262
      %v3265 = vmul.f32 %v3026, %v3262
      %v3266 = vmul.f32 %v3027, %v3262
      %v3267 = vmul.f32 %v3028, %v3262
      %vm3268 = vcmask 1045512
      %v3269 = vsel %vm3268, %v3264, 0.0
      %v3270 = vrot.slane %v3269, 4
      %v3271 = vadd.f32 %v3269, %v3270
      %v3272 = vrot.slane %v3271, 2
      %v3273 = vadd.f32 %v3271, %v3272
      %v3274 = vrot.slane %v3273, 1
      %v3275 = vadd.f32 %v3273, %v3274
      %v3276 = vsel %vm3039, %v3265, 0.0
      %v3277 = vrot.slane %v3276, 4
      %v3278 = vadd.f32 %v3276, %v3277
      %v3279 = vrot.slane %v3278, 2
      %v3280 = vadd.f32 %v3278, %v3279
      %v3281 = vrot.slane %v3280, 1
      %v3282 = vadd.f32 %v3280, %v3281
      %v3283 = vsel %vm3039, %v3266, 0.0
      %v3284 = vrot.slane %v3283, 4
      %v3285 = vadd.f32 %v3283, %v3284
      %v3286 = vrot.slane %v3285, 2
      %v3287 = vadd.f32 %v3285, %v3286
      %v3288 = vrot.slane %v3287, 1
      %v3289 = vadd.f32 %v3287, %v3288
      %vm3290 = vcmask 300032
      %v3291 = vsel %vm3290, %v3267, 0.0
      %v3292 = vrot.slane %v3291, 4
      %v3293 = vadd.f32 %v3291, %v3292
      %v3294 = vrot.slane %v3293, 2
      %v3295 = vadd.f32 %v3293, %v3294
      %v3296 = vrot.slane %v3295, 1
      %v3297 = vadd.f32 %v3295, %v3296
      %3302 = vrot.lane.b32.xlu0 %v3275, 127
      %v3303 = vpop.permute.xlu0 %3302
      %3304 = vrot.lane.b32.xlu0 %v3282, 127
      %v3305 = vpop.permute.xlu0 %3304
      %3306 = vrot.lane.b32.xlu0 %v3289, 127
      %v3307 = vpop.permute.xlu0 %3306
      %3308 = vrot.lane.b32.xlu0 %v3297, 127
      %v3309 = vpop.permute.xlu0 %3308
      %v3310 = vsel %vm479, %v3303, %v3305
      %v3311 = vsel %vm479, %v3305, %v3307
      %v3312 = vsel %vm479, %v3307, %v3309
      %v3317 = vadd.f32 %v3069, %v3310
      %v3318 = vadd.f32 %v3070, %v3311
      %v3319 = vadd.f32 %v3071, %v3312
      %v3320 = vadd.f32 %v3072, %v3309
      %3321 = vset.pattern.permute.xlu0 10
      %3322 = vperm.xlu0 %3321, %v3029
      %v3323 = vpop.permute.xlu0 %3322
      %v3325 = vmul.f32 %v3025, %v3323
      %v3326 = vmul.f32 %v3026, %v3323
      %v3327 = vmul.f32 %v3027, %v3323
      %v3328 = vmul.f32 %v3028, %v3323
      %v3329 = vsel %vm3268, %v3325, 0.0
      %v3330 = vrot.slane %v3329, 4
      %v3331 = vadd.f32 %v3329, %v3330
      %v3332 = vrot.slane %v3331, 2
      %v3333 = vadd.f32 %v3331, %v3332
      %v3334 = vrot.slane %v3333, 1
      %v3335 = vadd.f32 %v3333, %v3334
      %v3336 = vsel %vm3039, %v3326, 0.0
      %v3337 = vrot.slane %v3336, 4
      %v3338 = vadd.f32 %v3336, %v3337
      %v3339 = vrot.slane %v3338, 2
      %v3340 = vadd.f32 %v3338, %v3339
      %v3341 = vrot.slane %v3340, 1
      %v3342 = vadd.f32 %v3340, %v3341
      %v3343 = vsel %vm3039, %v3327, 0.0
      %v3344 = vrot.slane %v3343, 4
      %v3345 = vadd.f32 %v3343, %v3344
      %v3346 = vrot.slane %v3345, 2
      %v3347 = vadd.f32 %v3345, %v3346
      %v3348 = vrot.slane %v3347, 1
      %v3349 = vadd.f32 %v3347, %v3348
      %v3350 = vsel %vm3290, %v3328, 0.0
      %v3351 = vrot.slane %v3350, 4
      %v3352 = vadd.f32 %v3350, %v3351
      %v3353 = vrot.slane %v3352, 2
      %v3354 = vadd.f32 %v3352, %v3353
      %v3355 = vrot.slane %v3354, 1
      %v3356 = vadd.f32 %v3354, %v3355
      %3361 = vrot.lane.b32.xlu0 %v3335, 127
      %v3362 = vpop.permute.xlu0 %3361
      %3363 = vrot.lane.b32.xlu0 %v3342, 127
      %v3364 = vpop.permute.xlu0 %3363
      %3365 = vrot.lane.b32.xlu0 %v3349, 127
      %v3366 = vpop.permute.xlu0 %3365
      %3367 = vrot.lane.b32.xlu0 %v3356, 127
      %v3368 = vpop.permute.xlu0 %3367
      %v3369 = vsel %vm479, %v3362, %v3364
      %v3370 = vsel %vm479, %v3364, %v3366
      %v3371 = vsel %vm479, %v3366, %v3368
      %v3376 = vadd.f32 %v3109, %v3369
      %v3377 = vadd.f32 %v3110, %v3370
      %v3378 = vadd.f32 %v3111, %v3371
      %v3379 = vadd.f32 %v3112, %v3368
      %3380 = vset.pattern.permute.xlu0 19
      %3381 = vperm.xlu0 %3380, %v3029
      %v3382 = vpop.permute.xlu0 %3381
      %v3383 = vrot.slane %v3382, 2
      %v3385 = vmul.f32 %v3113, %v3383
      %v3386 = vmul.f32 %v3114, %v3383
      %v3387 = vmul.f32 %v3115, %v3383
      %v3388 = vmul.f32 %v3116, %v3383
      %v3389 = vmul.f32 %v3117, %v3383
      %v3390 = vmul.f32 %v3118, %v3383
      %v3391 = vmul.f32 %v3119, %v3383
      %v3392 = vmul.f32 %v3120, %v3383
      %v3401 = vrot.slane %v3385, 6
      %v3402 = vrot.slane %v3389, 6
      %v3403 = vsel %vm3142, %v3401, %v3402
      %v3404 = vrot.slane %v3386, 6
      %v3405 = vrot.slane %v3390, 6
      %v3406 = vsel %vm3142, %v3404, %v3405
      %v3407 = vrot.slane %v3387, 6
      %v3408 = vrot.slane %v3391, 6
      %v3409 = vsel %vm3142, %v3407, %v3408
      %v3410 = vrot.slane %v3388, 6
      %v3411 = vrot.slane %v3392, 6
      %v3412 = vsel %vm3142, %v3410, %v3411
      %v3417 = vsel %vm3268, %v3403, 0.0
      %v3418 = vrot.slane %v3417, 4
      %v3419 = vadd.f32 %v3417, %v3418
      %v3420 = vrot.slane %v3419, 2
      %v3421 = vadd.f32 %v3419, %v3420
      %v3422 = vrot.slane %v3421, 1
      %v3423 = vadd.f32 %v3421, %v3422
      %v3424 = vsel %vm3039, %v3406, 0.0
      %v3425 = vrot.slane %v3424, 4
      %v3426 = vadd.f32 %v3424, %v3425
      %v3427 = vrot.slane %v3426, 2
      %v3428 = vadd.f32 %v3426, %v3427
      %v3429 = vrot.slane %v3428, 1
      %v3430 = vadd.f32 %v3428, %v3429
      %v3431 = vsel %vm3039, %v3409, 0.0
      %v3432 = vrot.slane %v3431, 4
      %v3433 = vadd.f32 %v3431, %v3432
      %v3434 = vrot.slane %v3433, 2
      %v3435 = vadd.f32 %v3433, %v3434
      %v3436 = vrot.slane %v3435, 1
      %v3437 = vadd.f32 %v3435, %v3436
      %v3438 = vsel %vm3290, %v3412, 0.0
      %v3439 = vrot.slane %v3438, 4
      %v3440 = vadd.f32 %v3438, %v3439
      %v3441 = vrot.slane %v3440, 2
      %v3442 = vadd.f32 %v3440, %v3441
      %v3443 = vrot.slane %v3442, 1
      %v3444 = vadd.f32 %v3442, %v3443
      %3449 = vrot.lane.b32.xlu0 %v3423, 127
      %v3450 = vpop.permute.xlu0 %3449
      %3451 = vrot.lane.b32.xlu0 %v3430, 127
      %v3452 = vpop.permute.xlu0 %3451
      %3453 = vrot.lane.b32.xlu0 %v3437, 127
      %v3454 = vpop.permute.xlu0 %3453
      %3455 = vrot.lane.b32.xlu0 %v3444, 127
      %v3456 = vpop.permute.xlu0 %3455
      %v3457 = vsel %vm479, %v3450, %v3452
      %v3458 = vsel %vm479, %v3452, %v3454
      %v3459 = vsel %vm479, %v3454, %v3456
      %v3464 = vadd.f32 %v3187, %v3457
      %v3465 = vadd.f32 %v3188, %v3458
      %v3466 = vadd.f32 %v3189, %v3459
      %v3467 = vadd.f32 %v3190, %v3456
      %3468 = vset.pattern.permute.xlu0 28
      %3469 = vperm.xlu0 %3468, %v3029
      %v3470 = vpop.permute.xlu0 %3469
      %v3471 = vrot.slane %v3470, 2
      %v3473 = vmul.f32 %v3113, %v3471
      %v3474 = vmul.f32 %v3114, %v3471
      %v3475 = vmul.f32 %v3115, %v3471
      %v3476 = vmul.f32 %v3116, %v3471
      %v3477 = vmul.f32 %v3117, %v3471
      %v3478 = vmul.f32 %v3118, %v3471
      %v3479 = vmul.f32 %v3119, %v3471
      %v3480 = vmul.f32 %v3120, %v3471
      %v3489 = vrot.slane %v3473, 6
      %v3490 = vrot.slane %v3477, 6
      %v3491 = vsel %vm3142, %v3489, %v3490
      %v3492 = vrot.slane %v3474, 6
      %v3493 = vrot.slane %v3478, 6
      %v3494 = vsel %vm3142, %v3492, %v3493
      %v3495 = vrot.slane %v3475, 6
      %v3496 = vrot.slane %v3479, 6
      %v3497 = vsel %vm3142, %v3495, %v3496
      %v3498 = vrot.slane %v3476, 6
      %v3499 = vrot.slane %v3480, 6
      %v3500 = vsel %vm3142, %v3498, %v3499
      %v3505 = vsel %vm3268, %v3491, 0.0
      %v3506 = vrot.slane %v3505, 4
      %v3507 = vadd.f32 %v3505, %v3506
      %v3508 = vrot.slane %v3507, 2
      %v3509 = vadd.f32 %v3507, %v3508
      %v3510 = vrot.slane %v3509, 1
      %v3511 = vadd.f32 %v3509, %v3510
      %v3512 = vsel %vm3039, %v3494, 0.0
      %v3513 = vrot.slane %v3512, 4
      %v3514 = vadd.f32 %v3512, %v3513
      %v3515 = vrot.slane %v3514, 2
      %v3516 = vadd.f32 %v3514, %v3515
      %v3517 = vrot.slane %v3516, 1
      %v3518 = vadd.f32 %v3516, %v3517
      %v3519 = vsel %vm3039, %v3497, 0.0
      %v3520 = vrot.slane %v3519, 4
      %v3521 = vadd.f32 %v3519, %v3520
      %v3522 = vrot.slane %v3521, 2
      %v3523 = vadd.f32 %v3521, %v3522
      %v3524 = vrot.slane %v3523, 1
      %v3525 = vadd.f32 %v3523, %v3524
      %v3526 = vsel %vm3290, %v3500, 0.0
      %v3527 = vrot.slane %v3526, 4
      %v3528 = vadd.f32 %v3526, %v3527
      %v3529 = vrot.slane %v3528, 2
      %v3530 = vadd.f32 %v3528, %v3529
      %v3531 = vrot.slane %v3530, 1
      %v3532 = vadd.f32 %v3530, %v3531
      %3537 = vrot.lane.b32.xlu0 %v3511, 127
      %v3538 = vpop.permute.xlu0 %3537
      %3539 = vrot.lane.b32.xlu0 %v3518, 127
      %v3540 = vpop.permute.xlu0 %3539
      %3541 = vrot.lane.b32.xlu0 %v3525, 127
      %v3542 = vpop.permute.xlu0 %3541
      %3543 = vrot.lane.b32.xlu0 %v3532, 127
      %v3544 = vpop.permute.xlu0 %3543
      %v3545 = vsel %vm479, %v3538, %v3540
      %v3546 = vsel %vm479, %v3540, %v3542
      %v3547 = vsel %vm479, %v3542, %v3544
      %v3552 = vadd.f32 %v3256, %v3545
      %v3553 = vadd.f32 %v3257, %v3546
      %v3554 = vadd.f32 %v3258, %v3547
      %v3555 = vadd.f32 %v3259, %v3544
      %3556 = vset.pattern.permute.xlu0 2
      %3557 = vperm.xlu0 %3556, %v3029
      %v3558 = vpop.permute.xlu0 %3557
      %v3560 = vmul.f32 %v3025, %v3558
      %v3561 = vmul.f32 %v3026, %v3558
      %v3562 = vmul.f32 %v3027, %v3558
      %v3563 = vmul.f32 %v3028, %v3558
      %vm3564 = vcmask 1045520
      %v3565 = vsel %vm3564, %v3560, 0.0
      %v3566 = vrot.slane %v3565, 4
      %v3567 = vadd.f32 %v3565, %v3566
      %v3568 = vrot.slane %v3567, 2
      %v3569 = vadd.f32 %v3567, %v3568
      %v3570 = vrot.slane %v3569, 1
      %v3571 = vadd.f32 %v3569, %v3570
      %v3572 = vsel %vm3039, %v3561, 0.0
      %v3573 = vrot.slane %v3572, 4
      %v3574 = vadd.f32 %v3572, %v3573
      %v3575 = vrot.slane %v3574, 2
      %v3576 = vadd.f32 %v3574, %v3575
      %v3577 = vrot.slane %v3576, 1
      %v3578 = vadd.f32 %v3576, %v3577
      %v3579 = vsel %vm3039, %v3562, 0.0
      %v3580 = vrot.slane %v3579, 4
      %v3581 = vadd.f32 %v3579, %v3580
      %v3582 = vrot.slane %v3581, 2
      %v3583 = vadd.f32 %v3581, %v3582
      %v3584 = vrot.slane %v3583, 1
      %v3585 = vadd.f32 %v3583, %v3584
      %vm3586 = vcmask 308224
      %v3587 = vsel %vm3586, %v3563, 0.0
      %v3588 = vrot.slane %v3587, 4
      %v3589 = vadd.f32 %v3587, %v3588
      %v3590 = vrot.slane %v3589, 2
      %v3591 = vadd.f32 %v3589, %v3590
      %v3592 = vrot.slane %v3591, 1
      %v3593 = vadd.f32 %v3591, %v3592
      %3598 = vrot.lane.b32.xlu0 %v3571, 126
      %v3599 = vpop.permute.xlu0 %3598
      %3600 = vrot.lane.b32.xlu0 %v3578, 126
      %v3601 = vpop.permute.xlu0 %3600
      %3602 = vrot.lane.b32.xlu0 %v3585, 126
      %v3603 = vpop.permute.xlu0 %3602
      %3604 = vrot.lane.b32.xlu0 %v3593, 126
      %v3605 = vpop.permute.xlu0 %3604
      %v3606 = vsel %vm1513, %v3599, %v3601
      %v3607 = vsel %vm1513, %v3601, %v3603
      %v3608 = vsel %vm1513, %v3603, %v3605
      %v3613 = vadd.f32 %v3317, %v3606
      %v3614 = vadd.f32 %v3318, %v3607
      %v3615 = vadd.f32 %v3319, %v3608
      %v3616 = vadd.f32 %v3320, %v3605
      %3617 = vset.pattern.permute.xlu0 11
      %3618 = vperm.xlu0 %3617, %v3029
      %v3619 = vpop.permute.xlu0 %3618
      %v3621 = vmul.f32 %v3025, %v3619
      %v3622 = vmul.f32 %v3026, %v3619
      %v3623 = vmul.f32 %v3027, %v3619
      %v3624 = vmul.f32 %v3028, %v3619
      %v3625 = vsel %vm3564, %v3621, 0.0
      %v3626 = vrot.slane %v3625, 4
      %v3627 = vadd.f32 %v3625, %v3626
      %v3628 = vrot.slane %v3627, 2
      %v3629 = vadd.f32 %v3627, %v3628
      %v3630 = vrot.slane %v3629, 1
      %v3631 = vadd.f32 %v3629, %v3630
      %v3632 = vsel %vm3039, %v3622, 0.0
      %v3633 = vrot.slane %v3632, 4
      %v3634 = vadd.f32 %v3632, %v3633
      %v3635 = vrot.slane %v3634, 2
      %v3636 = vadd.f32 %v3634, %v3635
      %v3637 = vrot.slane %v3636, 1
      %v3638 = vadd.f32 %v3636, %v3637
      %v3639 = vsel %vm3039, %v3623, 0.0
      %v3640 = vrot.slane %v3639, 4
      %v3641 = vadd.f32 %v3639, %v3640
      %v3642 = vrot.slane %v3641, 2
      %v3643 = vadd.f32 %v3641, %v3642
      %v3644 = vrot.slane %v3643, 1
      %v3645 = vadd.f32 %v3643, %v3644
      %v3646 = vsel %vm3586, %v3624, 0.0
      %v3647 = vrot.slane %v3646, 4
      %v3648 = vadd.f32 %v3646, %v3647
      %v3649 = vrot.slane %v3648, 2
      %v3650 = vadd.f32 %v3648, %v3649
      %v3651 = vrot.slane %v3650, 1
      %v3652 = vadd.f32 %v3650, %v3651
      %3657 = vrot.lane.b32.xlu0 %v3631, 126
      %v3658 = vpop.permute.xlu0 %3657
      %3659 = vrot.lane.b32.xlu0 %v3638, 126
      %v3660 = vpop.permute.xlu0 %3659
      %3661 = vrot.lane.b32.xlu0 %v3645, 126
      %v3662 = vpop.permute.xlu0 %3661
      %3663 = vrot.lane.b32.xlu0 %v3652, 126
      %v3664 = vpop.permute.xlu0 %3663
      %v3665 = vsel %vm1513, %v3658, %v3660
      %v3666 = vsel %vm1513, %v3660, %v3662
      %v3667 = vsel %vm1513, %v3662, %v3664
      %v3672 = vadd.f32 %v3376, %v3665
      %v3673 = vadd.f32 %v3377, %v3666
      %v3674 = vadd.f32 %v3378, %v3667
      %v3675 = vadd.f32 %v3379, %v3664
      %3676 = vset.pattern.permute.xlu0 20
      %3677 = vperm.xlu0 %3676, %v3029
      %v3678 = vpop.permute.xlu0 %3677
      %v3679 = vrot.slane %v3678, 2
      %v3681 = vmul.f32 %v3113, %v3679
      %v3682 = vmul.f32 %v3114, %v3679
      %v3683 = vmul.f32 %v3115, %v3679
      %v3684 = vmul.f32 %v3116, %v3679
      %v3685 = vmul.f32 %v3117, %v3679
      %v3686 = vmul.f32 %v3118, %v3679
      %v3687 = vmul.f32 %v3119, %v3679
      %v3688 = vmul.f32 %v3120, %v3679
      %v3697 = vrot.slane %v3681, 6
      %v3698 = vrot.slane %v3685, 6
      %v3699 = vsel %vm3142, %v3697, %v3698
      %v3700 = vrot.slane %v3682, 6
      %v3701 = vrot.slane %v3686, 6
      %v3702 = vsel %vm3142, %v3700, %v3701
      %v3703 = vrot.slane %v3683, 6
      %v3704 = vrot.slane %v3687, 6
      %v3705 = vsel %vm3142, %v3703, %v3704
      %v3706 = vrot.slane %v3684, 6
      %v3707 = vrot.slane %v3688, 6
      %v3708 = vsel %vm3142, %v3706, %v3707
      %v3713 = vsel %vm3564, %v3699, 0.0
      %v3714 = vrot.slane %v3713, 4
      %v3715 = vadd.f32 %v3713, %v3714
      %v3716 = vrot.slane %v3715, 2
      %v3717 = vadd.f32 %v3715, %v3716
      %v3718 = vrot.slane %v3717, 1
      %v3719 = vadd.f32 %v3717, %v3718
      %v3720 = vsel %vm3039, %v3702, 0.0
      %v3721 = vrot.slane %v3720, 4
      %v3722 = vadd.f32 %v3720, %v3721
      %v3723 = vrot.slane %v3722, 2
      %v3724 = vadd.f32 %v3722, %v3723
      %v3725 = vrot.slane %v3724, 1
      %v3726 = vadd.f32 %v3724, %v3725
      %v3727 = vsel %vm3039, %v3705, 0.0
      %v3728 = vrot.slane %v3727, 4
      %v3729 = vadd.f32 %v3727, %v3728
      %v3730 = vrot.slane %v3729, 2
      %v3731 = vadd.f32 %v3729, %v3730
      %v3732 = vrot.slane %v3731, 1
      %v3733 = vadd.f32 %v3731, %v3732
      %v3734 = vsel %vm3586, %v3708, 0.0
      %v3735 = vrot.slane %v3734, 4
      %v3736 = vadd.f32 %v3734, %v3735
      %v3737 = vrot.slane %v3736, 2
      %v3738 = vadd.f32 %v3736, %v3737
      %v3739 = vrot.slane %v3738, 1
      %v3740 = vadd.f32 %v3738, %v3739
      %3745 = vrot.lane.b32.xlu0 %v3719, 126
      %v3746 = vpop.permute.xlu0 %3745
      %3747 = vrot.lane.b32.xlu0 %v3726, 126
      %v3748 = vpop.permute.xlu0 %3747
      %3749 = vrot.lane.b32.xlu0 %v3733, 126
      %v3750 = vpop.permute.xlu0 %3749
      %3751 = vrot.lane.b32.xlu0 %v3740, 126
      %v3752 = vpop.permute.xlu0 %3751
      %v3753 = vsel %vm1513, %v3746, %v3748
      %v3754 = vsel %vm1513, %v3748, %v3750
      %v3755 = vsel %vm1513, %v3750, %v3752
      %v3760 = vadd.f32 %v3464, %v3753
      %v3761 = vadd.f32 %v3465, %v3754
      %v3762 = vadd.f32 %v3466, %v3755
      %v3763 = vadd.f32 %v3467, %v3752
      %3764 = vset.pattern.permute.xlu0 29
      %3765 = vperm.xlu0 %3764, %v3029
      %v3766 = vpop.permute.xlu0 %3765
      %v3767 = vrot.slane %v3766, 2
      %v3769 = vmul.f32 %v3113, %v3767
      %v3770 = vmul.f32 %v3114, %v3767
      %v3771 = vmul.f32 %v3115, %v3767
      %v3772 = vmul.f32 %v3116, %v3767
      %v3773 = vmul.f32 %v3117, %v3767
      %v3774 = vmul.f32 %v3118, %v3767
      %v3775 = vmul.f32 %v3119, %v3767
      %v3776 = vmul.f32 %v3120, %v3767
      %v3785 = vrot.slane %v3769, 6
      %v3786 = vrot.slane %v3773, 6
      %v3787 = vsel %vm3142, %v3785, %v3786
      %v3788 = vrot.slane %v3770, 6
      %v3789 = vrot.slane %v3774, 6
      %v3790 = vsel %vm3142, %v3788, %v3789
      %v3791 = vrot.slane %v3771, 6
      %v3792 = vrot.slane %v3775, 6
      %v3793 = vsel %vm3142, %v3791, %v3792
      %v3794 = vrot.slane %v3772, 6
      %v3795 = vrot.slane %v3776, 6
      %v3796 = vsel %vm3142, %v3794, %v3795
      %v3801 = vsel %vm3564, %v3787, 0.0
      %v3802 = vrot.slane %v3801, 4
      %v3803 = vadd.f32 %v3801, %v3802
      %v3804 = vrot.slane %v3803, 2
      %v3805 = vadd.f32 %v3803, %v3804
      %v3806 = vrot.slane %v3805, 1
      %v3807 = vadd.f32 %v3805, %v3806
      %v3808 = vsel %vm3039, %v3790, 0.0
      %v3809 = vrot.slane %v3808, 4
      %v3810 = vadd.f32 %v3808, %v3809
      %v3811 = vrot.slane %v3810, 2
      %v3812 = vadd.f32 %v3810, %v3811
      %v3813 = vrot.slane %v3812, 1
      %v3814 = vadd.f32 %v3812, %v3813
      %v3815 = vsel %vm3039, %v3793, 0.0
      %v3816 = vrot.slane %v3815, 4
      %v3817 = vadd.f32 %v3815, %v3816
      %v3818 = vrot.slane %v3817, 2
      %v3819 = vadd.f32 %v3817, %v3818
      %v3820 = vrot.slane %v3819, 1
      %v3821 = vadd.f32 %v3819, %v3820
      %v3822 = vsel %vm3586, %v3796, 0.0
      %v3823 = vrot.slane %v3822, 4
      %v3824 = vadd.f32 %v3822, %v3823
      %v3825 = vrot.slane %v3824, 2
      %v3826 = vadd.f32 %v3824, %v3825
      %v3827 = vrot.slane %v3826, 1
      %v3828 = vadd.f32 %v3826, %v3827
      %3833 = vrot.lane.b32.xlu0 %v3807, 126
      %v3834 = vpop.permute.xlu0 %3833
      %3835 = vrot.lane.b32.xlu0 %v3814, 126
      %v3836 = vpop.permute.xlu0 %3835
      %3837 = vrot.lane.b32.xlu0 %v3821, 126
      %v3838 = vpop.permute.xlu0 %3837
      %3839 = vrot.lane.b32.xlu0 %v3828, 126
      %v3840 = vpop.permute.xlu0 %3839
      %v3841 = vsel %vm1513, %v3834, %v3836
      %v3842 = vsel %vm1513, %v3836, %v3838
      %v3843 = vsel %vm1513, %v3838, %v3840
      %v3848 = vadd.f32 %v3552, %v3841
      %v3849 = vadd.f32 %v3553, %v3842
      %v3850 = vadd.f32 %v3554, %v3843
      %v3851 = vadd.f32 %v3555, %v3840
      %3852 = vset.pattern.permute.xlu0 3
      %3853 = vperm.xlu0 %3852, %v3029
      %v3854 = vpop.permute.xlu0 %3853
      %v3856 = vmul.f32 %v3025, %v3854
      %v3857 = vmul.f32 %v3026, %v3854
      %v3858 = vmul.f32 %v3027, %v3854
      %v3859 = vmul.f32 %v3028, %v3854
      %vm3860 = vcmask 1045728
      %v3861 = vsel %vm3860, %v3856, 0.0
      %v3862 = vrot.slane %v3861, 4
      %v3863 = vadd.f32 %v3861, %v3862
      %v3864 = vrot.slane %v3863, 2
      %v3865 = vadd.f32 %v3863, %v3864
      %v3866 = vrot.slane %v3865, 1
      %v3867 = vadd.f32 %v3865, %v3866
      %v3868 = vsel %vm3039, %v3857, 0.0
      %v3869 = vrot.slane %v3868, 4
      %v3870 = vadd.f32 %v3868, %v3869
      %v3871 = vrot.slane %v3870, 2
      %v3872 = vadd.f32 %v3870, %v3871
      %v3873 = vrot.slane %v3872, 1
      %v3874 = vadd.f32 %v3872, %v3873
      %v3875 = vsel %vm3039, %v3858, 0.0
      %v3876 = vrot.slane %v3875, 4
      %v3877 = vadd.f32 %v3875, %v3876
      %v3878 = vrot.slane %v3877, 2
      %v3879 = vadd.f32 %v3877, %v3878
      %v3880 = vrot.slane %v3879, 1
      %v3881 = vadd.f32 %v3879, %v3880
      %vm3882 = vcmask 521216
      %v3883 = vsel %vm3882, %v3859, 0.0
      %v3884 = vrot.slane %v3883, 4
      %v3885 = vadd.f32 %v3883, %v3884
      %v3886 = vrot.slane %v3885, 2
      %v3887 = vadd.f32 %v3885, %v3886
      %v3888 = vrot.slane %v3887, 1
      %v3889 = vadd.f32 %v3887, %v3888
      %3894 = vrot.lane.b32.xlu0 %v3867, 100
      %v3895 = vpop.permute.xlu0 %3894
      %3896 = vrot.lane.b32.xlu0 %v3874, 100
      %v3897 = vpop.permute.xlu0 %3896
      %3898 = vrot.lane.b32.xlu0 %v3881, 100
      %v3899 = vpop.permute.xlu0 %3898
      %3900 = vrot.lane.b32.xlu0 %v3889, 100
      %v3901 = vpop.permute.xlu0 %3900
      %v3902 = vsel %vm556, %v3895, %v3897
      %v3903 = vsel %vm556, %v3897, %v3899
      %v3904 = vsel %vm556, %v3899, %v3901
      %v3909 = vadd.f32 %v3613, %v3902
      %v3910 = vadd.f32 %v3614, %v3903
      %v3911 = vadd.f32 %v3615, %v3904
      %v3912 = vadd.f32 %v3616, %v3901
      %3913 = vset.pattern.permute.xlu0 12
      %3914 = vperm.xlu0 %3913, %v3029
      %v3915 = vpop.permute.xlu0 %3914
      %v3917 = vmul.f32 %v3025, %v3915
      %v3918 = vmul.f32 %v3026, %v3915
      %v3919 = vmul.f32 %v3027, %v3915
      %v3920 = vmul.f32 %v3028, %v3915
      %v3921 = vsel %vm3860, %v3917, 0.0
      %v3922 = vrot.slane %v3921, 4
      %v3923 = vadd.f32 %v3921, %v3922
      %v3924 = vrot.slane %v3923, 2
      %v3925 = vadd.f32 %v3923, %v3924
      %v3926 = vrot.slane %v3925, 1
      %v3927 = vadd.f32 %v3925, %v3926
      %v3928 = vsel %vm3039, %v3918, 0.0
      %v3929 = vrot.slane %v3928, 4
      %v3930 = vadd.f32 %v3928, %v3929
      %v3931 = vrot.slane %v3930, 2
      %v3932 = vadd.f32 %v3930, %v3931
      %v3933 = vrot.slane %v3932, 1
      %v3934 = vadd.f32 %v3932, %v3933
      %v3935 = vsel %vm3039, %v3919, 0.0
      %v3936 = vrot.slane %v3935, 4
      %v3937 = vadd.f32 %v3935, %v3936
      %v3938 = vrot.slane %v3937, 2
      %v3939 = vadd.f32 %v3937, %v3938
      %v3940 = vrot.slane %v3939, 1
      %v3941 = vadd.f32 %v3939, %v3940
      %v3942 = vsel %vm3882, %v3920, 0.0
      %v3943 = vrot.slane %v3942, 4
      %v3944 = vadd.f32 %v3942, %v3943
      %v3945 = vrot.slane %v3944, 2
      %v3946 = vadd.f32 %v3944, %v3945
      %v3947 = vrot.slane %v3946, 1
      %v3948 = vadd.f32 %v3946, %v3947
      %3953 = vrot.lane.b32.xlu0 %v3927, 100
      %v3954 = vpop.permute.xlu0 %3953
      %3955 = vrot.lane.b32.xlu0 %v3934, 100
      %v3956 = vpop.permute.xlu0 %3955
      %3957 = vrot.lane.b32.xlu0 %v3941, 100
      %v3958 = vpop.permute.xlu0 %3957
      %3959 = vrot.lane.b32.xlu0 %v3948, 100
      %v3960 = vpop.permute.xlu0 %3959
      %v3961 = vsel %vm556, %v3954, %v3956
      %v3962 = vsel %vm556, %v3956, %v3958
      %v3963 = vsel %vm556, %v3958, %v3960
      %v3968 = vadd.f32 %v3672, %v3961
      %v3969 = vadd.f32 %v3673, %v3962
      %v3970 = vadd.f32 %v3674, %v3963
      %v3971 = vadd.f32 %v3675, %v3960
      %3972 = vset.pattern.permute.xlu0 21
      %3973 = vperm.xlu0 %3972, %v3029
      %v3974 = vpop.permute.xlu0 %3973
      %v3975 = vrot.slane %v3974, 2
      %v3977 = vmul.f32 %v3113, %v3975
      %v3978 = vmul.f32 %v3114, %v3975
      %v3979 = vmul.f32 %v3115, %v3975
      %v3980 = vmul.f32 %v3116, %v3975
      %v3981 = vmul.f32 %v3117, %v3975
      %v3982 = vmul.f32 %v3118, %v3975
      %v3983 = vmul.f32 %v3119, %v3975
      %v3984 = vmul.f32 %v3120, %v3975
      %v3993 = vrot.slane %v3977, 6
      %v3994 = vrot.slane %v3981, 6
      %v3995 = vsel %vm3142, %v3993, %v3994
      %v3996 = vrot.slane %v3978, 6
      %v3997 = vrot.slane %v3982, 6
      %v3998 = vsel %vm3142, %v3996, %v3997
      %v3999 = vrot.slane %v3979, 6
      %v4000 = vrot.slane %v3983, 6
      %v4001 = vsel %vm3142, %v3999, %v4000
      %v4002 = vrot.slane %v3980, 6
      %v4003 = vrot.slane %v3984, 6
      %v4004 = vsel %vm3142, %v4002, %v4003
      %v4009 = vsel %vm3860, %v3995, 0.0
      %v4010 = vrot.slane %v4009, 4
      %v4011 = vadd.f32 %v4009, %v4010
      %v4012 = vrot.slane %v4011, 2
      %v4013 = vadd.f32 %v4011, %v4012
      %v4014 = vrot.slane %v4013, 1
      %v4015 = vadd.f32 %v4013, %v4014
      %v4016 = vsel %vm3039, %v3998, 0.0
      %v4017 = vrot.slane %v4016, 4
      %v4018 = vadd.f32 %v4016, %v4017
      %v4019 = vrot.slane %v4018, 2
      %v4020 = vadd.f32 %v4018, %v4019
      %v4021 = vrot.slane %v4020, 1
      %v4022 = vadd.f32 %v4020, %v4021
      %v4023 = vsel %vm3039, %v4001, 0.0
      %v4024 = vrot.slane %v4023, 4
      %v4025 = vadd.f32 %v4023, %v4024
      %v4026 = vrot.slane %v4025, 2
      %v4027 = vadd.f32 %v4025, %v4026
      %v4028 = vrot.slane %v4027, 1
      %v4029 = vadd.f32 %v4027, %v4028
      %v4030 = vsel %vm3882, %v4004, 0.0
      %v4031 = vrot.slane %v4030, 4
      %v4032 = vadd.f32 %v4030, %v4031
      %v4033 = vrot.slane %v4032, 2
      %v4034 = vadd.f32 %v4032, %v4033
      %v4035 = vrot.slane %v4034, 1
      %v4036 = vadd.f32 %v4034, %v4035
      %4041 = vrot.lane.b32.xlu0 %v4015, 100
      %v4042 = vpop.permute.xlu0 %4041
      %4043 = vrot.lane.b32.xlu0 %v4022, 100
      %v4044 = vpop.permute.xlu0 %4043
      %4045 = vrot.lane.b32.xlu0 %v4029, 100
      %v4046 = vpop.permute.xlu0 %4045
      %4047 = vrot.lane.b32.xlu0 %v4036, 100
      %v4048 = vpop.permute.xlu0 %4047
      %v4049 = vsel %vm556, %v4042, %v4044
      %v4050 = vsel %vm556, %v4044, %v4046
      %v4051 = vsel %vm556, %v4046, %v4048
      %v4056 = vadd.f32 %v3760, %v4049
      %v4057 = vadd.f32 %v3761, %v4050
      %v4058 = vadd.f32 %v3762, %v4051
      %v4059 = vadd.f32 %v3763, %v4048
      %4060 = vset.pattern.permute.xlu0 30
      %4061 = vperm.xlu0 %4060, %v3029
      %v4062 = vpop.permute.xlu0 %4061
      %v4063 = vrot.slane %v4062, 2
      %v4065 = vmul.f32 %v3113, %v4063
      %v4066 = vmul.f32 %v3114, %v4063
      %v4067 = vmul.f32 %v3115, %v4063
      %v4068 = vmul.f32 %v3116, %v4063
      %v4069 = vmul.f32 %v3117, %v4063
      %v4070 = vmul.f32 %v3118, %v4063
      %v4071 = vmul.f32 %v3119, %v4063
      %v4072 = vmul.f32 %v3120, %v4063
      %v4081 = vrot.slane %v4065, 6
      %v4082 = vrot.slane %v4069, 6
      %v4083 = vsel %vm3142, %v4081, %v4082
      %v4084 = vrot.slane %v4066, 6
      %v4085 = vrot.slane %v4070, 6
      %v4086 = vsel %vm3142, %v4084, %v4085
      %v4087 = vrot.slane %v4067, 6
      %v4088 = vrot.slane %v4071, 6
      %v4089 = vsel %vm3142, %v4087, %v4088
      %v4090 = vrot.slane %v4068, 6
      %v4091 = vrot.slane %v4072, 6
      %v4092 = vsel %vm3142, %v4090, %v4091
      %v4097 = vsel %vm3860, %v4083, 0.0
      %v4098 = vrot.slane %v4097, 4
      %v4099 = vadd.f32 %v4097, %v4098
      %v4100 = vrot.slane %v4099, 2
      %v4101 = vadd.f32 %v4099, %v4100
      %v4102 = vrot.slane %v4101, 1
      %v4103 = vadd.f32 %v4101, %v4102
      %v4104 = vsel %vm3039, %v4086, 0.0
      %v4105 = vrot.slane %v4104, 4
      %v4106 = vadd.f32 %v4104, %v4105
      %v4107 = vrot.slane %v4106, 2
      %v4108 = vadd.f32 %v4106, %v4107
      %v4109 = vrot.slane %v4108, 1
      %v4110 = vadd.f32 %v4108, %v4109
      %v4111 = vsel %vm3039, %v4089, 0.0
      %v4112 = vrot.slane %v4111, 4
      %v4113 = vadd.f32 %v4111, %v4112
      %v4114 = vrot.slane %v4113, 2
      %v4115 = vadd.f32 %v4113, %v4114
      %v4116 = vrot.slane %v4115, 1
      %v4117 = vadd.f32 %v4115, %v4116
      %v4118 = vsel %vm3882, %v4092, 0.0
      %v4119 = vrot.slane %v4118, 4
      %v4120 = vadd.f32 %v4118, %v4119
      %v4121 = vrot.slane %v4120, 2
      %v4122 = vadd.f32 %v4120, %v4121
      %v4123 = vrot.slane %v4122, 1
      %v4124 = vadd.f32 %v4122, %v4123
      %4129 = vrot.lane.b32.xlu0 %v4103, 100
      %v4130 = vpop.permute.xlu0 %4129
      %4131 = vrot.lane.b32.xlu0 %v4110, 100
      %v4132 = vpop.permute.xlu0 %4131
      %4133 = vrot.lane.b32.xlu0 %v4117, 100
      %v4134 = vpop.permute.xlu0 %4133
      %4135 = vrot.lane.b32.xlu0 %v4124, 100
      %v4136 = vpop.permute.xlu0 %4135
      %v4137 = vsel %vm556, %v4130, %v4132
      %v4138 = vsel %vm556, %v4132, %v4134
      %v4139 = vsel %vm556, %v4134, %v4136
      %v4144 = vadd.f32 %v3848, %v4137
      %v4145 = vadd.f32 %v3849, %v4138
      %v4146 = vadd.f32 %v3850, %v4139
      %v4147 = vadd.f32 %v3851, %v4136
      %4148 = vset.pattern.permute.xlu0 4
      %4149 = vperm.xlu0 %4148, %v3029
      %v4150 = vpop.permute.xlu0 %4149
      %v4152 = vmul.f32 %v3025, %v4150
      %v4153 = vmul.f32 %v3026, %v4150
      %v4154 = vmul.f32 %v3027, %v4150
      %v4155 = vmul.f32 %v3028, %v4150
      %vm4156 = vcmask 1045736
      %v4157 = vsel %vm4156, %v4152, 0.0
      %v4158 = vrot.slane %v4157, 4
      %v4159 = vadd.f32 %v4157, %v4158
      %v4160 = vrot.slane %v4159, 2
      %v4161 = vadd.f32 %v4159, %v4160
      %v4162 = vrot.slane %v4161, 1
      %v4163 = vadd.f32 %v4161, %v4162
      %v4164 = vsel %vm3039, %v4153, 0.0
      %v4165 = vrot.slane %v4164, 4
      %v4166 = vadd.f32 %v4164, %v4165
      %v4167 = vrot.slane %v4166, 2
      %v4168 = vadd.f32 %v4166, %v4167
      %v4169 = vrot.slane %v4168, 1
      %v4170 = vadd.f32 %v4168, %v4169
      %v4171 = vsel %vm3039, %v4154, 0.0
      %v4172 = vrot.slane %v4171, 4
      %v4173 = vadd.f32 %v4171, %v4172
      %v4174 = vrot.slane %v4173, 2
      %v4175 = vadd.f32 %v4173, %v4174
      %v4176 = vrot.slane %v4175, 1
      %v4177 = vadd.f32 %v4175, %v4176
      %vm4178 = vcmask 529408
      %v4179 = vsel %vm4178, %v4155, 0.0
      %v4180 = vrot.slane %v4179, 4
      %v4181 = vadd.f32 %v4179, %v4180
      %v4182 = vrot.slane %v4181, 2
      %v4183 = vadd.f32 %v4181, %v4182
      %v4184 = vrot.slane %v4183, 1
      %v4185 = vadd.f32 %v4183, %v4184
      %4190 = vrot.lane.b32.xlu0 %v4163, 99
      %v4191 = vpop.permute.xlu0 %4190
      %4192 = vrot.lane.b32.xlu0 %v4170, 99
      %v4193 = vpop.permute.xlu0 %4192
      %4194 = vrot.lane.b32.xlu0 %v4177, 99
      %v4195 = vpop.permute.xlu0 %4194
      %4196 = vrot.lane.b32.xlu0 %v4185, 99
      %v4197 = vpop.permute.xlu0 %4196
      %v4198 = vsel %vm633, %v4191, %v4193
      %v4199 = vsel %vm633, %v4193, %v4195
      %v4200 = vsel %vm633, %v4195, %v4197
      %v4205 = vadd.f32 %v3909, %v4198
      %v4206 = vadd.f32 %v3910, %v4199
      %v4207 = vadd.f32 %v3911, %v4200
      %v4208 = vadd.f32 %v3912, %v4197
      %4209 = vset.pattern.permute.xlu0 13
      %4210 = vperm.xlu0 %4209, %v3029
      %v4211 = vpop.permute.xlu0 %4210
      %v4213 = vmul.f32 %v3025, %v4211
      %v4214 = vmul.f32 %v3026, %v4211
      %v4215 = vmul.f32 %v3027, %v4211
      %v4216 = vmul.f32 %v3028, %v4211
      %v4217 = vsel %vm4156, %v4213, 0.0
      %v4218 = vrot.slane %v4217, 4
      %v4219 = vadd.f32 %v4217, %v4218
      %v4220 = vrot.slane %v4219, 2
      %v4221 = vadd.f32 %v4219, %v4220
      %v4222 = vrot.slane %v4221, 1
      %v4223 = vadd.f32 %v4221, %v4222
      %v4224 = vsel %vm3039, %v4214, 0.0
      %v4225 = vrot.slane %v4224, 4
      %v4226 = vadd.f32 %v4224, %v4225
      %v4227 = vrot.slane %v4226, 2
      %v4228 = vadd.f32 %v4226, %v4227
      %v4229 = vrot.slane %v4228, 1
      %v4230 = vadd.f32 %v4228, %v4229
      %v4231 = vsel %vm3039, %v4215, 0.0
      %v4232 = vrot.slane %v4231, 4
      %v4233 = vadd.f32 %v4231, %v4232
      %v4234 = vrot.slane %v4233, 2
      %v4235 = vadd.f32 %v4233, %v4234
      %v4236 = vrot.slane %v4235, 1
      %v4237 = vadd.f32 %v4235, %v4236
      %v4238 = vsel %vm4178, %v4216, 0.0
      %v4239 = vrot.slane %v4238, 4
      %v4240 = vadd.f32 %v4238, %v4239
      %v4241 = vrot.slane %v4240, 2
      %v4242 = vadd.f32 %v4240, %v4241
      %v4243 = vrot.slane %v4242, 1
      %v4244 = vadd.f32 %v4242, %v4243
      %4249 = vrot.lane.b32.xlu0 %v4223, 99
      %v4250 = vpop.permute.xlu0 %4249
      %4251 = vrot.lane.b32.xlu0 %v4230, 99
      %v4252 = vpop.permute.xlu0 %4251
      %4253 = vrot.lane.b32.xlu0 %v4237, 99
      %v4254 = vpop.permute.xlu0 %4253
      %4255 = vrot.lane.b32.xlu0 %v4244, 99
      %v4256 = vpop.permute.xlu0 %4255
      %v4257 = vsel %vm633, %v4250, %v4252
      %v4258 = vsel %vm633, %v4252, %v4254
      %v4259 = vsel %vm633, %v4254, %v4256
      %v4264 = vadd.f32 %v3968, %v4257
      %v4265 = vadd.f32 %v3969, %v4258
      %v4266 = vadd.f32 %v3970, %v4259
      %v4267 = vadd.f32 %v3971, %v4256
      %4268 = vset.pattern.permute.xlu0 22
      %4269 = vperm.xlu0 %4268, %v3029
      %v4270 = vpop.permute.xlu0 %4269
      %v4271 = vrot.slane %v4270, 2
      %v4273 = vmul.f32 %v3113, %v4271
      %v4274 = vmul.f32 %v3114, %v4271
      %v4275 = vmul.f32 %v3115, %v4271
      %v4276 = vmul.f32 %v3116, %v4271
      %v4277 = vmul.f32 %v3117, %v4271
      %v4278 = vmul.f32 %v3118, %v4271
      %v4279 = vmul.f32 %v3119, %v4271
      %v4280 = vmul.f32 %v3120, %v4271
      %v4289 = vrot.slane %v4273, 6
      %v4290 = vrot.slane %v4277, 6
      %v4291 = vsel %vm3142, %v4289, %v4290
      %v4292 = vrot.slane %v4274, 6
      %v4293 = vrot.slane %v4278, 6
      %v4294 = vsel %vm3142, %v4292, %v4293
      %v4295 = vrot.slane %v4275, 6
      %v4296 = vrot.slane %v4279, 6
      %v4297 = vsel %vm3142, %v4295, %v4296
      %v4298 = vrot.slane %v4276, 6
      %v4299 = vrot.slane %v4280, 6
      %v4300 = vsel %vm3142, %v4298, %v4299
      %v4305 = vsel %vm4156, %v4291, 0.0
      %v4306 = vrot.slane %v4305, 4
      %v4307 = vadd.f32 %v4305, %v4306
      %v4308 = vrot.slane %v4307, 2
      %v4309 = vadd.f32 %v4307, %v4308
      %v4310 = vrot.slane %v4309, 1
      %v4311 = vadd.f32 %v4309, %v4310
      %v4312 = vsel %vm3039, %v4294, 0.0
      %v4313 = vrot.slane %v4312, 4
      %v4314 = vadd.f32 %v4312, %v4313
      %v4315 = vrot.slane %v4314, 2
      %v4316 = vadd.f32 %v4314, %v4315
      %v4317 = vrot.slane %v4316, 1
      %v4318 = vadd.f32 %v4316, %v4317
      %v4319 = vsel %vm3039, %v4297, 0.0
      %v4320 = vrot.slane %v4319, 4
      %v4321 = vadd.f32 %v4319, %v4320
      %v4322 = vrot.slane %v4321, 2
      %v4323 = vadd.f32 %v4321, %v4322
      %v4324 = vrot.slane %v4323, 1
      %v4325 = vadd.f32 %v4323, %v4324
      %v4326 = vsel %vm4178, %v4300, 0.0
      %v4327 = vrot.slane %v4326, 4
      %v4328 = vadd.f32 %v4326, %v4327
      %v4329 = vrot.slane %v4328, 2
      %v4330 = vadd.f32 %v4328, %v4329
      %v4331 = vrot.slane %v4330, 1
      %v4332 = vadd.f32 %v4330, %v4331
      %4337 = vrot.lane.b32.xlu0 %v4311, 99
      %v4338 = vpop.permute.xlu0 %4337
      %4339 = vrot.lane.b32.xlu0 %v4318, 99
      %v4340 = vpop.permute.xlu0 %4339
      %4341 = vrot.lane.b32.xlu0 %v4325, 99
      %v4342 = vpop.permute.xlu0 %4341
      %4343 = vrot.lane.b32.xlu0 %v4332, 99
      %v4344 = vpop.permute.xlu0 %4343
      %v4345 = vsel %vm633, %v4338, %v4340
      %v4346 = vsel %vm633, %v4340, %v4342
      %v4347 = vsel %vm633, %v4342, %v4344
      %v4352 = vadd.f32 %v4056, %v4345
      %v4353 = vadd.f32 %v4057, %v4346
      %v4354 = vadd.f32 %v4058, %v4347
      %v4355 = vadd.f32 %v4059, %v4344
      %4356 = vset.pattern.permute.xlu0 31
      %4357 = vperm.xlu0 %4356, %v3029
      %v4358 = vpop.permute.xlu0 %4357
      %v4359 = vrot.slane %v4358, 2
      %v4361 = vmul.f32 %v3113, %v4359
      %v4362 = vmul.f32 %v3114, %v4359
      %v4363 = vmul.f32 %v3115, %v4359
      %v4364 = vmul.f32 %v3116, %v4359
      %v4365 = vmul.f32 %v3117, %v4359
      %v4366 = vmul.f32 %v3118, %v4359
      %v4367 = vmul.f32 %v3119, %v4359
      %v4368 = vmul.f32 %v3120, %v4359
      %v4377 = vrot.slane %v4361, 6
      %v4378 = vrot.slane %v4365, 6
      %v4379 = vsel %vm3142, %v4377, %v4378
      %v4380 = vrot.slane %v4362, 6
      %v4381 = vrot.slane %v4366, 6
      %v4382 = vsel %vm3142, %v4380, %v4381
      %v4383 = vrot.slane %v4363, 6
      %v4384 = vrot.slane %v4367, 6
      %v4385 = vsel %vm3142, %v4383, %v4384
      %v4386 = vrot.slane %v4364, 6
      %v4387 = vrot.slane %v4368, 6
      %v4388 = vsel %vm3142, %v4386, %v4387
      %v4393 = vsel %vm4156, %v4379, 0.0
      %v4394 = vrot.slane %v4393, 4
      %v4395 = vadd.f32 %v4393, %v4394
      %v4396 = vrot.slane %v4395, 2
      %v4397 = vadd.f32 %v4395, %v4396
      %v4398 = vrot.slane %v4397, 1
      %v4399 = vadd.f32 %v4397, %v4398
      %v4400 = vsel %vm3039, %v4382, 0.0
      %v4401 = vrot.slane %v4400, 4
      %v4402 = vadd.f32 %v4400, %v4401
      %v4403 = vrot.slane %v4402, 2
      %v4404 = vadd.f32 %v4402, %v4403
      %v4405 = vrot.slane %v4404, 1
      %v4406 = vadd.f32 %v4404, %v4405
      %v4407 = vsel %vm3039, %v4385, 0.0
      %v4408 = vrot.slane %v4407, 4
      %v4409 = vadd.f32 %v4407, %v4408
      %v4410 = vrot.slane %v4409, 2
      %v4411 = vadd.f32 %v4409, %v4410
      %v4412 = vrot.slane %v4411, 1
      %v4413 = vadd.f32 %v4411, %v4412
      %v4414 = vsel %vm4178, %v4388, 0.0
      %v4415 = vrot.slane %v4414, 4
      %v4416 = vadd.f32 %v4414, %v4415
      %v4417 = vrot.slane %v4416, 2
      %v4418 = vadd.f32 %v4416, %v4417
      %v4419 = vrot.slane %v4418, 1
      %v4420 = vadd.f32 %v4418, %v4419
      %4425 = vrot.lane.b32.xlu0 %v4399, 99
      %v4426 = vpop.permute.xlu0 %4425
      %4427 = vrot.lane.b32.xlu0 %v4406, 99
      %v4428 = vpop.permute.xlu0 %4427
      %4429 = vrot.lane.b32.xlu0 %v4413, 99
      %v4430 = vpop.permute.xlu0 %4429
      %4431 = vrot.lane.b32.xlu0 %v4420, 99
      %v4432 = vpop.permute.xlu0 %4431
      %v4433 = vsel %vm633, %v4426, %v4428
      %v4434 = vsel %vm633, %v4428, %v4430
      %v4435 = vsel %vm633, %v4430, %v4432
      %v4440 = vadd.f32 %v4144, %v4433
      %v4441 = vadd.f32 %v4145, %v4434
      %v4442 = vadd.f32 %v4146, %v4435
      %v4443 = vadd.f32 %v4147, %v4432
      %4444 = vset.pattern.permute.xlu0 5
      %4445 = vperm.xlu0 %4444, %v3029
      %v4446 = vpop.permute.xlu0 %4445
      %v4448 = vmul.f32 %v3025, %v4446
      %v4449 = vmul.f32 %v3026, %v4446
      %v4450 = vmul.f32 %v3027, %v4446
      %v4451 = vmul.f32 %v3028, %v4446
      %vm4452 = vcmask 1045744
      %v4453 = vsel %vm4452, %v4448, 0.0
      %v4454 = vrot.slane %v4453, 4
      %v4455 = vadd.f32 %v4453, %v4454
      %v4456 = vrot.slane %v4455, 2
      %v4457 = vadd.f32 %v4455, %v4456
      %v4458 = vrot.slane %v4457, 1
      %v4459 = vadd.f32 %v4457, %v4458
      %v4460 = vsel %vm3039, %v4449, 0.0
      %v4461 = vrot.slane %v4460, 4
      %v4462 = vadd.f32 %v4460, %v4461
      %v4463 = vrot.slane %v4462, 2
      %v4464 = vadd.f32 %v4462, %v4463
      %v4465 = vrot.slane %v4464, 1
      %v4466 = vadd.f32 %v4464, %v4465
      %v4467 = vsel %vm3039, %v4450, 0.0
      %v4468 = vrot.slane %v4467, 4
      %v4469 = vadd.f32 %v4467, %v4468
      %v4470 = vrot.slane %v4469, 2
      %v4471 = vadd.f32 %v4469, %v4470
      %v4472 = vrot.slane %v4471, 1
      %v4473 = vadd.f32 %v4471, %v4472
      %vm4474 = vcmask 537600
      %v4475 = vsel %vm4474, %v4451, 0.0
      %v4476 = vrot.slane %v4475, 4
      %v4477 = vadd.f32 %v4475, %v4476
      %v4478 = vrot.slane %v4477, 2
      %v4479 = vadd.f32 %v4477, %v4478
      %v4480 = vrot.slane %v4479, 1
      %v4481 = vadd.f32 %v4479, %v4480
      %4486 = vrot.lane.b32.xlu0 %v4459, 98
      %v4487 = vpop.permute.xlu0 %4486
      %4488 = vrot.lane.b32.xlu0 %v4466, 98
      %v4489 = vpop.permute.xlu0 %4488
      %4490 = vrot.lane.b32.xlu0 %v4473, 98
      %v4491 = vpop.permute.xlu0 %4490
      %4492 = vrot.lane.b32.xlu0 %v4481, 98
      %v4493 = vpop.permute.xlu0 %4492
      %v4494 = vsel %vm1826, %v4487, %v4489
      %v4495 = vsel %vm1826, %v4489, %v4491
      %v4496 = vsel %vm1826, %v4491, %v4493
      %v4501 = vadd.f32 %v4205, %v4494
      %v4502 = vadd.f32 %v4206, %v4495
      %v4503 = vadd.f32 %v4207, %v4496
      %v4504 = vadd.f32 %v4208, %v4493
      %4505 = vset.pattern.permute.xlu0 14
      %4506 = vperm.xlu0 %4505, %v3029
      %v4507 = vpop.permute.xlu0 %4506
      %v4509 = vmul.f32 %v3025, %v4507
      %v4510 = vmul.f32 %v3026, %v4507
      %v4511 = vmul.f32 %v3027, %v4507
      %v4512 = vmul.f32 %v3028, %v4507
      %v4513 = vsel %vm4452, %v4509, 0.0
      %v4514 = vrot.slane %v4513, 4
      %v4515 = vadd.f32 %v4513, %v4514
      %v4516 = vrot.slane %v4515, 2
      %v4517 = vadd.f32 %v4515, %v4516
      %v4518 = vrot.slane %v4517, 1
      %v4519 = vadd.f32 %v4517, %v4518
      %v4520 = vsel %vm3039, %v4510, 0.0
      %v4521 = vrot.slane %v4520, 4
      %v4522 = vadd.f32 %v4520, %v4521
      %v4523 = vrot.slane %v4522, 2
      %v4524 = vadd.f32 %v4522, %v4523
      %v4525 = vrot.slane %v4524, 1
      %v4526 = vadd.f32 %v4524, %v4525
      %v4527 = vsel %vm3039, %v4511, 0.0
      %v4528 = vrot.slane %v4527, 4
      %v4529 = vadd.f32 %v4527, %v4528
      %v4530 = vrot.slane %v4529, 2
      %v4531 = vadd.f32 %v4529, %v4530
      %v4532 = vrot.slane %v4531, 1
      %v4533 = vadd.f32 %v4531, %v4532
      %v4534 = vsel %vm4474, %v4512, 0.0
      %v4535 = vrot.slane %v4534, 4
      %v4536 = vadd.f32 %v4534, %v4535
      %v4537 = vrot.slane %v4536, 2
      %v4538 = vadd.f32 %v4536, %v4537
      %v4539 = vrot.slane %v4538, 1
      %v4540 = vadd.f32 %v4538, %v4539
      %4545 = vrot.lane.b32.xlu0 %v4519, 98
      %v4546 = vpop.permute.xlu0 %4545
      %4547 = vrot.lane.b32.xlu0 %v4526, 98
      %v4548 = vpop.permute.xlu0 %4547
      %4549 = vrot.lane.b32.xlu0 %v4533, 98
      %v4550 = vpop.permute.xlu0 %4549
      %4551 = vrot.lane.b32.xlu0 %v4540, 98
      %v4552 = vpop.permute.xlu0 %4551
      %v4553 = vsel %vm1826, %v4546, %v4548
      %v4554 = vsel %vm1826, %v4548, %v4550
      %v4555 = vsel %vm1826, %v4550, %v4552
      %v4560 = vadd.f32 %v4264, %v4553
      %v4561 = vadd.f32 %v4265, %v4554
      %v4562 = vadd.f32 %v4266, %v4555
      %v4563 = vadd.f32 %v4267, %v4552
      %4564 = vset.pattern.permute.xlu0 23
      %4565 = vperm.xlu0 %4564, %v3029
      %v4566 = vpop.permute.xlu0 %4565
      %v4567 = vrot.slane %v4566, 2
      %v4569 = vmul.f32 %v3113, %v4567
      %v4570 = vmul.f32 %v3114, %v4567
      %v4571 = vmul.f32 %v3115, %v4567
      %v4572 = vmul.f32 %v3116, %v4567
      %v4573 = vmul.f32 %v3117, %v4567
      %v4574 = vmul.f32 %v3118, %v4567
      %v4575 = vmul.f32 %v3119, %v4567
      %v4576 = vmul.f32 %v3120, %v4567
      %v4585 = vrot.slane %v4569, 6
      %v4586 = vrot.slane %v4573, 6
      %v4587 = vsel %vm3142, %v4585, %v4586
      %v4588 = vrot.slane %v4570, 6
      %v4589 = vrot.slane %v4574, 6
      %v4590 = vsel %vm3142, %v4588, %v4589
      %v4591 = vrot.slane %v4571, 6
      %v4592 = vrot.slane %v4575, 6
      %v4593 = vsel %vm3142, %v4591, %v4592
      %v4594 = vrot.slane %v4572, 6
      %v4595 = vrot.slane %v4576, 6
      %v4596 = vsel %vm3142, %v4594, %v4595
      %v4601 = vsel %vm4452, %v4587, 0.0
      %v4602 = vrot.slane %v4601, 4
      %v4603 = vadd.f32 %v4601, %v4602
      %v4604 = vrot.slane %v4603, 2
      %v4605 = vadd.f32 %v4603, %v4604
      %v4606 = vrot.slane %v4605, 1
      %v4607 = vadd.f32 %v4605, %v4606
      %v4608 = vsel %vm3039, %v4590, 0.0
      %v4609 = vrot.slane %v4608, 4
      %v4610 = vadd.f32 %v4608, %v4609
      %v4611 = vrot.slane %v4610, 2
      %v4612 = vadd.f32 %v4610, %v4611
      %v4613 = vrot.slane %v4612, 1
      %v4614 = vadd.f32 %v4612, %v4613
      %v4615 = vsel %vm3039, %v4593, 0.0
      %v4616 = vrot.slane %v4615, 4
      %v4617 = vadd.f32 %v4615, %v4616
      %v4618 = vrot.slane %v4617, 2
      %v4619 = vadd.f32 %v4617, %v4618
      %v4620 = vrot.slane %v4619, 1
      %v4621 = vadd.f32 %v4619, %v4620
      %v4622 = vsel %vm4474, %v4596, 0.0
      %v4623 = vrot.slane %v4622, 4
      %v4624 = vadd.f32 %v4622, %v4623
      %v4625 = vrot.slane %v4624, 2
      %v4626 = vadd.f32 %v4624, %v4625
      %v4627 = vrot.slane %v4626, 1
      %v4628 = vadd.f32 %v4626, %v4627
      %4633 = vrot.lane.b32.xlu0 %v4607, 98
      %v4634 = vpop.permute.xlu0 %4633
      %4635 = vrot.lane.b32.xlu0 %v4614, 98
      %v4636 = vpop.permute.xlu0 %4635
      %4637 = vrot.lane.b32.xlu0 %v4621, 98
      %v4638 = vpop.permute.xlu0 %4637
      %4639 = vrot.lane.b32.xlu0 %v4628, 98
      %v4640 = vpop.permute.xlu0 %4639
      %v4641 = vsel %vm1826, %v4634, %v4636
      %v4642 = vsel %vm1826, %v4636, %v4638
      %v4643 = vsel %vm1826, %v4638, %v4640
      %v4648 = vadd.f32 %v4352, %v4641
      %v4649 = vadd.f32 %v4353, %v4642
      %v4650 = vadd.f32 %v4354, %v4643
      %v4651 = vadd.f32 %v4355, %v4640
      %4652 = vset.pattern.permute.xlu0 32
      %4653 = vperm.xlu0 %4652, %v3029
      %v4654 = vpop.permute.xlu0 %4653
      %v4655 = vrot.slane %v4654, 2
      %v4657 = vmul.f32 %v3113, %v4655
      %v4658 = vmul.f32 %v3114, %v4655
      %v4659 = vmul.f32 %v3115, %v4655
      %v4660 = vmul.f32 %v3116, %v4655
      %v4661 = vmul.f32 %v3117, %v4655
      %v4662 = vmul.f32 %v3118, %v4655
      %v4663 = vmul.f32 %v3119, %v4655
      %v4664 = vmul.f32 %v3120, %v4655
      %v4673 = vrot.slane %v4657, 6
      %v4674 = vrot.slane %v4661, 6
      %v4675 = vsel %vm3142, %v4673, %v4674
      %v4676 = vrot.slane %v4658, 6
      %v4677 = vrot.slane %v4662, 6
      %v4678 = vsel %vm3142, %v4676, %v4677
      %v4679 = vrot.slane %v4659, 6
      %v4680 = vrot.slane %v4663, 6
      %v4681 = vsel %vm3142, %v4679, %v4680
      %v4682 = vrot.slane %v4660, 6
      %v4683 = vrot.slane %v4664, 6
      %v4684 = vsel %vm3142, %v4682, %v4683
      %v4689 = vsel %vm4452, %v4675, 0.0
      %v4690 = vrot.slane %v4689, 4
      %v4691 = vadd.f32 %v4689, %v4690
      %v4692 = vrot.slane %v4691, 2
      %v4693 = vadd.f32 %v4691, %v4692
      %v4694 = vrot.slane %v4693, 1
      %v4695 = vadd.f32 %v4693, %v4694
      %v4696 = vsel %vm3039, %v4678, 0.0
      %v4697 = vrot.slane %v4696, 4
      %v4698 = vadd.f32 %v4696, %v4697
      %v4699 = vrot.slane %v4698, 2
      %v4700 = vadd.f32 %v4698, %v4699
      %v4701 = vrot.slane %v4700, 1
      %v4702 = vadd.f32 %v4700, %v4701
      %v4703 = vsel %vm3039, %v4681, 0.0
      %v4704 = vrot.slane %v4703, 4
      %v4705 = vadd.f32 %v4703, %v4704
      %v4706 = vrot.slane %v4705, 2
      %v4707 = vadd.f32 %v4705, %v4706
      %v4708 = vrot.slane %v4707, 1
      %v4709 = vadd.f32 %v4707, %v4708
      %v4710 = vsel %vm4474, %v4684, 0.0
      %v4711 = vrot.slane %v4710, 4
      %v4712 = vadd.f32 %v4710, %v4711
      %v4713 = vrot.slane %v4712, 2
      %v4714 = vadd.f32 %v4712, %v4713
      %v4715 = vrot.slane %v4714, 1
      %v4716 = vadd.f32 %v4714, %v4715
      %4721 = vrot.lane.b32.xlu0 %v4695, 98
      %v4722 = vpop.permute.xlu0 %4721
      %4723 = vrot.lane.b32.xlu0 %v4702, 98
      %v4724 = vpop.permute.xlu0 %4723
      %4725 = vrot.lane.b32.xlu0 %v4709, 98
      %v4726 = vpop.permute.xlu0 %4725
      %4727 = vrot.lane.b32.xlu0 %v4716, 98
      %v4728 = vpop.permute.xlu0 %4727
      %v4729 = vsel %vm1826, %v4722, %v4724
      %v4730 = vsel %vm1826, %v4724, %v4726
      %v4731 = vsel %vm1826, %v4726, %v4728
      %v4736 = vadd.f32 %v4440, %v4729
      %v4737 = vadd.f32 %v4441, %v4730
      %v4738 = vadd.f32 %v4442, %v4731
      %v4739 = vadd.f32 %v4443, %v4728
      %4740 = vset.pattern.permute.xlu0 6
      %4741 = vperm.xlu0 %4740, %v3029
      %v4742 = vpop.permute.xlu0 %4741
      %v4744 = vmul.f32 %v3025, %v4742
      %v4745 = vmul.f32 %v3026, %v4742
      %v4746 = vmul.f32 %v3027, %v4742
      %v4747 = vmul.f32 %v3028, %v4742
      %vm4748 = vcmask 1045952
      %v4749 = vsel %vm4748, %v4744, 0.0
      %v4750 = vrot.slane %v4749, 4
      %v4751 = vadd.f32 %v4749, %v4750
      %v4752 = vrot.slane %v4751, 2
      %v4753 = vadd.f32 %v4751, %v4752
      %v4754 = vrot.slane %v4753, 1
      %v4755 = vadd.f32 %v4753, %v4754
      %v4756 = vsel %vm3039, %v4745, 0.0
      %v4757 = vrot.slane %v4756, 4
      %v4758 = vadd.f32 %v4756, %v4757
      %v4759 = vrot.slane %v4758, 2
      %v4760 = vadd.f32 %v4758, %v4759
      %v4761 = vrot.slane %v4760, 1
      %v4762 = vadd.f32 %v4760, %v4761
      %v4763 = vsel %vm3039, %v4746, 0.0
      %v4764 = vrot.slane %v4763, 4
      %v4765 = vadd.f32 %v4763, %v4764
      %v4766 = vrot.slane %v4765, 2
      %v4767 = vadd.f32 %v4765, %v4766
      %v4768 = vrot.slane %v4767, 1
      %v4769 = vadd.f32 %v4767, %v4768
      %vm4770 = vcmask 750592
      %v4771 = vsel %vm4770, %v4747, 0.0
      %v4772 = vrot.slane %v4771, 4
      %v4773 = vadd.f32 %v4771, %v4772
      %v4774 = vrot.slane %v4773, 2
      %v4775 = vadd.f32 %v4773, %v4774
      %v4776 = vrot.slane %v4775, 1
      %v4777 = vadd.f32 %v4775, %v4776
      %4782 = vrot.lane.b32.xlu0 %v4755, 72
      %v4783 = vpop.permute.xlu0 %4782
      %4784 = vrot.lane.b32.xlu0 %v4762, 72
      %v4785 = vpop.permute.xlu0 %4784
      %4786 = vrot.lane.b32.xlu0 %v4769, 72
      %v4787 = vpop.permute.xlu0 %4786
      %4788 = vrot.lane.b32.xlu0 %v4777, 72
      %v4789 = vpop.permute.xlu0 %4788
      %v4790 = vsel %vm1283, %v4783, %v4785
      %v4791 = vsel %vm1283, %v4785, %v4787
      %v4792 = vsel %vm1283, %v4787, %v4789
      %v4797 = vadd.f32 %v4501, %v4790
      %v4798 = vadd.f32 %v4502, %v4791
      %v4799 = vadd.f32 %v4503, %v4792
      %v4800 = vadd.f32 %v4504, %v4789
      %4801 = vset.pattern.permute.xlu0 15
      %4802 = vperm.xlu0 %4801, %v3029
      %v4803 = vpop.permute.xlu0 %4802
      %v4805 = vmul.f32 %v3025, %v4803
      %v4806 = vmul.f32 %v3026, %v4803
      %v4807 = vmul.f32 %v3027, %v4803
      %v4808 = vmul.f32 %v3028, %v4803
      %v4809 = vsel %vm4748, %v4805, 0.0
      %v4810 = vrot.slane %v4809, 4
      %v4811 = vadd.f32 %v4809, %v4810
      %v4812 = vrot.slane %v4811, 2
      %v4813 = vadd.f32 %v4811, %v4812
      %v4814 = vrot.slane %v4813, 1
      %v4815 = vadd.f32 %v4813, %v4814
      %v4816 = vsel %vm3039, %v4806, 0.0
      %v4817 = vrot.slane %v4816, 4
      %v4818 = vadd.f32 %v4816, %v4817
      %v4819 = vrot.slane %v4818, 2
      %v4820 = vadd.f32 %v4818, %v4819
      %v4821 = vrot.slane %v4820, 1
      %v4822 = vadd.f32 %v4820, %v4821
      %v4823 = vsel %vm3039, %v4807, 0.0
      %v4824 = vrot.slane %v4823, 4
      %v4825 = vadd.f32 %v4823, %v4824
      %v4826 = vrot.slane %v4825, 2
      %v4827 = vadd.f32 %v4825, %v4826
      %v4828 = vrot.slane %v4827, 1
      %v4829 = vadd.f32 %v4827, %v4828
      %v4830 = vsel %vm4770, %v4808, 0.0
      %v4831 = vrot.slane %v4830, 4
      %v4832 = vadd.f32 %v4830, %v4831
      %v4833 = vrot.slane %v4832, 2
      %v4834 = vadd.f32 %v4832, %v4833
      %v4835 = vrot.slane %v4834, 1
      %v4836 = vadd.f32 %v4834, %v4835
      %4841 = vrot.lane.b32.xlu0 %v4815, 72
      %v4842 = vpop.permute.xlu0 %4841
      %4843 = vrot.lane.b32.xlu0 %v4822, 72
      %v4844 = vpop.permute.xlu0 %4843
      %4845 = vrot.lane.b32.xlu0 %v4829, 72
      %v4846 = vpop.permute.xlu0 %4845
      %4847 = vrot.lane.b32.xlu0 %v4836, 72
      %v4848 = vpop.permute.xlu0 %4847
      %v4849 = vsel %vm1283, %v4842, %v4844
      %v4850 = vsel %vm1283, %v4844, %v4846
      %v4851 = vsel %vm1283, %v4846, %v4848
      %v4856 = vadd.f32 %v4560, %v4849
      %v4857 = vadd.f32 %v4561, %v4850
      %v4858 = vadd.f32 %v4562, %v4851
      %v4859 = vadd.f32 %v4563, %v4848
      %4860 = vset.pattern.permute.xlu0 24
      %4861 = vperm.xlu0 %4860, %v3029
      %v4862 = vpop.permute.xlu0 %4861
      %v4863 = vrot.slane %v4862, 2
      %v4865 = vmul.f32 %v3113, %v4863
      %v4866 = vmul.f32 %v3114, %v4863
      %v4867 = vmul.f32 %v3115, %v4863
      %v4868 = vmul.f32 %v3116, %v4863
      %v4869 = vmul.f32 %v3117, %v4863
      %v4870 = vmul.f32 %v3118, %v4863
      %v4871 = vmul.f32 %v3119, %v4863
      %v4872 = vmul.f32 %v3120, %v4863
      %v4881 = vrot.slane %v4865, 6
      %v4882 = vrot.slane %v4869, 6
      %v4883 = vsel %vm3142, %v4881, %v4882
      %v4884 = vrot.slane %v4866, 6
      %v4885 = vrot.slane %v4870, 6
      %v4886 = vsel %vm3142, %v4884, %v4885
      %v4887 = vrot.slane %v4867, 6
      %v4888 = vrot.slane %v4871, 6
      %v4889 = vsel %vm3142, %v4887, %v4888
      %v4890 = vrot.slane %v4868, 6
      %v4891 = vrot.slane %v4872, 6
      %v4892 = vsel %vm3142, %v4890, %v4891
      %v4897 = vsel %vm4748, %v4883, 0.0
      %v4898 = vrot.slane %v4897, 4
      %v4899 = vadd.f32 %v4897, %v4898
      %v4900 = vrot.slane %v4899, 2
      %v4901 = vadd.f32 %v4899, %v4900
      %v4902 = vrot.slane %v4901, 1
      %v4903 = vadd.f32 %v4901, %v4902
      %v4904 = vsel %vm3039, %v4886, 0.0
      %v4905 = vrot.slane %v4904, 4
      %v4906 = vadd.f32 %v4904, %v4905
      %v4907 = vrot.slane %v4906, 2
      %v4908 = vadd.f32 %v4906, %v4907
      %v4909 = vrot.slane %v4908, 1
      %v4910 = vadd.f32 %v4908, %v4909
      %v4911 = vsel %vm3039, %v4889, 0.0
      %v4912 = vrot.slane %v4911, 4
      %v4913 = vadd.f32 %v4911, %v4912
      %v4914 = vrot.slane %v4913, 2
      %v4915 = vadd.f32 %v4913, %v4914
      %v4916 = vrot.slane %v4915, 1
      %v4917 = vadd.f32 %v4915, %v4916
      %v4918 = vsel %vm4770, %v4892, 0.0
      %v4919 = vrot.slane %v4918, 4
      %v4920 = vadd.f32 %v4918, %v4919
      %v4921 = vrot.slane %v4920, 2
      %v4922 = vadd.f32 %v4920, %v4921
      %v4923 = vrot.slane %v4922, 1
      %v4924 = vadd.f32 %v4922, %v4923
      %4929 = vrot.lane.b32.xlu0 %v4903, 72
      %v4930 = vpop.permute.xlu0 %4929
      %4931 = vrot.lane.b32.xlu0 %v4910, 72
      %v4932 = vpop.permute.xlu0 %4931
      %4933 = vrot.lane.b32.xlu0 %v4917, 72
      %v4934 = vpop.permute.xlu0 %4933
      %4935 = vrot.lane.b32.xlu0 %v4924, 72
      %v4936 = vpop.permute.xlu0 %4935
      %v4937 = vsel %vm1283, %v4930, %v4932
      %v4938 = vsel %vm1283, %v4932, %v4934
      %v4939 = vsel %vm1283, %v4934, %v4936
      %v4944 = vadd.f32 %v4648, %v4937
      %v4945 = vadd.f32 %v4649, %v4938
      %v4946 = vadd.f32 %v4650, %v4939
      %v4947 = vadd.f32 %v4651, %v4936
      %4948 = vset.pattern.permute.xlu0 33
      %4949 = vperm.xlu0 %4948, %v3029
      %v4950 = vpop.permute.xlu0 %4949
      %v4951 = vrot.slane %v4950, 2
      %v4953 = vmul.f32 %v3113, %v4951
      %v4954 = vmul.f32 %v3114, %v4951
      %v4955 = vmul.f32 %v3115, %v4951
      %v4956 = vmul.f32 %v3116, %v4951
      %v4957 = vmul.f32 %v3117, %v4951
      %v4958 = vmul.f32 %v3118, %v4951
      %v4959 = vmul.f32 %v3119, %v4951
      %v4960 = vmul.f32 %v3120, %v4951
      %v4969 = vrot.slane %v4953, 6
      %v4970 = vrot.slane %v4957, 6
      %v4971 = vsel %vm3142, %v4969, %v4970
      %v4972 = vrot.slane %v4954, 6
      %v4973 = vrot.slane %v4958, 6
      %v4974 = vsel %vm3142, %v4972, %v4973
      %v4975 = vrot.slane %v4955, 6
      %v4976 = vrot.slane %v4959, 6
      %v4977 = vsel %vm3142, %v4975, %v4976
      %v4978 = vrot.slane %v4956, 6
      %v4979 = vrot.slane %v4960, 6
      %v4980 = vsel %vm3142, %v4978, %v4979
      %v4985 = vsel %vm4748, %v4971, 0.0
      %v4986 = vrot.slane %v4985, 4
      %v4987 = vadd.f32 %v4985, %v4986
      %v4988 = vrot.slane %v4987, 2
      %v4989 = vadd.f32 %v4987, %v4988
      %v4990 = vrot.slane %v4989, 1
      %v4991 = vadd.f32 %v4989, %v4990
      %v4992 = vsel %vm3039, %v4974, 0.0
      %v4993 = vrot.slane %v4992, 4
      %v4994 = vadd.f32 %v4992, %v4993
      %v4995 = vrot.slane %v4994, 2
      %v4996 = vadd.f32 %v4994, %v4995
      %v4997 = vrot.slane %v4996, 1
      %v4998 = vadd.f32 %v4996, %v4997
      %v4999 = vsel %vm3039, %v4977, 0.0
      %v5000 = vrot.slane %v4999, 4
      %v5001 = vadd.f32 %v4999, %v5000
      %v5002 = vrot.slane %v5001, 2
      %v5003 = vadd.f32 %v5001, %v5002
      %v5004 = vrot.slane %v5003, 1
      %v5005 = vadd.f32 %v5003, %v5004
      %v5006 = vsel %vm4770, %v4980, 0.0
      %v5007 = vrot.slane %v5006, 4
      %v5008 = vadd.f32 %v5006, %v5007
      %v5009 = vrot.slane %v5008, 2
      %v5010 = vadd.f32 %v5008, %v5009
      %v5011 = vrot.slane %v5010, 1
      %v5012 = vadd.f32 %v5010, %v5011
      %5017 = vrot.lane.b32.xlu0 %v4991, 72
      %v5018 = vpop.permute.xlu0 %5017
      %5019 = vrot.lane.b32.xlu0 %v4998, 72
      %v5020 = vpop.permute.xlu0 %5019
      %5021 = vrot.lane.b32.xlu0 %v5005, 72
      %v5022 = vpop.permute.xlu0 %5021
      %5023 = vrot.lane.b32.xlu0 %v5012, 72
      %v5024 = vpop.permute.xlu0 %5023
      %v5025 = vsel %vm1283, %v5018, %v5020
      %v5026 = vsel %vm1283, %v5020, %v5022
      %v5027 = vsel %vm1283, %v5022, %v5024
      %v5032 = vadd.f32 %v4736, %v5025
      %v5033 = vadd.f32 %v4737, %v5026
      %v5034 = vadd.f32 %v4738, %v5027
      %v5035 = vadd.f32 %v4739, %v5024
      %5036 = vset.pattern.permute.xlu0 7
      %5037 = vperm.xlu0 %5036, %v3029
      %v5038 = vpop.permute.xlu0 %5037
      %v5040 = vmul.f32 %v3025, %v5038
      %v5041 = vmul.f32 %v3026, %v5038
      %v5042 = vmul.f32 %v3027, %v5038
      %v5043 = vmul.f32 %v3028, %v5038
      %vm5044 = vcmask 1045960
      %v5045 = vsel %vm5044, %v5040, 0.0
      %v5046 = vrot.slane %v5045, 4
      %v5047 = vadd.f32 %v5045, %v5046
      %v5048 = vrot.slane %v5047, 2
      %v5049 = vadd.f32 %v5047, %v5048
      %v5050 = vrot.slane %v5049, 1
      %v5051 = vadd.f32 %v5049, %v5050
      %v5052 = vsel %vm3039, %v5041, 0.0
      %v5053 = vrot.slane %v5052, 4
      %v5054 = vadd.f32 %v5052, %v5053
      %v5055 = vrot.slane %v5054, 2
      %v5056 = vadd.f32 %v5054, %v5055
      %v5057 = vrot.slane %v5056, 1
      %v5058 = vadd.f32 %v5056, %v5057
      %v5059 = vsel %vm3039, %v5042, 0.0
      %v5060 = vrot.slane %v5059, 4
      %v5061 = vadd.f32 %v5059, %v5060
      %v5062 = vrot.slane %v5061, 2
      %v5063 = vadd.f32 %v5061, %v5062
      %v5064 = vrot.slane %v5063, 1
      %v5065 = vadd.f32 %v5063, %v5064
      %vm5066 = vcmask 758784
      %v5067 = vsel %vm5066, %v5043, 0.0
      %v5068 = vrot.slane %v5067, 4
      %v5069 = vadd.f32 %v5067, %v5068
      %v5070 = vrot.slane %v5069, 2
      %v5071 = vadd.f32 %v5069, %v5070
      %v5072 = vrot.slane %v5071, 1
      %v5073 = vadd.f32 %v5071, %v5072
      %5078 = vrot.lane.b32.xlu0 %v5051, 71
      %v5079 = vpop.permute.xlu0 %5078
      %5080 = vrot.lane.b32.xlu0 %v5058, 71
      %v5081 = vpop.permute.xlu0 %5080
      %5082 = vrot.lane.b32.xlu0 %v5065, 71
      %v5083 = vpop.permute.xlu0 %5082
      %5084 = vrot.lane.b32.xlu0 %v5073, 71
      %v5085 = vpop.permute.xlu0 %5084
      %v5086 = vsel %vm2077, %v5079, %v5081
      %v5087 = vsel %vm2077, %v5081, %v5083
      %v5088 = vsel %vm2077, %v5083, %v5085
      %v5093 = vadd.f32 %v4797, %v5086
      %v5094 = vadd.f32 %v4798, %v5087
      %v5095 = vadd.f32 %v4799, %v5088
      %v5096 = vadd.f32 %v4800, %v5085
      %5097 = vset.pattern.permute.xlu0 16
      %5098 = vperm.xlu0 %5097, %v3029
      %v5099 = vpop.permute.xlu0 %5098
      %v5101 = vmul.f32 %v3025, %v5099
      %v5102 = vmul.f32 %v3026, %v5099
      %v5103 = vmul.f32 %v3027, %v5099
      %v5104 = vmul.f32 %v3028, %v5099
      %v5105 = vsel %vm5044, %v5101, 0.0
      %v5106 = vrot.slane %v5105, 4
      %v5107 = vadd.f32 %v5105, %v5106
      %v5108 = vrot.slane %v5107, 2
      %v5109 = vadd.f32 %v5107, %v5108
      %v5110 = vrot.slane %v5109, 1
      %v5111 = vadd.f32 %v5109, %v5110
      %v5112 = vsel %vm3039, %v5102, 0.0
      %v5113 = vrot.slane %v5112, 4
      %v5114 = vadd.f32 %v5112, %v5113
      %v5115 = vrot.slane %v5114, 2
      %v5116 = vadd.f32 %v5114, %v5115
      %v5117 = vrot.slane %v5116, 1
      %v5118 = vadd.f32 %v5116, %v5117
      %v5119 = vsel %vm3039, %v5103, 0.0
      %v5120 = vrot.slane %v5119, 4
      %v5121 = vadd.f32 %v5119, %v5120
      %v5122 = vrot.slane %v5121, 2
      %v5123 = vadd.f32 %v5121, %v5122
      %v5124 = vrot.slane %v5123, 1
      %v5125 = vadd.f32 %v5123, %v5124
      %v5126 = vsel %vm5066, %v5104, 0.0
      %v5127 = vrot.slane %v5126, 4
      %v5128 = vadd.f32 %v5126, %v5127
      %v5129 = vrot.slane %v5128, 2
      %v5130 = vadd.f32 %v5128, %v5129
      %v5131 = vrot.slane %v5130, 1
      %v5132 = vadd.f32 %v5130, %v5131
      %5137 = vrot.lane.b32.xlu0 %v5111, 71
      %v5138 = vpop.permute.xlu0 %5137
      %5139 = vrot.lane.b32.xlu0 %v5118, 71
      %v5140 = vpop.permute.xlu0 %5139
      %5141 = vrot.lane.b32.xlu0 %v5125, 71
      %v5142 = vpop.permute.xlu0 %5141
      %5143 = vrot.lane.b32.xlu0 %v5132, 71
      %v5144 = vpop.permute.xlu0 %5143
      %v5145 = vsel %vm2077, %v5138, %v5140
      %v5146 = vsel %vm2077, %v5140, %v5142
      %v5147 = vsel %vm2077, %v5142, %v5144
      %v5152 = vadd.f32 %v4856, %v5145
      %v5153 = vadd.f32 %v4857, %v5146
      %v5154 = vadd.f32 %v4858, %v5147
      %v5155 = vadd.f32 %v4859, %v5144
      %5156 = vset.pattern.permute.xlu0 25
      %5157 = vperm.xlu0 %5156, %v3029
      %v5158 = vpop.permute.xlu0 %5157
      %v5159 = vrot.slane %v5158, 2
      %v5161 = vmul.f32 %v3113, %v5159
      %v5162 = vmul.f32 %v3114, %v5159
      %v5163 = vmul.f32 %v3115, %v5159
      %v5164 = vmul.f32 %v3116, %v5159
      %v5165 = vmul.f32 %v3117, %v5159
      %v5166 = vmul.f32 %v3118, %v5159
      %v5167 = vmul.f32 %v3119, %v5159
      %v5168 = vmul.f32 %v3120, %v5159
      %v5177 = vrot.slane %v5161, 6
      %v5178 = vrot.slane %v5165, 6
      %v5179 = vsel %vm3142, %v5177, %v5178
      %v5180 = vrot.slane %v5162, 6
      %v5181 = vrot.slane %v5166, 6
      %v5182 = vsel %vm3142, %v5180, %v5181
      %v5183 = vrot.slane %v5163, 6
      %v5184 = vrot.slane %v5167, 6
      %v5185 = vsel %vm3142, %v5183, %v5184
      %v5186 = vrot.slane %v5164, 6
      %v5187 = vrot.slane %v5168, 6
      %v5188 = vsel %vm3142, %v5186, %v5187
      %v5193 = vsel %vm5044, %v5179, 0.0
      %v5194 = vrot.slane %v5193, 4
      %v5195 = vadd.f32 %v5193, %v5194
      %v5196 = vrot.slane %v5195, 2
      %v5197 = vadd.f32 %v5195, %v5196
      %v5198 = vrot.slane %v5197, 1
      %v5199 = vadd.f32 %v5197, %v5198
      %v5200 = vsel %vm3039, %v5182, 0.0
      %v5201 = vrot.slane %v5200, 4
      %v5202 = vadd.f32 %v5200, %v5201
      %v5203 = vrot.slane %v5202, 2
      %v5204 = vadd.f32 %v5202, %v5203
      %v5205 = vrot.slane %v5204, 1
      %v5206 = vadd.f32 %v5204, %v5205
      %v5207 = vsel %vm3039, %v5185, 0.0
      %v5208 = vrot.slane %v5207, 4
      %v5209 = vadd.f32 %v5207, %v5208
      %v5210 = vrot.slane %v5209, 2
      %v5211 = vadd.f32 %v5209, %v5210
      %v5212 = vrot.slane %v5211, 1
      %v5213 = vadd.f32 %v5211, %v5212
      %v5214 = vsel %vm5066, %v5188, 0.0
      %v5215 = vrot.slane %v5214, 4
      %v5216 = vadd.f32 %v5214, %v5215
      %v5217 = vrot.slane %v5216, 2
      %v5218 = vadd.f32 %v5216, %v5217
      %v5219 = vrot.slane %v5218, 1
      %v5220 = vadd.f32 %v5218, %v5219
      %5225 = vrot.lane.b32.xlu0 %v5199, 71
      %v5226 = vpop.permute.xlu0 %5225
      %5227 = vrot.lane.b32.xlu0 %v5206, 71
      %v5228 = vpop.permute.xlu0 %5227
      %5229 = vrot.lane.b32.xlu0 %v5213, 71
      %v5230 = vpop.permute.xlu0 %5229
      %5231 = vrot.lane.b32.xlu0 %v5220, 71
      %v5232 = vpop.permute.xlu0 %5231
      %v5233 = vsel %vm2077, %v5226, %v5228
      %v5234 = vsel %vm2077, %v5228, %v5230
      %v5235 = vsel %vm2077, %v5230, %v5232
      %v5240 = vadd.f32 %v4944, %v5233
      %v5241 = vadd.f32 %v4945, %v5234
      %v5242 = vadd.f32 %v4946, %v5235
      %v5243 = vadd.f32 %v4947, %v5232
      %5244 = vset.pattern.permute.xlu0 34
      %5245 = vperm.xlu0 %5244, %v3029
      %v5246 = vpop.permute.xlu0 %5245
      %v5247 = vrot.slane %v5246, 2
      %v5249 = vmul.f32 %v3113, %v5247
      %v5250 = vmul.f32 %v3114, %v5247
      %v5251 = vmul.f32 %v3115, %v5247
      %v5252 = vmul.f32 %v3116, %v5247
      %v5253 = vmul.f32 %v3117, %v5247
      %v5254 = vmul.f32 %v3118, %v5247
      %v5255 = vmul.f32 %v3119, %v5247
      %v5256 = vmul.f32 %v3120, %v5247
      %v5265 = vrot.slane %v5249, 6
      %v5266 = vrot.slane %v5253, 6
      %v5267 = vsel %vm3142, %v5265, %v5266
      %v5268 = vrot.slane %v5250, 6
      %v5269 = vrot.slane %v5254, 6
      %v5270 = vsel %vm3142, %v5268, %v5269
      %v5271 = vrot.slane %v5251, 6
      %v5272 = vrot.slane %v5255, 6
      %v5273 = vsel %vm3142, %v5271, %v5272
      %v5274 = vrot.slane %v5252, 6
      %v5275 = vrot.slane %v5256, 6
      %v5276 = vsel %vm3142, %v5274, %v5275
      %v5281 = vsel %vm5044, %v5267, 0.0
      %v5282 = vrot.slane %v5281, 4
      %v5283 = vadd.f32 %v5281, %v5282
      %v5284 = vrot.slane %v5283, 2
      %v5285 = vadd.f32 %v5283, %v5284
      %v5286 = vrot.slane %v5285, 1
      %v5287 = vadd.f32 %v5285, %v5286
      %v5288 = vsel %vm3039, %v5270, 0.0
      %v5289 = vrot.slane %v5288, 4
      %v5290 = vadd.f32 %v5288, %v5289
      %v5291 = vrot.slane %v5290, 2
      %v5292 = vadd.f32 %v5290, %v5291
      %v5293 = vrot.slane %v5292, 1
      %v5294 = vadd.f32 %v5292, %v5293
      %v5295 = vsel %vm3039, %v5273, 0.0
      %v5296 = vrot.slane %v5295, 4
      %v5297 = vadd.f32 %v5295, %v5296
      %v5298 = vrot.slane %v5297, 2
      %v5299 = vadd.f32 %v5297, %v5298
      %v5300 = vrot.slane %v5299, 1
      %v5301 = vadd.f32 %v5299, %v5300
      %v5302 = vsel %vm5066, %v5276, 0.0
      %v5303 = vrot.slane %v5302, 4
      %v5304 = vadd.f32 %v5302, %v5303
      %v5305 = vrot.slane %v5304, 2
      %v5306 = vadd.f32 %v5304, %v5305
      %v5307 = vrot.slane %v5306, 1
      %v5308 = vadd.f32 %v5306, %v5307
      %5313 = vrot.lane.b32.xlu0 %v5287, 71
      %v5314 = vpop.permute.xlu0 %5313
      %5315 = vrot.lane.b32.xlu0 %v5294, 71
      %v5316 = vpop.permute.xlu0 %5315
      %5317 = vrot.lane.b32.xlu0 %v5301, 71
      %v5318 = vpop.permute.xlu0 %5317
      %5319 = vrot.lane.b32.xlu0 %v5308, 71
      %v5320 = vpop.permute.xlu0 %5319
      %v5321 = vsel %vm2077, %v5314, %v5316
      %v5322 = vsel %vm2077, %v5316, %v5318
      %v5323 = vsel %vm2077, %v5318, %v5320
      %v5328 = vadd.f32 %v5032, %v5321
      %v5329 = vadd.f32 %v5033, %v5322
      %v5330 = vadd.f32 %v5034, %v5323
      %v5331 = vadd.f32 %v5035, %v5320
      %5332 = vset.pattern.permute.xlu0 8
      %5333 = vperm.xlu0 %5332, %v3029
      %v5334 = vpop.permute.xlu0 %5333
      %v5336 = vmul.f32 %v3025, %v5334
      %v5337 = vmul.f32 %v3026, %v5334
      %v5338 = vmul.f32 %v3027, %v5334
      %v5339 = vmul.f32 %v3028, %v5334
      %vm5340 = vcmask 1045968
      %v5341 = vsel %vm5340, %v5336, 0.0
      %v5342 = vrot.slane %v5341, 4
      %v5343 = vadd.f32 %v5341, %v5342
      %v5344 = vrot.slane %v5343, 2
      %v5345 = vadd.f32 %v5343, %v5344
      %v5346 = vrot.slane %v5345, 1
      %v5347 = vadd.f32 %v5345, %v5346
      %v5348 = vsel %vm3039, %v5337, 0.0
      %v5349 = vrot.slane %v5348, 4
      %v5350 = vadd.f32 %v5348, %v5349
      %v5351 = vrot.slane %v5350, 2
      %v5352 = vadd.f32 %v5350, %v5351
      %v5353 = vrot.slane %v5352, 1
      %v5354 = vadd.f32 %v5352, %v5353
      %v5355 = vsel %vm3039, %v5338, 0.0
      %v5356 = vrot.slane %v5355, 4
      %v5357 = vadd.f32 %v5355, %v5356
      %v5358 = vrot.slane %v5357, 2
      %v5359 = vadd.f32 %v5357, %v5358
      %v5360 = vrot.slane %v5359, 1
      %v5361 = vadd.f32 %v5359, %v5360
      %vm5362 = vcmask 766976
      %v5363 = vsel %vm5362, %v5339, 0.0
      %v5364 = vrot.slane %v5363, 4
      %v5365 = vadd.f32 %v5363, %v5364
      %v5366 = vrot.slane %v5365, 2
      %v5367 = vadd.f32 %v5365, %v5366
      %v5368 = vrot.slane %v5367, 1
      %v5369 = vadd.f32 %v5367, %v5368
      %5374 = vrot.lane.b32.xlu0 %v5347, 70
      %v5375 = vpop.permute.xlu0 %5374
      %5376 = vrot.lane.b32.xlu0 %v5354, 70
      %v5377 = vpop.permute.xlu0 %5376
      %5378 = vrot.lane.b32.xlu0 %v5361, 70
      %v5379 = vpop.permute.xlu0 %5378
      %5380 = vrot.lane.b32.xlu0 %v5369, 70
      %v5381 = vpop.permute.xlu0 %5380
      %v5382 = vsel %vm2140, %v5375, %v5377
      %v5383 = vsel %vm2140, %v5377, %v5379
      %v5384 = vsel %vm2140, %v5379, %v5381
      %v5389 = vadd.f32 %v5093, %v5382
      %v5390 = vadd.f32 %v5094, %v5383
      %v5391 = vadd.f32 %v5095, %v5384
      %v5392 = vadd.f32 %v5096, %v5381
      %5393 = vset.pattern.permute.xlu0 17
      %5394 = vperm.xlu0 %5393, %v3029
      %v5395 = vpop.permute.xlu0 %5394
      %v5397 = vmul.f32 %v3025, %v5395
      %v5398 = vmul.f32 %v3026, %v5395
      %v5399 = vmul.f32 %v3027, %v5395
      %v5400 = vmul.f32 %v3028, %v5395
      %v5401 = vsel %vm5340, %v5397, 0.0
      %v5402 = vrot.slane %v5401, 4
      %v5403 = vadd.f32 %v5401, %v5402
      %v5404 = vrot.slane %v5403, 2
      %v5405 = vadd.f32 %v5403, %v5404
      %v5406 = vrot.slane %v5405, 1
      %v5407 = vadd.f32 %v5405, %v5406
      %v5408 = vsel %vm3039, %v5398, 0.0
      %v5409 = vrot.slane %v5408, 4
      %v5410 = vadd.f32 %v5408, %v5409
      %v5411 = vrot.slane %v5410, 2
      %v5412 = vadd.f32 %v5410, %v5411
      %v5413 = vrot.slane %v5412, 1
      %v5414 = vadd.f32 %v5412, %v5413
      %v5415 = vsel %vm3039, %v5399, 0.0
      %v5416 = vrot.slane %v5415, 4
      %v5417 = vadd.f32 %v5415, %v5416
      %v5418 = vrot.slane %v5417, 2
      %v5419 = vadd.f32 %v5417, %v5418
      %v5420 = vrot.slane %v5419, 1
      %v5421 = vadd.f32 %v5419, %v5420
      %v5422 = vsel %vm5362, %v5400, 0.0
      %v5423 = vrot.slane %v5422, 4
      %v5424 = vadd.f32 %v5422, %v5423
      %v5425 = vrot.slane %v5424, 2
      %v5426 = vadd.f32 %v5424, %v5425
      %v5427 = vrot.slane %v5426, 1
      %v5428 = vadd.f32 %v5426, %v5427
      %5433 = vrot.lane.b32.xlu0 %v5407, 70
      %v5434 = vpop.permute.xlu0 %5433
      %5435 = vrot.lane.b32.xlu0 %v5414, 70
      %v5436 = vpop.permute.xlu0 %5435
      %5437 = vrot.lane.b32.xlu0 %v5421, 70
      %v5438 = vpop.permute.xlu0 %5437
      %5439 = vrot.lane.b32.xlu0 %v5428, 70
      %v5440 = vpop.permute.xlu0 %5439
      %v5441 = vsel %vm2140, %v5434, %v5436
      %v5442 = vsel %vm2140, %v5436, %v5438
      %v5443 = vsel %vm2140, %v5438, %v5440
      %v5448 = vadd.f32 %v5152, %v5441
      %v5449 = vadd.f32 %v5153, %v5442
      %v5450 = vadd.f32 %v5154, %v5443
      %v5451 = vadd.f32 %v5155, %v5440
      %5452 = vset.pattern.permute.xlu0 26
      %5453 = vperm.xlu0 %5452, %v3029
      %v5454 = vpop.permute.xlu0 %5453
      %v5455 = vrot.slane %v5454, 2
      %v5457 = vmul.f32 %v3113, %v5455
      %v5458 = vmul.f32 %v3114, %v5455
      %v5459 = vmul.f32 %v3115, %v5455
      %v5460 = vmul.f32 %v3116, %v5455
      %v5461 = vmul.f32 %v3117, %v5455
      %v5462 = vmul.f32 %v3118, %v5455
      %v5463 = vmul.f32 %v3119, %v5455
      %v5464 = vmul.f32 %v3120, %v5455
      %v5473 = vrot.slane %v5457, 6
      %v5474 = vrot.slane %v5461, 6
      %v5475 = vsel %vm3142, %v5473, %v5474
      %v5476 = vrot.slane %v5458, 6
      %v5477 = vrot.slane %v5462, 6
      %v5478 = vsel %vm3142, %v5476, %v5477
      %v5479 = vrot.slane %v5459, 6
      %v5480 = vrot.slane %v5463, 6
      %v5481 = vsel %vm3142, %v5479, %v5480
      %v5482 = vrot.slane %v5460, 6
      %v5483 = vrot.slane %v5464, 6
      %v5484 = vsel %vm3142, %v5482, %v5483
      %v5489 = vsel %vm5340, %v5475, 0.0
      %v5490 = vrot.slane %v5489, 4
      %v5491 = vadd.f32 %v5489, %v5490
      %v5492 = vrot.slane %v5491, 2
      %v5493 = vadd.f32 %v5491, %v5492
      %v5494 = vrot.slane %v5493, 1
      %v5495 = vadd.f32 %v5493, %v5494
      %v5496 = vsel %vm3039, %v5478, 0.0
      %v5497 = vrot.slane %v5496, 4
      %v5498 = vadd.f32 %v5496, %v5497
      %v5499 = vrot.slane %v5498, 2
      %v5500 = vadd.f32 %v5498, %v5499
      %v5501 = vrot.slane %v5500, 1
      %v5502 = vadd.f32 %v5500, %v5501
      %v5503 = vsel %vm3039, %v5481, 0.0
      %v5504 = vrot.slane %v5503, 4
      %v5505 = vadd.f32 %v5503, %v5504
      %v5506 = vrot.slane %v5505, 2
      %v5507 = vadd.f32 %v5505, %v5506
      %v5508 = vrot.slane %v5507, 1
      %v5509 = vadd.f32 %v5507, %v5508
      %v5510 = vsel %vm5362, %v5484, 0.0
      %v5511 = vrot.slane %v5510, 4
      %v5512 = vadd.f32 %v5510, %v5511
      %v5513 = vrot.slane %v5512, 2
      %v5514 = vadd.f32 %v5512, %v5513
      %v5515 = vrot.slane %v5514, 1
      %v5516 = vadd.f32 %v5514, %v5515
      %5521 = vrot.lane.b32.xlu0 %v5495, 70
      %v5522 = vpop.permute.xlu0 %5521
      %5523 = vrot.lane.b32.xlu0 %v5502, 70
      %v5524 = vpop.permute.xlu0 %5523
      %5525 = vrot.lane.b32.xlu0 %v5509, 70
      %v5526 = vpop.permute.xlu0 %5525
      %5527 = vrot.lane.b32.xlu0 %v5516, 70
      %v5528 = vpop.permute.xlu0 %5527
      %v5529 = vsel %vm2140, %v5522, %v5524
      %v5530 = vsel %vm2140, %v5524, %v5526
      %v5531 = vsel %vm2140, %v5526, %v5528
      %v5536 = vadd.f32 %v5240, %v5529
      %v5537 = vadd.f32 %v5241, %v5530
      %v5538 = vadd.f32 %v5242, %v5531
      %v5539 = vadd.f32 %v5243, %v5528
      %5540 = vset.pattern.permute.xlu0 35
      %5541 = vperm.xlu0 %5540, %v3029
      %v5542 = vpop.permute.xlu0 %5541
      %v5543 = vrot.slane %v5542, 2
      %v5545 = vmul.f32 %v3113, %v5543
      %v5546 = vmul.f32 %v3114, %v5543
      %v5547 = vmul.f32 %v3115, %v5543
      %v5548 = vmul.f32 %v3116, %v5543
      %v5549 = vmul.f32 %v3117, %v5543
      %v5550 = vmul.f32 %v3118, %v5543
      %v5551 = vmul.f32 %v3119, %v5543
      %v5552 = vmul.f32 %v3120, %v5543
      %v5561 = vrot.slane %v5545, 6
      %v5562 = vrot.slane %v5549, 6
      %v5563 = vsel %vm3142, %v5561, %v5562
      %v5564 = vrot.slane %v5546, 6
      %v5565 = vrot.slane %v5550, 6
      %v5566 = vsel %vm3142, %v5564, %v5565
      %v5567 = vrot.slane %v5547, 6
      %v5568 = vrot.slane %v5551, 6
      %v5569 = vsel %vm3142, %v5567, %v5568
      %v5570 = vrot.slane %v5548, 6
      %v5571 = vrot.slane %v5552, 6
      %v5572 = vsel %vm3142, %v5570, %v5571
      %v5577 = vsel %vm5340, %v5563, 0.0
      %v5578 = vrot.slane %v5577, 4
      %v5579 = vadd.f32 %v5577, %v5578
      %v5580 = vrot.slane %v5579, 2
      %v5581 = vadd.f32 %v5579, %v5580
      %v5582 = vrot.slane %v5581, 1
      %v5583 = vadd.f32 %v5581, %v5582
      %v5584 = vsel %vm3039, %v5566, 0.0
      %v5585 = vrot.slane %v5584, 4
      %v5586 = vadd.f32 %v5584, %v5585
      %v5587 = vrot.slane %v5586, 2
      %v5588 = vadd.f32 %v5586, %v5587
      %v5589 = vrot.slane %v5588, 1
      %v5590 = vadd.f32 %v5588, %v5589
      %v5591 = vsel %vm3039, %v5569, 0.0
      %v5592 = vrot.slane %v5591, 4
      %v5593 = vadd.f32 %v5591, %v5592
      %v5594 = vrot.slane %v5593, 2
      %v5595 = vadd.f32 %v5593, %v5594
      %v5596 = vrot.slane %v5595, 1
      %v5597 = vadd.f32 %v5595, %v5596
      %v5598 = vsel %vm5362, %v5572, 0.0
      %v5599 = vrot.slane %v5598, 4
      %v5600 = vadd.f32 %v5598, %v5599
      %v5601 = vrot.slane %v5600, 2
      %v5602 = vadd.f32 %v5600, %v5601
      %v5603 = vrot.slane %v5602, 1
      %v5604 = vadd.f32 %v5602, %v5603
      %5609 = vrot.lane.b32.xlu0 %v5583, 70
      %v5610 = vpop.permute.xlu0 %5609
      %5611 = vrot.lane.b32.xlu0 %v5590, 70
      %v5612 = vpop.permute.xlu0 %5611
      %5613 = vrot.lane.b32.xlu0 %v5597, 70
      %v5614 = vpop.permute.xlu0 %5613
      %5615 = vrot.lane.b32.xlu0 %v5604, 70
      %v5616 = vpop.permute.xlu0 %5615
      %v5617 = vsel %vm2140, %v5610, %v5612
      %v5618 = vsel %vm2140, %v5612, %v5614
      %v5619 = vsel %vm2140, %v5614, %v5616
      %v5624 = vadd.f32 %v5328, %v5617
      %v5625 = vadd.f32 %v5329, %v5618
      %v5626 = vadd.f32 %v5330, %v5619
      %v5627 = vadd.f32 %v5331, %v5616
      %v5632 = vrot.slane %v5448, 7
      %v5633 = vrot.slane %v5449, 7
      %v5634 = vrot.slane %v5450, 7
      %v5635 = vrot.slane %v5451, 7
      %v5644 = vrot.slane %v5536, 6
      %v5645 = vrot.slane %v5537, 6
      %v5646 = vrot.slane %v5538, 6
      %v5647 = vrot.slane %v5539, 6
      %v5656 = vrot.slane %v5624, 5
      %v5657 = vrot.slane %v5625, 5
      %v5658 = vrot.slane %v5626, 5
      %v5659 = vrot.slane %v5627, 5
      %vm5664 = vcmask 1040384
      %v5665 = vsel %vm5664, %v5389, %v5632
      %v5666 = vsel %vm5664, %v5390, %v5633
      %v5667 = vsel %vm5664, %v5391, %v5634
      %v5668 = vsel %vm5664, %v5392, %v5635
      %v5669 = vsel %vm3142, %v5665, %v5644
      %v5670 = vsel %vm3142, %v5666, %v5645
      %v5671 = vsel %vm3142, %v5667, %v5646
      %v5672 = vsel %vm3142, %v5668, %v5647
      %vm5673 = vcmask 1042432
      %v5674 = vsel %vm5673, %v5669, %v5656
      %v5675 = vsel %vm5673, %v5670, %v5657
      %v5676 = vsel %vm5673, %v5671, %v5658
      %v5677 = vsel %vm5673, %v5672, %v5659
      %v5682 = vcombine.low %v5674, %v5675
      %v5683 = vcombine.low %v5676, %v5677
      %5686 = vst [vmem:[%s359] sm:$0xff] %v5682
      %vm5687 = vcmask 1043456
      %vm5688 = vcmask 293892
      %vm5689 = vmor %vm5688, %vm5687
      %5690 = vst.msk [vmem:[%s359 + $0x8] sm:$0xff] %vm5689, %v5683
      %p5691 = scmp.lt.s32.totalorder %s21, 1
      %s5692 = scalar_select %p5691, %s21, 1
      %s5693 = smul.addr %s5692, 4
      %s5694 = smul.addr %s5693, 4
      %s5695 = scalar_lea.vmem %s10, %s5694
      // Predicated region
      $region61: #{model_forward.1} parent=59 // pred_check
        %p5696 = pneg %p254
      $region62: #{model_forward.1} parent=59 // pred_check_branch
        %5698 = sbr.rel (%p5696) target = $region64
      $region63: #{model_forward.1} parent=59 // pred_region
        _
      $region64: #{model_forward.1} parent=59 // pred_fallthru
        _
    $region60: #{model_forward.1} parent=5 // pred_fallthru
      _
    %p5699 = scmp.le.s32.totalorder 2, %s16
    // Predicated region
    $region65: #{model_forward.1} parent=5 // pred_check
      %p5700 = pneg %p5699
    $region66: #{model_forward.1} parent=5 // pred_check_branch
      %5702 = sbr.rel (%p5700) target = $region68
    $region67: #{model_forward.1} parent=5 // pred_region
      %s5703 = ssub.s32 %s16, 2
      // Predicated region
      $region69: #{model_forward.1} parent=67 // pred_check
        %p5704 = pneg %p260
      $region70: #{model_forward.1} parent=67 // pred_check_branch
        %5706 = sbr.rel (%p5704) target = $region72
      $region71: #{model_forward.1} parent=67 // pred_region
        %p5707 = scmp.lt.s32.totalorder %s22, 1
        %s5708 = scalar_select %p5707, %s22, 1
        %s5709 = smul.addr %s5708, 4
        %s5710 = smul.addr %s5709, 4
        %s5711 = scalar_lea.vmem %s10, %s5710
      $region72: #{model_forward.1} parent=67 // pred_fallthru
        _
    $region68: #{model_forward.1} parent=5 // pred_fallthru
      _
  $region6: #{model_forward.1} parent=0 // loop_footer
    %s20 = sadd.s32 1, %s16
  $region7: #{model_forward.1} parent=0 // loop_footer_branch
    %15 = sbr.rel target = $region3
  $region8: #{model_forward.1} parent=0 // loop_exit
    _

</llo_original>
